<compile_context>
chip_gen: v7x
topology: tpu7x:2x2x1
jax: 0.10.0
libtpu: 0.0.40
codegen_flags: <defaults>
</compile_context>

<pallas_src>
import jax
import jax.numpy as jnp
import numpy as np
from jax import lax
from jax.experimental import pallas as pl
from jax.experimental.pallas import tpu as pltpu


# ----------------------------------------------------------------------------- reference GRU
def _gru_step(x_t, h, w_ih, w_hh, b_ih, b_hh, hid):
    """One PyTorch-semantics GRU cell step (gate order: reset, update, new) — reference only."""
    gi = jnp.dot(x_t, w_ih, preferred_element_type=jnp.float32) + b_ih
    gh = jnp.dot(h, w_hh, preferred_element_type=jnp.float32) + b_hh
    r = jax.nn.sigmoid(gi[:, :hid] + gh[:, :hid])
    z = jax.nn.sigmoid(gi[:, hid:2 * hid] + gh[:, hid:2 * hid])
    n = jnp.tanh(gi[:, 2 * hid:] + r * gh[:, 2 * hid:])
    return (1.0 - z) * n + z * h


# ----------------------------------------------------------------------------- param packing
def _pad_lanes(a, width):
    return jnp.pad(a, ((0, 0), (0, width - a.shape[1])))


def prepare_params(p, cfg):
    """Natural-layout f32 params -> lane-padded, bias-fused, (partially) bf16 kernel operands."""

    def gru_pack(wih, whh, bih, bhh, hid):
        HP = max(128, -(-hid // 128) * 128)          # each gate gets its own 128-lane slot

        def pad_gates(w):                             # (in, 3*hid) -> (in, 3*HP), gates r|z|n
            return jnp.concatenate(
                [_pad_lanes(w[:, g * hid:(g + 1) * hid], HP) for g in range(3)], axis=1)

        wih_p = pad_gates(wih).astype(jnp.bfloat16)                                   # (in, 3HP)
        whh_p = jnp.pad(pad_gates(whh), ((0, HP - hid), (0, 0))).astype(jnp.bfloat16)  # (HP, 3HP)
        # fused bias for the hoisted input projection: r,z gates carry bih+bhh; n gate only bih
        b_r = bih[:, :hid] + bhh[:, :hid]
        b_z = bih[:, hid:2 * hid] + bhh[:, hid:2 * hid]
        b_n = bih[:, 2 * hid:]
        bias_gi = jnp.concatenate(
            [_pad_lanes(b_r, HP), _pad_lanes(b_z, HP), _pad_lanes(b_n, HP)], axis=1)   # (1, 3HP)
        bhh_n = _pad_lanes(bhh[:, 2 * hid:], HP)                                       # (1, HP)
        return wih_p, whh_p, bias_gi, bhh_n, HP

    wih1, whh1, bgi1, bhh1n, HP1 = gru_pack(p["gru1_wih"], p["gru1_whh"],
                                            p["gru1_bih"], p["gru1_bhh"], cfg["hidRNN"])
    wihs, whhs, bgis, bhhsn, HPs = gru_pack(p["grus_wih"], p["grus_whh"],
                                            p["grus_bih"], p["grus_bhh"], cfg["hidSkip"])

    ops = dict(
        conv_w=p["conv_w"].astype(jnp.bfloat16), conv_b=p["conv_b"],
        wih1=wih1, whh1=whh1, bgi1=bgi1, bhh1n=bhh1n,
        wihs=wihs, whhs=whhs, bgis=bgis, bhhsn=bhhsn,
        lin_r=jnp.pad(p["lin_r_w"], ((0, HP1 - cfg["hidRNN"]), (0, 0))),          # (HP1, O)
        lin_s=jnp.pad(p["lin_s_w"], ((0, 0), (0, HPs - cfg["hidSkip"]), (0, 0))),  # (skip,HPs,O)
        lin_b=p["lin_b"], hw_w=p["hw_w"], hw_b=p["hw_b"])
    return ops, HP1, HPs


# ----------------------------------------------------------------------------- Pallas kernel
def make_lstnet_kernel(cfg, bb, HP1, HPs):
    L = cfg["L"]
    skip, skip_seq, offset = cfg["skip"], cfg["skipSeq"], cfg["skipOffset"]

    def gru_gates(gi, gh, h, bhh_n, HP):
        # all slices are at lane offsets 0 / 128 / 256 -> full lane-aligned vregs
        r = jax.nn.sigmoid(gi[:, :HP] + gh[:, :HP])
        z = jax.nn.sigmoid(gi[:, HP:2 * HP] + gh[:, HP:2 * HP])
        n = jnp.tanh(gi[:, 2 * HP:] + r * (gh[:, 2 * HP:] + bhh_n))
        return (1.0 - z) * n + z * h

    def kernel(patches_ref, xhw_ref,
               convw_ref, convb_ref,
               wih1_ref, whh1_ref, bgi1_ref, bhh1n_ref,
               wihs_ref, whhs_ref, bgis_ref, bhhsn_ref,
               wlinr_ref, wlins_ref, blin_ref,
               whw_ref, bhw_ref,
               out_ref,
               gi1_scr, gis_scr):
        # ---- fused conv (im2col matmul) + ReLU for all L conv time slices, one MXU call ----
        patches = patches_ref[...].astype(jnp.bfloat16).reshape(L * bb, -1)
        c = jnp.maximum(
            jnp.dot(patches, convw_ref[...], preferred_element_type=jnp.float32)
            + convb_ref[...], 0.0)                                        # (L*bb, hidC) f32
        c_bf = c.astype(jnp.bfloat16)
        # (dropout after the conv is identity in eval mode)

        # ---- cuDNN-style hoist: whole-sequence input projections for both GRUs -------------
        gi1 = jnp.dot(c_bf, wih1_ref[...], preferred_element_type=jnp.float32) + bgi1_ref[...]
        gi1_scr[...] = gi1.reshape(L, bb, 3 * HP1)
        gis = jnp.dot(c_bf, wihs_ref[...], preferred_element_type=jnp.float32) + bgis_ref[...]
        # regroup the skip sequence: conv time (offset + t*skip + j) -> [t, j*bb + b]
        # (pure leading-dim slice/reshape, layout-free since bb is a multiple of 8)
        gis_scr[...] = gis[offset * bb:, :].reshape(skip_seq, skip * bb, 3 * HPs)

        # ---- main GRU: only gh = h @ W_hh remains on the serial chain ----------------------
        whh1 = whh1_ref[...]
        bhh1n = bhh1n_ref[...]

        def gru1_body(t, h):
            gh = jnp.dot(h.astype(jnp.bfloat16), whh1, preferred_element_type=jnp.float32)
            return gru_gates(gi1_scr[t], gh, h, bhh1n, HP1)

        h1 = lax.fori_loop(0, L, gru1_body, jnp.zeros((bb, HP1), jnp.float32), unroll=True)

        # ---- skip GRU: the `skip` chains are folded into the batch dimension ---------------
        whhs = whhs_ref[...]
        bhhsn = bhhsn_ref[...]

        def grus_body(t, h):
            gh = jnp.dot(h.astype(jnp.bfloat16), whhs, preferred_element_type=jnp.float32)
            return gru_gates(gis_scr[t], gh, h, bhhsn, HPs)

        hs = lax.fori_loop(0, skip_seq, grus_body,
                           jnp.zeros((skip * bb, HPs), jnp.float32), unroll=True)

        # ---- dense layer (linear1), split into GRU part + per-skip-chain part --------------
        res = jnp.dot(h1, wlinr_ref[...], preferred_element_type=jnp.float32) + blin_ref[...]
        hs3 = hs.reshape(skip, bb, HPs)
        for j in range(skip):                       # skip is tiny & static; runs once, off-chain
            res = res + jnp.dot(hs3[j], wlins_ref[j], preferred_element_type=jnp.float32)

        # ---- highway (direct regression) path, combined with 'plus'; sigmoid output --------
        res = res + jnp.dot(xhw_ref[...], whw_ref[...],
                            preferred_element_type=jnp.float32) + bhw_ref[...]
        out_ref[...] = jax.nn.sigmoid(res)

    return kernel


# ----------------------------------------------------------------------------- wrapper
def lstnet_forward(x, params, cfg, batch_block=None):
    """x: (B, numInputTimeSlices, D) -> (B, numOutputTimeSlices, outputDimPerTimeSlice)."""
    B, T, D = x.shape
    Ck, L, hw, O = cfg["Ck"], cfg["L"], cfg["hw"], cfg["totalOut"]
    skip, skip_seq = cfg["skip"], cfg["skipSeq"]

    if batch_block is None:
        bb = max(8, -(-B // 8) * 8)                 # whole (sublane-padded) batch, grid = (1,)
    else:
        assert batch_block % 8 == 0, "batch_block must be a multiple of 8 sublanes"
        bb = batch_block
    B_pad = -(-B // bb) * bb
    nblocks = B_pad // bb

    xp = jnp.pad(x, ((0, B_pad - B), (0, 0), (0, 0)))
    # im2col patches, time-major: (L, B_pad, Ck*D); highway input: last hw slices flattened.
    patches = jnp.stack([xp[:, t:t + Ck, :].reshape(B_pad, Ck * D) for t in range(L)], axis=0)
    x_hw = xp[:, -hw:, :].reshape(B_pad, hw * D)

    kp, HP1, HPs = prepare_params(params, cfg)
    kernel = make_lstnet_kernel(cfg, bb, HP1, HPs)

    operands = (patches, x_hw,
                kp["conv_w"], kp["conv_b"],
                kp["wih1"], kp["whh1"], kp["bgi1"], kp["bhh1n"],
                kp["wihs"], kp["whhs"], kp["bgis"], kp["bhhsn"],
                kp["lin_r"], kp["lin_s"], kp["lin_b"],
                kp["hw_w"], kp["hw_b"])

    def _full_spec(a):
        nd = a.ndim

        def imap(i):
            return (0,) * nd

        return pl.BlockSpec(a.shape, imap)

    in_specs = ([pl.BlockSpec((L, bb, Ck * D), lambda i: (0, i, 0)),
                 pl.BlockSpec((bb, hw * D), lambda i: (i, 0))]
                + [_full_spec(a) for a in operands[2:]])

    out = pl.pallas_call(
        kernel,
        out_shape=jax.ShapeDtypeStruct((B_pad, O), jnp.float32),
        grid=(nblocks,),
        in_specs=in_specs,
        out_specs=pl.BlockSpec((bb, O), lambda i: (i, 0)),
        scratch_shapes=[pltpu.VMEM((L, bb, 3 * HP1), jnp.float32),
                        pltpu.VMEM((skip_seq, skip * bb, 3 * HPs), jnp.float32)],
        compiler_params=pltpu.CompilerParams(
            # batch blocks are independent -> parallel; lets v7x use both TensorCores
            dimension_semantics=("parallel",)),
    )(*operands)

    # (batchSize, numOutputTimeSlices, outputDimPerTimeSlice); isClassification=False
    return out[:B].reshape(B, cfg["numOutputTimeSlices"], cfg["outputDimPerTimeSlice"])


# ----------------------------------------------------------------------------- pure-JAX reference
def lstnet_reference(x, params, cfg):
    """Pure-JAX f32 mirror of the PyTorch forward semantics (eval mode)."""
    B, T, D = x.shape
    Ck, L, hw = cfg["Ck"], cfg["L"], cfg["hw"]
    skip, skip_seq, offset = cfg["skip"], cfg["skipSeq"], cfg["skipOffset"]
    hidRNN, hidSkip, O = cfg["hidRNN"], cfg["hidSkip"], cfg["totalOut"]

    patches = jnp.stack([x[:, t:t + Ck, :].reshape(B, Ck * D) for t in range(L)], axis=0)
    c = jax.nn.relu(jnp.einsum("lbp,pc->lbc", patches, params["conv_w"]) + params["conv_b"])

    h = jnp.zeros((B, hidRNN), jnp.float32)
    for t in range(L):
        h = _gru_step(c[t], h, params["gru1_wih"], params["gru1_whh"],
                      params["gru1_bih"], params["gru1_bhh"], hidRNN)

    hs = []
    for j in range(skip):
        hj = jnp.zeros((B, hidSkip), jnp.float32)
        for t in range(skip_seq):
            hj = _gru_step(c[offset + t * skip + j], hj, params["grus_wih"],
                           params["grus_whh"], params["grus_bih"], params["grus_bhh"], hidSkip)
        hs.append(hj)
    s_flat = jnp.concatenate(hs, axis=1)            # matches torch s.view(B, skip*hidSkip)

    lin_w = jnp.concatenate(
        [params["lin_r_w"], params["lin_s_w"].reshape(skip * hidSkip, O)], axis=0)
    res = jnp.concatenate([h, s_flat], axis=1) @ lin_w + params["lin_b"]

    x_hw = x[:, -hw:, :].reshape(B, hw * D)
    res = res + x_hw @ params["hw_w"] + params["hw_b"]          # highwayCombine = 'plus'
    res = jax.nn.sigmoid(res)
    return res.reshape(B, cfg["numOutputTimeSlices"], cfg["outputDimPerTimeSlice"])


# ----------------------------------------------------------------------------- main
if __name__ == "__main__":
    B = 2
    numInputTimeSlices = 16          # window
    inputDimPerTimeSlice = 8
    numOutputTimeSlices = 2
    outputDimPerTimeSlice = 3
    numConvolutions = 32             # hidC
    numCnnTimeSlices = 6             # Ck
    hidRNN = 32
    skip = 2
    hidSkip = 4
    hwWindow = 16                    # >= window per the module's consistency check

    L = numInputTimeSlices - numCnnTimeSlices + 1    # convSeqLength = 11
    skipSeq = L // skip                              # 5
    cfg = dict(
        Ck=numCnnTimeSlices, L=L, hw=hwWindow, skip=skip, skipSeq=skipSeq,
        skipOffset=L - skipSeq * skip, hidRNN=hidRNN, hidSkip=hidSkip,
        numOutputTimeSlices=numOutputTimeSlices,
        outputDimPerTimeSlice=outputDimPerTimeSlice,
        totalOut=numOutputTimeSlices * outputDimPerTimeSlice,
    )

    D = inputDimPerTimeSlice
    O = cfg["totalOut"]
    key = jax.random.PRNGKey(0)
    keys = jax.random.split(key, 17)
    scale = 0.2

    def rn(k, shape):
        return jax.random.normal(k, shape, jnp.float32) * scale

    # Deterministic synthetic parameters (shapes implied by LSTNetwork.__init__;
    # stored transposed to (in, out) layout for the kernel's matmuls).
    params = {
        "conv_w":   rn(keys[0], (numCnnTimeSlices * D, numConvolutions)),
        "conv_b":   rn(keys[1], (1, numConvolutions)),
        "gru1_wih": rn(keys[2], (numConvolutions, 3 * hidRNN)),
        "gru1_whh": rn(keys[3], (hidRNN, 3 * hidRNN)),
        "gru1_bih": rn(keys[4], (1, 3 * hidRNN)),
        "gru1_bhh": rn(keys[5], (1, 3 * hidRNN)),
        "grus_wih": rn(keys[6], (numConvolutions, 3 * hidSkip)),
        "grus_whh": rn(keys[7], (hidSkip, 3 * hidSkip)),
        "grus_bih": rn(keys[8], (1, 3 * hidSkip)),
        "grus_bhh": rn(keys[9], (1, 3 * hidSkip)),
        "lin_r_w":  rn(keys[10], (hidRNN, O)),
        "lin_s_w":  rn(keys[11], (skip, hidSkip, O)),
        "lin_b":    rn(keys[12], (1, O)),
        "hw_w":     rn(keys[13], (hwWindow * D, O)),
        "hw_b":     rn(keys[14], (1, O)),
    }
    x = jax.random.normal(keys[15], (B, numInputTimeSlices, D), jnp.float32)

    # --- small batch, single grid step (default path) ---
    fwd = jax.jit(lambda xx: lstnet_forward(xx, params, cfg))
    out = jax.block_until_ready(fwd(x))
    ref = lstnet_reference(x, params, cfg)
    # bf16 MXU operands on the conv / gi / recurrent matmuls -> tolerance slightly above f32's
    np.testing.assert_allclose(np.asarray(out), np.asarray(ref), rtol=1e-2, atol=1e-2)
    assert out.shape == (B, numOutputTimeSlices, outputDimPerTimeSlice)

    # --- larger batch split into two parallel batch blocks (exercises the v7x grid path) ---
    xb = jax.random.normal(keys[16], (16, numInputTimeSlices, D), jnp.float32)
    fwd_grid = jax.jit(lambda xx: lstnet_forward(xx, params, cfg, batch_block=8))
    out_b = jax.block_until_ready(fwd_grid(xb))
    ref_b = lstnet_reference(xb, params, cfg)
    np.testing.assert_allclose(np.asarray(out_b), np.asarray(ref_b), rtol=1e-2, atol=1e-2)

    print("KERNEL_OK")
</pallas_src>

<mosaic_0001>
module attributes {stable_mosaic.version = 11 : i64} {
  func.func @kernel(%arg0: i32, %arg1: memref<11x8x48xf32, #tpu.memory_space<vmem>>, %arg2: memref<8x128xf32, #tpu.memory_space<vmem>>, %arg3: memref<48x32xbf16, #tpu.memory_space<vmem>>, %arg4: memref<1x32xf32, #tpu.memory_space<vmem>>, %arg5: memref<32x384xbf16, #tpu.memory_space<vmem>>, %arg6: memref<128x384xbf16, #tpu.memory_space<vmem>>, %arg7: memref<1x384xf32, #tpu.memory_space<vmem>>, %arg8: memref<1x128xf32, #tpu.memory_space<vmem>>, %arg9: memref<32x384xbf16, #tpu.memory_space<vmem>>, %arg10: memref<128x384xbf16, #tpu.memory_space<vmem>>, %arg11: memref<1x384xf32, #tpu.memory_space<vmem>>, %arg12: memref<1x128xf32, #tpu.memory_space<vmem>>, %arg13: memref<128x6xf32, #tpu.memory_space<vmem>>, %arg14: memref<2x128x6xf32, #tpu.memory_space<vmem>>, %arg15: memref<1x6xf32, #tpu.memory_space<vmem>>, %arg16: memref<128x6xf32, #tpu.memory_space<vmem>>, %arg17: memref<1x6xf32, #tpu.memory_space<vmem>>, %arg18: memref<8x6xf32, #tpu.memory_space<vmem>>, %arg19: memref<11x8x384xf32, #tpu.memory_space<vmem>>, %arg20: memref<5x16x384xf32, #tpu.memory_space<vmem>>) attributes {dimension_semantics = [#tpu.dimension_semantics<parallel>], iteration_bounds = array<i64: 1>, scalar_prefetch = 0 : i64, scratch_operands = 2 : i64, tpu.core_type = #tpu.core_type<tc>, window_params = [{transform_indices = @transform_0, window_bounds = array<i64: 11, 8, 48>}, {transform_indices = @transform_1, window_bounds = array<i64: 8, 128>}, {pipeline_mode = #tpu.pipeline_mode<synchronous>, transform_indices = @transform_2, window_bounds = array<i64: 48, 32>}, {pipeline_mode = #tpu.pipeline_mode<synchronous>, transform_indices = @transform_3, window_bounds = array<i64: 1, 32>}, {pipeline_mode = #tpu.pipeline_mode<synchronous>, transform_indices = @transform_4, window_bounds = array<i64: 32, 384>}, {pipeline_mode = #tpu.pipeline_mode<synchronous>, transform_indices = @transform_5, window_bounds = array<i64: 128, 384>}, {pipeline_mode = #tpu.pipeline_mode<synchronous>, transform_indices = @transform_6, window_bounds = array<i64: 1, 384>}, {pipeline_mode = #tpu.pipeline_mode<synchronous>, transform_indices = @transform_7, window_bounds = array<i64: 1, 128>}, {pipeline_mode = #tpu.pipeline_mode<synchronous>, transform_indices = @transform_8, window_bounds = array<i64: 32, 384>}, {pipeline_mode = #tpu.pipeline_mode<synchronous>, transform_indices = @transform_9, window_bounds = array<i64: 128, 384>}, {pipeline_mode = #tpu.pipeline_mode<synchronous>, transform_indices = @transform_10, window_bounds = array<i64: 1, 384>}, {pipeline_mode = #tpu.pipeline_mode<synchronous>, transform_indices = @transform_11, window_bounds = array<i64: 1, 128>}, {pipeline_mode = #tpu.pipeline_mode<synchronous>, transform_indices = @transform_12, window_bounds = array<i64: 128, 6>}, {pipeline_mode = #tpu.pipeline_mode<synchronous>, transform_indices = @transform_13, window_bounds = array<i64: 2, 128, 6>}, {pipeline_mode = #tpu.pipeline_mode<synchronous>, transform_indices = @transform_14, window_bounds = array<i64: 1, 6>}, {pipeline_mode = #tpu.pipeline_mode<synchronous>, transform_indices = @transform_15, window_bounds = array<i64: 128, 6>}, {pipeline_mode = #tpu.pipeline_mode<synchronous>, transform_indices = @transform_16, window_bounds = array<i64: 1, 6>}, {transform_indices = @transform_17, window_bounds = array<i64: 8, 6>}]} {
    %c0 = arith.constant 0 : index
    %c0_0 = arith.constant 0 : index
    %c0_1 = arith.constant 0 : index
    %0 = vector.load %arg1[%c0, %c0_0, %c0_1] : memref<11x8x48xf32, #tpu.memory_space<vmem>>, vector<11x8x48xf32>
    %1 = arith.truncf %0 : vector<11x8x48xf32> to vector<11x8x48xbf16>
    %2 = vector.shape_cast %1 : vector<11x8x48xbf16> to vector<88x48xbf16>
    %c0_2 = arith.constant 0 : index
    %c0_3 = arith.constant 0 : index
    %3 = vector.load %arg3[%c0_2, %c0_3] : memref<48x32xbf16, #tpu.memory_space<vmem>>, vector<48x32xbf16>
    %cst = arith.constant dense<0.000000e+00> : vector<88x32xf32>
    %4 = tpu.matmul %2, %3, %cst {dimension_numbers = #tpu.dot_dimension_numbers<[1], [0], [0], [1], [0, 0, 1, 1], [], []>} : vector<88x48xbf16>, vector<48x32xbf16>, vector<88x32xf32> -> vector<88x32xf32>
    %c0_4 = arith.constant 0 : index
    %c0_5 = arith.constant 0 : index
    %5 = vector.load %arg4[%c0_4, %c0_5] : memref<1x32xf32, #tpu.memory_space<vmem>>, vector<1x32xf32>
    %6 = vector.broadcast %5 : vector<1x32xf32> to vector<88x32xf32>
    %7 = arith.addf %4, %6 : vector<88x32xf32>
    %cst_6 = arith.constant 0.000000e+00 : f32
    %8 = vector.broadcast %cst_6 : f32 to vector<88x32xf32>
    %9 = arith.maximumf %7, %8 : vector<88x32xf32>
    %10 = arith.truncf %9 : vector<88x32xf32> to vector<88x32xbf16>
    %c0_7 = arith.constant 0 : index
    %c0_8 = arith.constant 0 : index
    %11 = vector.load %arg5[%c0_7, %c0_8] : memref<32x384xbf16, #tpu.memory_space<vmem>>, vector<32x384xbf16>
    %cst_9 = arith.constant dense<0.000000e+00> : vector<88x384xf32>
    %12 = tpu.matmul %10, %11, %cst_9 {dimension_numbers = #tpu.dot_dimension_numbers<[1], [0], [0], [1], [0, 0, 1, 1], [], []>} : vector<88x32xbf16>, vector<32x384xbf16>, vector<88x384xf32> -> vector<88x384xf32>
    %c0_10 = arith.constant 0 : index
    %c0_11 = arith.constant 0 : index
    %13 = vector.load %arg7[%c0_10, %c0_11] : memref<1x384xf32, #tpu.memory_space<vmem>>, vector<1x384xf32>
    %14 = vector.broadcast %13 : vector<1x384xf32> to vector<88x384xf32>
    %15 = arith.addf %12, %14 : vector<88x384xf32>
    %16 = vector.shape_cast %15 : vector<88x384xf32> to vector<11x8x384xf32>
    %c0_12 = arith.constant 0 : index
    %c0_13 = arith.constant 0 : index
    %c0_14 = arith.constant 0 : index
    %17 = vector.load %arg19[%c0_12, %c0_13, %c0_14] : memref<11x8x384xf32, #tpu.memory_space<vmem>>, vector<11x8x384xf32>
    tpu.vector_store %arg19[%c0_12, %c0_13, %c0_14], %16 {strides = array<i32>} : memref<11x8x384xf32, #tpu.memory_space<vmem>>, vector<11x8x384xf32>,
    %c0_15 = arith.constant 0 : index
    %c0_16 = arith.constant 0 : index
    %18 = vector.load %arg9[%c0_15, %c0_16] : memref<32x384xbf16, #tpu.memory_space<vmem>>, vector<32x384xbf16>
    %cst_17 = arith.constant dense<0.000000e+00> : vector<88x384xf32>
    %19 = tpu.matmul %10, %18, %cst_17 {dimension_numbers = #tpu.dot_dimension_numbers<[1], [0], [0], [1], [0, 0, 1, 1], [], []>} : vector<88x32xbf16>, vector<32x384xbf16>, vector<88x384xf32> -> vector<88x384xf32>
    %c0_18 = arith.constant 0 : index
    %c0_19 = arith.constant 0 : index
    %20 = vector.load %arg11[%c0_18, %c0_19] : memref<1x384xf32, #tpu.memory_space<vmem>>, vector<1x384xf32>
    %21 = vector.broadcast %20 : vector<1x384xf32> to vector<88x384xf32>
    %22 = arith.addf %19, %21 : vector<88x384xf32>
    %23 = vector.extract_strided_slice %22 {offsets = [8, 0], sizes = [80, 384], strides = [1, 1]} : vector<88x384xf32> to vector<80x384xf32>
    %24 = vector.shape_cast %23 : vector<80x384xf32> to vector<5x16x384xf32>
    %c0_20 = arith.constant 0 : index
    %c0_21 = arith.constant 0 : index
    %c0_22 = arith.constant 0 : index
    %25 = vector.load %arg20[%c0_20, %c0_21, %c0_22] : memref<5x16x384xf32, #tpu.memory_space<vmem>>, vector<5x16x384xf32>
    tpu.vector_store %arg20[%c0_20, %c0_21, %c0_22], %24 {strides = array<i32>} : memref<5x16x384xf32, #tpu.memory_space<vmem>>, vector<5x16x384xf32>,
    %c0_23 = arith.constant 0 : index
    %c0_24 = arith.constant 0 : index
    %26 = vector.load %arg6[%c0_23, %c0_24] : memref<128x384xbf16, #tpu.memory_space<vmem>>, vector<128x384xbf16>
    %c0_25 = arith.constant 0 : index
    %c0_26 = arith.constant 0 : index
    %27 = vector.load %arg8[%c0_25, %c0_26] : memref<1x128xf32, #tpu.memory_space<vmem>>, vector<1x128xf32>
    %cst_27 = arith.constant 0.000000e+00 : f32
    %28 = vector.broadcast %cst_27 : f32 to vector<8x128xf32>
    %c0_i32 = arith.constant 0 : i32
    %29 = arith.truncf %28 : vector<8x128xf32> to vector<8x128xbf16>
    %cst_28 = arith.constant dense<0.000000e+00> : vector<8x384xf32>
    %30 = tpu.matmul %29, %26, %cst_28 {dimension_numbers = #tpu.dot_dimension_numbers<[1], [0], [0], [1], [0, 0, 1, 1], [], []>} : vector<8x128xbf16>, vector<128x384xbf16>, vector<8x384xf32> -> vector<8x384xf32>
    %31 = arith.index_cast %c0_i32 : i32 to index
    %c0_29 = arith.constant 0 : index
    %c0_30 = arith.constant 0 : index
    %32 = vector.load %arg19[%31, %c0_29, %c0_30] : memref<11x8x384xf32, #tpu.memory_space<vmem>>, vector<1x8x384xf32>
    %33 = vector.shape_cast %32 : vector<1x8x384xf32> to vector<8x384xf32>
    %34 = vector.extract_strided_slice %33 {offsets = [0, 0], sizes = [8, 128], strides = [1, 1]} : vector<8x384xf32> to vector<8x128xf32>
    %35 = vector.extract_strided_slice %30 {offsets = [0, 0], sizes = [8, 128], strides = [1, 1]} : vector<8x384xf32> to vector<8x128xf32>
    %36 = arith.addf %34, %35 : vector<8x128xf32>
    %37 = arith.negf %36 : vector<8x128xf32>
    %38 = math.exp %37 : vector<8x128xf32>
    %cst_31 = arith.constant 1.000000e+00 : f32
    %39 = vector.broadcast %cst_31 : f32 to vector<8x128xf32>
    %40 = arith.addf %39, %38 : vector<8x128xf32>
    %41 = arith.divf %39, %40 : vector<8x128xf32>
    %42 = vector.extract_strided_slice %33 {offsets = [0, 128], sizes = [8, 128], strides = [1, 1]} : vector<8x384xf32> to vector<8x128xf32>
    %43 = vector.extract_strided_slice %30 {offsets = [0, 128], sizes = [8, 128], strides = [1, 1]} : vector<8x384xf32> to vector<8x128xf32>
    %44 = arith.addf %42, %43 : vector<8x128xf32>
    %45 = arith.negf %44 : vector<8x128xf32>
    %46 = math.exp %45 : vector<8x128xf32>
    %cst_32 = arith.constant 1.000000e+00 : f32
    %47 = vector.broadcast %cst_32 : f32 to vector<8x128xf32>
    %48 = arith.addf %47, %46 : vector<8x128xf32>
    %49 = arith.divf %47, %48 : vector<8x128xf32>
    %50 = vector.extract_strided_slice %33 {offsets = [0, 256], sizes = [8, 128], strides = [1, 1]} : vector<8x384xf32> to vector<8x128xf32>
    %51 = vector.extract_strided_slice %30 {offsets = [0, 256], sizes = [8, 128], strides = [1, 1]} : vector<8x384xf32> to vector<8x128xf32>
    %52 = vector.broadcast %27 : vector<1x128xf32> to vector<8x128xf32>
    %53 = arith.addf %51, %52 : vector<8x128xf32>
    %54 = arith.mulf %41, %53 : vector<8x128xf32>
    %55 = arith.addf %50, %54 : vector<8x128xf32>
    %56 = math.tanh %55 : vector<8x128xf32>
    %cst_33 = arith.constant 1.000000e+00 : f32
    %57 = vector.broadcast %cst_33 : f32 to vector<8x128xf32>
    %58 = arith.subf %57, %49 : vector<8x128xf32>
    %59 = arith.mulf %58, %56 : vector<8x128xf32>
    %60 = arith.mulf %49, %28 : vector<8x128xf32>
    %61 = arith.addf %59, %60 : vector<8x128xf32>
    %c1_i32 = arith.constant 1 : i32
    %62 = arith.truncf %61 : vector<8x128xf32> to vector<8x128xbf16>
    %cst_34 = arith.constant dense<0.000000e+00> : vector<8x384xf32>
    %63 = tpu.matmul %62, %26, %cst_34 {dimension_numbers = #tpu.dot_dimension_numbers<[1], [0], [0], [1], [0, 0, 1, 1], [], []>} : vector<8x128xbf16>, vector<128x384xbf16>, vector<8x384xf32> -> vector<8x384xf32>
    %64 = arith.index_cast %c1_i32 : i32 to index
    %c0_35 = arith.constant 0 : index
    %c0_36 = arith.constant 0 : index
    %65 = vector.load %arg19[%64, %c0_35, %c0_36] : memref<11x8x384xf32, #tpu.memory_space<vmem>>, vector<1x8x384xf32>
    %66 = vector.shape_cast %65 : vector<1x8x384xf32> to vector<8x384xf32>
    %67 = vector.extract_strided_slice %66 {offsets = [0, 0], sizes = [8, 128], strides = [1, 1]} : vector<8x384xf32> to vector<8x128xf32>
    %68 = vector.extract_strided_slice %63 {offsets = [0, 0], sizes = [8, 128], strides = [1, 1]} : vector<8x384xf32> to vector<8x128xf32>
    %69 = arith.addf %67, %68 : vector<8x128xf32>
    %70 = arith.negf %69 : vector<8x128xf32>
    %71 = math.exp %70 : vector<8x128xf32>
    %cst_37 = arith.constant 1.000000e+00 : f32
    %72 = vector.broadcast %cst_37 : f32 to vector<8x128xf32>
    %73 = arith.addf %72, %71 : vector<8x128xf32>
    %74 = arith.divf %72, %73 : vector<8x128xf32>
    %75 = vector.extract_strided_slice %66 {offsets = [0, 128], sizes = [8, 128], strides = [1, 1]} : vector<8x384xf32> to vector<8x128xf32>
    %76 = vector.extract_strided_slice %63 {offsets = [0, 128], sizes = [8, 128], strides = [1, 1]} : vector<8x384xf32> to vector<8x128xf32>
    %77 = arith.addf %75, %76 : vector<8x128xf32>
    %78 = arith.negf %77 : vector<8x128xf32>
    %79 = math.exp %78 : vector<8x128xf32>
    %cst_38 = arith.constant 1.000000e+00 : f32
    %80 = vector.broadcast %cst_38 : f32 to vector<8x128xf32>
    %81 = arith.addf %80, %79 : vector<8x128xf32>
    %82 = arith.divf %80, %81 : vector<8x128xf32>
    %83 = vector.extract_strided_slice %66 {offsets = [0, 256], sizes = [8, 128], strides = [1, 1]} : vector<8x384xf32> to vector<8x128xf32>
    %84 = vector.extract_strided_slice %63 {offsets = [0, 256], sizes = [8, 128], strides = [1, 1]} : vector<8x384xf32> to vector<8x128xf32>
    %85 = vector.broadcast %27 : vector<1x128xf32> to vector<8x128xf32>
    %86 = arith.addf %84, %85 : vector<8x128xf32>
    %87 = arith.mulf %74, %86 : vector<8x128xf32>
    %88 = arith.addf %83, %87 : vector<8x128xf32>
    %89 = math.tanh %88 : vector<8x128xf32>
    %cst_39 = arith.constant 1.000000e+00 : f32
    %90 = vector.broadcast %cst_39 : f32 to vector<8x128xf32>
    %91 = arith.subf %90, %82 : vector<8x128xf32>
    %92 = arith.mulf %91, %89 : vector<8x128xf32>
    %93 = arith.mulf %82, %61 : vector<8x128xf32>
    %94 = arith.addf %92, %93 : vector<8x128xf32>
    %c2_i32 = arith.constant 2 : i32
    %95 = arith.truncf %94 : vector<8x128xf32> to vector<8x128xbf16>
    %cst_40 = arith.constant dense<0.000000e+00> : vector<8x384xf32>
    %96 = tpu.matmul %95, %26, %cst_40 {dimension_numbers = #tpu.dot_dimension_numbers<[1], [0], [0], [1], [0, 0, 1, 1], [], []>} : vector<8x128xbf16>, vector<128x384xbf16>, vector<8x384xf32> -> vector<8x384xf32>
    %97 = arith.index_cast %c2_i32 : i32 to index
    %c0_41 = arith.constant 0 : index
    %c0_42 = arith.constant 0 : index
    %98 = vector.load %arg19[%97, %c0_41, %c0_42] : memref<11x8x384xf32, #tpu.memory_space<vmem>>, vector<1x8x384xf32>
    %99 = vector.shape_cast %98 : vector<1x8x384xf32> to vector<8x384xf32>
    %100 = vector.extract_strided_slice %99 {offsets = [0, 0], sizes = [8, 128], strides = [1, 1]} : vector<8x384xf32> to vector<8x128xf32>
    %101 = vector.extract_strided_slice %96 {offsets = [0, 0], sizes = [8, 128], strides = [1, 1]} : vector<8x384xf32> to vector<8x128xf32>
    %102 = arith.addf %100, %101 : vector<8x128xf32>
    %103 = arith.negf %102 : vector<8x128xf32>
    %104 = math.exp %103 : vector<8x128xf32>
    %cst_43 = arith.constant 1.000000e+00 : f32
    %105 = vector.broadcast %cst_43 : f32 to vector<8x128xf32>
    %106 = arith.addf %105, %104 : vector<8x128xf32>
    %107 = arith.divf %105, %106 : vector<8x128xf32>
    %108 = vector.extract_strided_slice %99 {offsets = [0, 128], sizes = [8, 128], strides = [1, 1]} : vector<8x384xf32> to vector<8x128xf32>
    %109 = vector.extract_strided_slice %96 {offsets = [0, 128], sizes = [8, 128], strides = [1, 1]} : vector<8x384xf32> to vector<8x128xf32>
    %110 = arith.addf %108, %109 : vector<8x128xf32>
    %111 = arith.negf %110 : vector<8x128xf32>
    %112 = math.exp %111 : vector<8x128xf32>
    %cst_44 = arith.constant 1.000000e+00 : f32
    %113 = vector.broadcast %cst_44 : f32 to vector<8x128xf32>
    %114 = arith.addf %113, %112 : vector<8x128xf32>
    %115 = arith.divf %113, %114 : vector<8x128xf32>
    %116 = vector.extract_strided_slice %99 {offsets = [0, 256], sizes = [8, 128], strides = [1, 1]} : vector<8x384xf32> to vector<8x128xf32>
    %117 = vector.extract_strided_slice %96 {offsets = [0, 256], sizes = [8, 128], strides = [1, 1]} : vector<8x384xf32> to vector<8x128xf32>
    %118 = vector.broadcast %27 : vector<1x128xf32> to vector<8x128xf32>
    %119 = arith.addf %117, %118 : vector<8x128xf32>
    %120 = arith.mulf %107, %119 : vector<8x128xf32>
    %121 = arith.addf %116, %120 : vector<8x128xf32>
    %122 = math.tanh %121 : vector<8x128xf32>
    %cst_45 = arith.constant 1.000000e+00 : f32
    %123 = vector.broadcast %cst_45 : f32 to vector<8x128xf32>
    %124 = arith.subf %123, %115 : vector<8x128xf32>
    %125 = arith.mulf %124, %122 : vector<8x128xf32>
    %126 = arith.mulf %115, %94 : vector<8x128xf32>
    %127 = arith.addf %125, %126 : vector<8x128xf32>
    %c3_i32 = arith.constant 3 : i32
    %128 = arith.truncf %127 : vector<8x128xf32> to vector<8x128xbf16>
    %cst_46 = arith.constant dense<0.000000e+00> : vector<8x384xf32>
    %129 = tpu.matmul %128, %26, %cst_46 {dimension_numbers = #tpu.dot_dimension_numbers<[1], [0], [0], [1], [0, 0, 1, 1], [], []>} : vector<8x128xbf16>, vector<128x384xbf16>, vector<8x384xf32> -> vector<8x384xf32>
    %130 = arith.index_cast %c3_i32 : i32 to index
    %c0_47 = arith.constant 0 : index
    %c0_48 = arith.constant 0 : index
    %131 = vector.load %arg19[%130, %c0_47, %c0_48] : memref<11x8x384xf32, #tpu.memory_space<vmem>>, vector<1x8x384xf32>
    %132 = vector.shape_cast %131 : vector<1x8x384xf32> to vector<8x384xf32>
    %133 = vector.extract_strided_slice %132 {offsets = [0, 0], sizes = [8, 128], strides = [1, 1]} : vector<8x384xf32> to vector<8x128xf32>
    %134 = vector.extract_strided_slice %129 {offsets = [0, 0], sizes = [8, 128], strides = [1, 1]} : vector<8x384xf32> to vector<8x128xf32>
    %135 = arith.addf %133, %134 : vector<8x128xf32>
    %136 = arith.negf %135 : vector<8x128xf32>
    %137 = math.exp %136 : vector<8x128xf32>
    %cst_49 = arith.constant 1.000000e+00 : f32
    %138 = vector.broadcast %cst_49 : f32 to vector<8x128xf32>
    %139 = arith.addf %138, %137 : vector<8x128xf32>
    %140 = arith.divf %138, %139 : vector<8x128xf32>
    %141 = vector.extract_strided_slice %132 {offsets = [0, 128], sizes = [8, 128], strides = [1, 1]} : vector<8x384xf32> to vector<8x128xf32>
    %142 = vector.extract_strided_slice %129 {offsets = [0, 128], sizes = [8, 128], strides = [1, 1]} : vector<8x384xf32> to vector<8x128xf32>
    %143 = arith.addf %141, %142 : vector<8x128xf32>
    %144 = arith.negf %143 : vector<8x128xf32>
    %145 = math.exp %144 : vector<8x128xf32>
    %cst_50 = arith.constant 1.000000e+00 : f32
    %146 = vector.broadcast %cst_50 : f32 to vector<8x128xf32>
    %147 = arith.addf %146, %145 : vector<8x128xf32>
    %148 = arith.divf %146, %147 : vector<8x128xf32>
    %149 = vector.extract_strided_slice %132 {offsets = [0, 256], sizes = [8, 128], strides = [1, 1]} : vector<8x384xf32> to vector<8x128xf32>
    %150 = vector.extract_strided_slice %129 {offsets = [0, 256], sizes = [8, 128], strides = [1, 1]} : vector<8x384xf32> to vector<8x128xf32>
    %151 = vector.broadcast %27 : vector<1x128xf32> to vector<8x128xf32>
    %152 = arith.addf %150, %151 : vector<8x128xf32>
    %153 = arith.mulf %140, %152 : vector<8x128xf32>
    %154 = arith.addf %149, %153 : vector<8x128xf32>
    %155 = math.tanh %154 : vector<8x128xf32>
    %cst_51 = arith.constant 1.000000e+00 : f32
    %156 = vector.broadcast %cst_51 : f32 to vector<8x128xf32>
    %157 = arith.subf %156, %148 : vector<8x128xf32>
    %158 = arith.mulf %157, %155 : vector<8x128xf32>
    %159 = arith.mulf %148, %127 : vector<8x128xf32>
    %160 = arith.addf %158, %159 : vector<8x128xf32>
    %c4_i32 = arith.constant 4 : i32
    %161 = arith.truncf %160 : vector<8x128xf32> to vector<8x128xbf16>
    %cst_52 = arith.constant dense<0.000000e+00> : vector<8x384xf32>
    %162 = tpu.matmul %161, %26, %cst_52 {dimension_numbers = #tpu.dot_dimension_numbers<[1], [0], [0], [1], [0, 0, 1, 1], [], []>} : vector<8x128xbf16>, vector<128x384xbf16>, vector<8x384xf32> -> vector<8x384xf32>
    %163 = arith.index_cast %c4_i32 : i32 to index
    %c0_53 = arith.constant 0 : index
    %c0_54 = arith.constant 0 : index
    %164 = vector.load %arg19[%163, %c0_53, %c0_54] : memref<11x8x384xf32, #tpu.memory_space<vmem>>, vector<1x8x384xf32>
    %165 = vector.shape_cast %164 : vector<1x8x384xf32> to vector<8x384xf32>
    %166 = vector.extract_strided_slice %165 {offsets = [0, 0], sizes = [8, 128], strides = [1, 1]} : vector<8x384xf32> to vector<8x128xf32>
    %167 = vector.extract_strided_slice %162 {offsets = [0, 0], sizes = [8, 128], strides = [1, 1]} : vector<8x384xf32> to vector<8x128xf32>
    %168 = arith.addf %166, %167 : vector<8x128xf32>
    %169 = arith.negf %168 : vector<8x128xf32>
    %170 = math.exp %169 : vector<8x128xf32>
    %cst_55 = arith.constant 1.000000e+00 : f32
    %171 = vector.broadcast %cst_55 : f32 to vector<8x128xf32>
    %172 = arith.addf %171, %170 : vector<8x128xf32>
    %173 = arith.divf %171, %172 : vector<8x128xf32>
    %174 = vector.extract_strided_slice %165 {offsets = [0, 128], sizes = [8, 128], strides = [1, 1]} : vector<8x384xf32> to vector<8x128xf32>
    %175 = vector.extract_strided_slice %162 {offsets = [0, 128], sizes = [8, 128], strides = [1, 1]} : vector<8x384xf32> to vector<8x128xf32>
    %176 = arith.addf %174, %175 : vector<8x128xf32>
    %177 = arith.negf %176 : vector<8x128xf32>
    %178 = math.exp %177 : vector<8x128xf32>
    %cst_56 = arith.constant 1.000000e+00 : f32
    %179 = vector.broadcast %cst_56 : f32 to vector<8x128xf32>
    %180 = arith.addf %179, %178 : vector<8x128xf32>
    %181 = arith.divf %179, %180 : vector<8x128xf32>
    %182 = vector.extract_strided_slice %165 {offsets = [0, 256], sizes = [8, 128], strides = [1, 1]} : vector<8x384xf32> to vector<8x128xf32>
    %183 = vector.extract_strided_slice %162 {offsets = [0, 256], sizes = [8, 128], strides = [1, 1]} : vector<8x384xf32> to vector<8x128xf32>
    %184 = vector.broadcast %27 : vector<1x128xf32> to vector<8x128xf32>
    %185 = arith.addf %183, %184 : vector<8x128xf32>
    %186 = arith.mulf %173, %185 : vector<8x128xf32>
    %187 = arith.addf %182, %186 : vector<8x128xf32>
    %188 = math.tanh %187 : vector<8x128xf32>
    %cst_57 = arith.constant 1.000000e+00 : f32
    %189 = vector.broadcast %cst_57 : f32 to vector<8x128xf32>
    %190 = arith.subf %189, %181 : vector<8x128xf32>
    %191 = arith.mulf %190, %188 : vector<8x128xf32>
    %192 = arith.mulf %181, %160 : vector<8x128xf32>
    %193 = arith.addf %191, %192 : vector<8x128xf32>
    %c5_i32 = arith.constant 5 : i32
    %194 = arith.truncf %193 : vector<8x128xf32> to vector<8x128xbf16>
    %cst_58 = arith.constant dense<0.000000e+00> : vector<8x384xf32>
    %195 = tpu.matmul %194, %26, %cst_58 {dimension_numbers = #tpu.dot_dimension_numbers<[1], [0], [0], [1], [0, 0, 1, 1], [], []>} : vector<8x128xbf16>, vector<128x384xbf16>, vector<8x384xf32> -> vector<8x384xf32>
    %196 = arith.index_cast %c5_i32 : i32 to index
    %c0_59 = arith.constant 0 : index
    %c0_60 = arith.constant 0 : index
    %197 = vector.load %arg19[%196, %c0_59, %c0_60] : memref<11x8x384xf32, #tpu.memory_space<vmem>>, vector<1x8x384xf32>
    %198 = vector.shape_cast %197 : vector<1x8x384xf32> to vector<8x384xf32>
    %199 = vector.extract_strided_slice %198 {offsets = [0, 0], sizes = [8, 128], strides = [1, 1]} : vector<8x384xf32> to vector<8x128xf32>
    %200 = vector.extract_strided_slice %195 {offsets = [0, 0], sizes = [8, 128], strides = [1, 1]} : vector<8x384xf32> to vector<8x128xf32>
    %201 = arith.addf %199, %200 : vector<8x128xf32>
    %202 = arith.negf %201 : vector<8x128xf32>
    %203 = math.exp %202 : vector<8x128xf32>
    %cst_61 = arith.constant 1.000000e+00 : f32
    %204 = vector.broadcast %cst_61 : f32 to vector<8x128xf32>
    %205 = arith.addf %204, %203 : vector<8x128xf32>
    %206 = arith.divf %204, %205 : vector<8x128xf32>
    %207 = vector.extract_strided_slice %198 {offsets = [0, 128], sizes = [8, 128], strides = [1, 1]} : vector<8x384xf32> to vector<8x128xf32>
    %208 = vector.extract_strided_slice %195 {offsets = [0, 128], sizes = [8, 128], strides = [1, 1]} : vector<8x384xf32> to vector<8x128xf32>
    %209 = arith.addf %207, %208 : vector<8x128xf32>
    %210 = arith.negf %209 : vector<8x128xf32>
    %211 = math.exp %210 : vector<8x128xf32>
    %cst_62 = arith.constant 1.000000e+00 : f32
    %212 = vector.broadcast %cst_62 : f32 to vector<8x128xf32>
    %213 = arith.addf %212, %211 : vector<8x128xf32>
    %214 = arith.divf %212, %213 : vector<8x128xf32>
    %215 = vector.extract_strided_slice %198 {offsets = [0, 256], sizes = [8, 128], strides = [1, 1]} : vector<8x384xf32> to vector<8x128xf32>
    %216 = vector.extract_strided_slice %195 {offsets = [0, 256], sizes = [8, 128], strides = [1, 1]} : vector<8x384xf32> to vector<8x128xf32>
    %217 = vector.broadcast %27 : vector<1x128xf32> to vector<8x128xf32>
    %218 = arith.addf %216, %217 : vector<8x128xf32>
    %219 = arith.mulf %206, %218 : vector<8x128xf32>
    %220 = arith.addf %215, %219 : vector<8x128xf32>
    %221 = math.tanh %220 : vector<8x128xf32>
    %cst_63 = arith.constant 1.000000e+00 : f32
    %222 = vector.broadcast %cst_63 : f32 to vector<8x128xf32>
    %223 = arith.subf %222, %214 : vector<8x128xf32>
    %224 = arith.mulf %223, %221 : vector<8x128xf32>
    %225 = arith.mulf %214, %193 : vector<8x128xf32>
    %226 = arith.addf %224, %225 : vector<8x128xf32>
    %c6_i32 = arith.constant 6 : i32
    %227 = arith.truncf %226 : vector<8x128xf32> to vector<8x128xbf16>
    %cst_64 = arith.constant dense<0.000000e+00> : vector<8x384xf32>
    %228 = tpu.matmul %227, %26, %cst_64 {dimension_numbers = #tpu.dot_dimension_numbers<[1], [0], [0], [1], [0, 0, 1, 1], [], []>} : vector<8x128xbf16>, vector<128x384xbf16>, vector<8x384xf32> -> vector<8x384xf32>
    %229 = arith.index_cast %c6_i32 : i32 to index
    %c0_65 = arith.constant 0 : index
    %c0_66 = arith.constant 0 : index
    %230 = vector.load %arg19[%229, %c0_65, %c0_66] : memref<11x8x384xf32, #tpu.memory_space<vmem>>, vector<1x8x384xf32>
    %231 = vector.shape_cast %230 : vector<1x8x384xf32> to vector<8x384xf32>
    %232 = vector.extract_strided_slice %231 {offsets = [0, 0], sizes = [8, 128], strides = [1, 1]} : vector<8x384xf32> to vector<8x128xf32>
    %233 = vector.extract_strided_slice %228 {offsets = [0, 0], sizes = [8, 128], strides = [1, 1]} : vector<8x384xf32> to vector<8x128xf32>
    %234 = arith.addf %232, %233 : vector<8x128xf32>
    %235 = arith.negf %234 : vector<8x128xf32>
    %236 = math.exp %235 : vector<8x128xf32>
    %cst_67 = arith.constant 1.000000e+00 : f32
    %237 = vector.broadcast %cst_67 : f32 to vector<8x128xf32>
    %238 = arith.addf %237, %236 : vector<8x128xf32>
    %239 = arith.divf %237, %238 : vector<8x128xf32>
    %240 = vector.extract_strided_slice %231 {offsets = [0, 128], sizes = [8, 128], strides = [1, 1]} : vector<8x384xf32> to vector<8x128xf32>
    %241 = vector.extract_strided_slice %228 {offsets = [0, 128], sizes = [8, 128], strides = [1, 1]} : vector<8x384xf32> to vector<8x128xf32>
    %242 = arith.addf %240, %241 : vector<8x128xf32>
    %243 = arith.negf %242 : vector<8x128xf32>
    %244 = math.exp %243 : vector<8x128xf32>
    %cst_68 = arith.constant 1.000000e+00 : f32
    %245 = vector.broadcast %cst_68 : f32 to vector<8x128xf32>
    %246 = arith.addf %245, %244 : vector<8x128xf32>
    %247 = arith.divf %245, %246 : vector<8x128xf32>
    %248 = vector.extract_strided_slice %231 {offsets = [0, 256], sizes = [8, 128], strides = [1, 1]} : vector<8x384xf32> to vector<8x128xf32>
    %249 = vector.extract_strided_slice %228 {offsets = [0, 256], sizes = [8, 128], strides = [1, 1]} : vector<8x384xf32> to vector<8x128xf32>
    %250 = vector.broadcast %27 : vector<1x128xf32> to vector<8x128xf32>
    %251 = arith.addf %249, %250 : vector<8x128xf32>
    %252 = arith.mulf %239, %251 : vector<8x128xf32>
    %253 = arith.addf %248, %252 : vector<8x128xf32>
    %254 = math.tanh %253 : vector<8x128xf32>
    %cst_69 = arith.constant 1.000000e+00 : f32
    %255 = vector.broadcast %cst_69 : f32 to vector<8x128xf32>
    %256 = arith.subf %255, %247 : vector<8x128xf32>
    %257 = arith.mulf %256, %254 : vector<8x128xf32>
    %258 = arith.mulf %247, %226 : vector<8x128xf32>
    %259 = arith.addf %257, %258 : vector<8x128xf32>
    %c7_i32 = arith.constant 7 : i32
    %260 = arith.truncf %259 : vector<8x128xf32> to vector<8x128xbf16>
    %cst_70 = arith.constant dense<0.000000e+00> : vector<8x384xf32>
    %261 = tpu.matmul %260, %26, %cst_70 {dimension_numbers = #tpu.dot_dimension_numbers<[1], [0], [0], [1], [0, 0, 1, 1], [], []>} : vector<8x128xbf16>, vector<128x384xbf16>, vector<8x384xf32> -> vector<8x384xf32>
    %262 = arith.index_cast %c7_i32 : i32 to index
    %c0_71 = arith.constant 0 : index
    %c0_72 = arith.constant 0 : index
    %263 = vector.load %arg19[%262, %c0_71, %c0_72] : memref<11x8x384xf32, #tpu.memory_space<vmem>>, vector<1x8x384xf32>
    %264 = vector.shape_cast %263 : vector<1x8x384xf32> to vector<8x384xf32>
    %265 = vector.extract_strided_slice %264 {offsets = [0, 0], sizes = [8, 128], strides = [1, 1]} : vector<8x384xf32> to vector<8x128xf32>
    %266 = vector.extract_strided_slice %261 {offsets = [0, 0], sizes = [8, 128], strides = [1, 1]} : vector<8x384xf32> to vector<8x128xf32>
    %267 = arith.addf %265, %266 : vector<8x128xf32>
    %268 = arith.negf %267 : vector<8x128xf32>
    %269 = math.exp %268 : vector<8x128xf32>
    %cst_73 = arith.constant 1.000000e+00 : f32
    %270 = vector.broadcast %cst_73 : f32 to vector<8x128xf32>
    %271 = arith.addf %270, %269 : vector<8x128xf32>
    %272 = arith.divf %270, %271 : vector<8x128xf32>
    %273 = vector.extract_strided_slice %264 {offsets = [0, 128], sizes = [8, 128], strides = [1, 1]} : vector<8x384xf32> to vector<8x128xf32>
    %274 = vector.extract_strided_slice %261 {offsets = [0, 128], sizes = [8, 128], strides = [1, 1]} : vector<8x384xf32> to vector<8x128xf32>
    %275 = arith.addf %273, %274 : vector<8x128xf32>
    %276 = arith.negf %275 : vector<8x128xf32>
    %277 = math.exp %276 : vector<8x128xf32>
    %cst_74 = arith.constant 1.000000e+00 : f32
    %278 = vector.broadcast %cst_74 : f32 to vector<8x128xf32>
    %279 = arith.addf %278, %277 : vector<8x128xf32>
    %280 = arith.divf %278, %279 : vector<8x128xf32>
    %281 = vector.extract_strided_slice %264 {offsets = [0, 256], sizes = [8, 128], strides = [1, 1]} : vector<8x384xf32> to vector<8x128xf32>
    %282 = vector.extract_strided_slice %261 {offsets = [0, 256], sizes = [8, 128], strides = [1, 1]} : vector<8x384xf32> to vector<8x128xf32>
    %283 = vector.broadcast %27 : vector<1x128xf32> to vector<8x128xf32>
    %284 = arith.addf %282, %283 : vector<8x128xf32>
    %285 = arith.mulf %272, %284 : vector<8x128xf32>
    %286 = arith.addf %281, %285 : vector<8x128xf32>
    %287 = math.tanh %286 : vector<8x128xf32>
    %cst_75 = arith.constant 1.000000e+00 : f32
    %288 = vector.broadcast %cst_75 : f32 to vector<8x128xf32>
    %289 = arith.subf %288, %280 : vector<8x128xf32>
    %290 = arith.mulf %289, %287 : vector<8x128xf32>
    %291 = arith.mulf %280, %259 : vector<8x128xf32>
    %292 = arith.addf %290, %291 : vector<8x128xf32>
    %c8_i32 = arith.constant 8 : i32
    %293 = arith.truncf %292 : vector<8x128xf32> to vector<8x128xbf16>
    %cst_76 = arith.constant dense<0.000000e+00> : vector<8x384xf32>
    %294 = tpu.matmul %293, %26, %cst_76 {dimension_numbers = #tpu.dot_dimension_numbers<[1], [0], [0], [1], [0, 0, 1, 1], [], []>} : vector<8x128xbf16>, vector<128x384xbf16>, vector<8x384xf32> -> vector<8x384xf32>
    %295 = arith.index_cast %c8_i32 : i32 to index
    %c0_77 = arith.constant 0 : index
    %c0_78 = arith.constant 0 : index
    %296 = vector.load %arg19[%295, %c0_77, %c0_78] : memref<11x8x384xf32, #tpu.memory_space<vmem>>, vector<1x8x384xf32>
    %297 = vector.shape_cast %296 : vector<1x8x384xf32> to vector<8x384xf32>
    %298 = vector.extract_strided_slice %297 {offsets = [0, 0], sizes = [8, 128], strides = [1, 1]} : vector<8x384xf32> to vector<8x128xf32>
    %299 = vector.extract_strided_slice %294 {offsets = [0, 0], sizes = [8, 128], strides = [1, 1]} : vector<8x384xf32> to vector<8x128xf32>
    %300 = arith.addf %298, %299 : vector<8x128xf32>
    %301 = arith.negf %300 : vector<8x128xf32>
    %302 = math.exp %301 : vector<8x128xf32>
    %cst_79 = arith.constant 1.000000e+00 : f32
    %303 = vector.broadcast %cst_79 : f32 to vector<8x128xf32>
    %304 = arith.addf %303, %302 : vector<8x128xf32>
    %305 = arith.divf %303, %304 : vector<8x128xf32>
    %306 = vector.extract_strided_slice %297 {offsets = [0, 128], sizes = [8, 128], strides = [1, 1]} : vector<8x384xf32> to vector<8x128xf32>
    %307 = vector.extract_strided_slice %294 {offsets = [0, 128], sizes = [8, 128], strides = [1, 1]} : vector<8x384xf32> to vector<8x128xf32>
    %308 = arith.addf %306, %307 : vector<8x128xf32>
    %309 = arith.negf %308 : vector<8x128xf32>
    %310 = math.exp %309 : vector<8x128xf32>
    %cst_80 = arith.constant 1.000000e+00 : f32
    %311 = vector.broadcast %cst_80 : f32 to vector<8x128xf32>
    %312 = arith.addf %311, %310 : vector<8x128xf32>
    %313 = arith.divf %311, %312 : vector<8x128xf32>
    %314 = vector.extract_strided_slice %297 {offsets = [0, 256], sizes = [8, 128], strides = [1, 1]} : vector<8x384xf32> to vector<8x128xf32>
    %315 = vector.extract_strided_slice %294 {offsets = [0, 256], sizes = [8, 128], strides = [1, 1]} : vector<8x384xf32> to vector<8x128xf32>
    %316 = vector.broadcast %27 : vector<1x128xf32> to vector<8x128xf32>
    %317 = arith.addf %315, %316 : vector<8x128xf32>
    %318 = arith.mulf %305, %317 : vector<8x128xf32>
    %319 = arith.addf %314, %318 : vector<8x128xf32>
    %320 = math.tanh %319 : vector<8x128xf32>
    %cst_81 = arith.constant 1.000000e+00 : f32
    %321 = vector.broadcast %cst_81 : f32 to vector<8x128xf32>
    %322 = arith.subf %321, %313 : vector<8x128xf32>
    %323 = arith.mulf %322, %320 : vector<8x128xf32>
    %324 = arith.mulf %313, %292 : vector<8x128xf32>
    %325 = arith.addf %323, %324 : vector<8x128xf32>
    %c9_i32 = arith.constant 9 : i32
    %326 = arith.truncf %325 : vector<8x128xf32> to vector<8x128xbf16>
    %cst_82 = arith.constant dense<0.000000e+00> : vector<8x384xf32>
    %327 = tpu.matmul %326, %26, %cst_82 {dimension_numbers = #tpu.dot_dimension_numbers<[1], [0], [0], [1], [0, 0, 1, 1], [], []>} : vector<8x128xbf16>, vector<128x384xbf16>, vector<8x384xf32> -> vector<8x384xf32>
    %328 = arith.index_cast %c9_i32 : i32 to index
    %c0_83 = arith.constant 0 : index
    %c0_84 = arith.constant 0 : index
    %329 = vector.load %arg19[%328, %c0_83, %c0_84] : memref<11x8x384xf32, #tpu.memory_space<vmem>>, vector<1x8x384xf32>
    %330 = vector.shape_cast %329 : vector<1x8x384xf32> to vector<8x384xf32>
    %331 = vector.extract_strided_slice %330 {offsets = [0, 0], sizes = [8, 128], strides = [1, 1]} : vector<8x384xf32> to vector<8x128xf32>
    %332 = vector.extract_strided_slice %327 {offsets = [0, 0], sizes = [8, 128], strides = [1, 1]} : vector<8x384xf32> to vector<8x128xf32>
    %333 = arith.addf %331, %332 : vector<8x128xf32>
    %334 = arith.negf %333 : vector<8x128xf32>
    %335 = math.exp %334 : vector<8x128xf32>
    %cst_85 = arith.constant 1.000000e+00 : f32
    %336 = vector.broadcast %cst_85 : f32 to vector<8x128xf32>
    %337 = arith.addf %336, %335 : vector<8x128xf32>
    %338 = arith.divf %336, %337 : vector<8x128xf32>
    %339 = vector.extract_strided_slice %330 {offsets = [0, 128], sizes = [8, 128], strides = [1, 1]} : vector<8x384xf32> to vector<8x128xf32>
    %340 = vector.extract_strided_slice %327 {offsets = [0, 128], sizes = [8, 128], strides = [1, 1]} : vector<8x384xf32> to vector<8x128xf32>
    %341 = arith.addf %339, %340 : vector<8x128xf32>
    %342 = arith.negf %341 : vector<8x128xf32>
    %343 = math.exp %342 : vector<8x128xf32>
    %cst_86 = arith.constant 1.000000e+00 : f32
    %344 = vector.broadcast %cst_86 : f32 to vector<8x128xf32>
    %345 = arith.addf %344, %343 : vector<8x128xf32>
    %346 = arith.divf %344, %345 : vector<8x128xf32>
    %347 = vector.extract_strided_slice %330 {offsets = [0, 256], sizes = [8, 128], strides = [1, 1]} : vector<8x384xf32> to vector<8x128xf32>
    %348 = vector.extract_strided_slice %327 {offsets = [0, 256], sizes = [8, 128], strides = [1, 1]} : vector<8x384xf32> to vector<8x128xf32>
    %349 = vector.broadcast %27 : vector<1x128xf32> to vector<8x128xf32>
    %350 = arith.addf %348, %349 : vector<8x128xf32>
    %351 = arith.mulf %338, %350 : vector<8x128xf32>
    %352 = arith.addf %347, %351 : vector<8x128xf32>
    %353 = math.tanh %352 : vector<8x128xf32>
    %cst_87 = arith.constant 1.000000e+00 : f32
    %354 = vector.broadcast %cst_87 : f32 to vector<8x128xf32>
    %355 = arith.subf %354, %346 : vector<8x128xf32>
    %356 = arith.mulf %355, %353 : vector<8x128xf32>
    %357 = arith.mulf %346, %325 : vector<8x128xf32>
    %358 = arith.addf %356, %357 : vector<8x128xf32>
    %c10_i32 = arith.constant 10 : i32
    %359 = arith.truncf %358 : vector<8x128xf32> to vector<8x128xbf16>
    %cst_88 = arith.constant dense<0.000000e+00> : vector<8x384xf32>
    %360 = tpu.matmul %359, %26, %cst_88 {dimension_numbers = #tpu.dot_dimension_numbers<[1], [0], [0], [1], [0, 0, 1, 1], [], []>} : vector<8x128xbf16>, vector<128x384xbf16>, vector<8x384xf32> -> vector<8x384xf32>
    %361 = arith.index_cast %c10_i32 : i32 to index
    %c0_89 = arith.constant 0 : index
    %c0_90 = arith.constant 0 : index
    %362 = vector.load %arg19[%361, %c0_89, %c0_90] : memref<11x8x384xf32, #tpu.memory_space<vmem>>, vector<1x8x384xf32>
    %363 = vector.shape_cast %362 : vector<1x8x384xf32> to vector<8x384xf32>
    %364 = vector.extract_strided_slice %363 {offsets = [0, 0], sizes = [8, 128], strides = [1, 1]} : vector<8x384xf32> to vector<8x128xf32>
    %365 = vector.extract_strided_slice %360 {offsets = [0, 0], sizes = [8, 128], strides = [1, 1]} : vector<8x384xf32> to vector<8x128xf32>
    %366 = arith.addf %364, %365 : vector<8x128xf32>
    %367 = arith.negf %366 : vector<8x128xf32>
    %368 = math.exp %367 : vector<8x128xf32>
    %cst_91 = arith.constant 1.000000e+00 : f32
    %369 = vector.broadcast %cst_91 : f32 to vector<8x128xf32>
    %370 = arith.addf %369, %368 : vector<8x128xf32>
    %371 = arith.divf %369, %370 : vector<8x128xf32>
    %372 = vector.extract_strided_slice %363 {offsets = [0, 128], sizes = [8, 128], strides = [1, 1]} : vector<8x384xf32> to vector<8x128xf32>
    %373 = vector.extract_strided_slice %360 {offsets = [0, 128], sizes = [8, 128], strides = [1, 1]} : vector<8x384xf32> to vector<8x128xf32>
    %374 = arith.addf %372, %373 : vector<8x128xf32>
    %375 = arith.negf %374 : vector<8x128xf32>
    %376 = math.exp %375 : vector<8x128xf32>
    %cst_92 = arith.constant 1.000000e+00 : f32
    %377 = vector.broadcast %cst_92 : f32 to vector<8x128xf32>
    %378 = arith.addf %377, %376 : vector<8x128xf32>
    %379 = arith.divf %377, %378 : vector<8x128xf32>
    %380 = vector.extract_strided_slice %363 {offsets = [0, 256], sizes = [8, 128], strides = [1, 1]} : vector<8x384xf32> to vector<8x128xf32>
    %381 = vector.extract_strided_slice %360 {offsets = [0, 256], sizes = [8, 128], strides = [1, 1]} : vector<8x384xf32> to vector<8x128xf32>
    %382 = vector.broadcast %27 : vector<1x128xf32> to vector<8x128xf32>
    %383 = arith.addf %381, %382 : vector<8x128xf32>
    %384 = arith.mulf %371, %383 : vector<8x128xf32>
    %385 = arith.addf %380, %384 : vector<8x128xf32>
    %386 = math.tanh %385 : vector<8x128xf32>
    %cst_93 = arith.constant 1.000000e+00 : f32
    %387 = vector.broadcast %cst_93 : f32 to vector<8x128xf32>
    %388 = arith.subf %387, %379 : vector<8x128xf32>
    %389 = arith.mulf %388, %386 : vector<8x128xf32>
    %390 = arith.mulf %379, %358 : vector<8x128xf32>
    %391 = arith.addf %389, %390 : vector<8x128xf32>
    %c11_i32 = arith.constant 11 : i32
    %c0_94 = arith.constant 0 : index
    %c0_95 = arith.constant 0 : index
    %392 = vector.load %arg10[%c0_94, %c0_95] : memref<128x384xbf16, #tpu.memory_space<vmem>>, vector<128x384xbf16>
    %c0_96 = arith.constant 0 : index
    %c0_97 = arith.constant 0 : index
    %393 = vector.load %arg12[%c0_96, %c0_97] : memref<1x128xf32, #tpu.memory_space<vmem>>, vector<1x128xf32>
    %cst_98 = arith.constant 0.000000e+00 : f32
    %394 = vector.broadcast %cst_98 : f32 to vector<16x128xf32>
    %c0_i32_99 = arith.constant 0 : i32
    %395 = arith.truncf %394 : vector<16x128xf32> to vector<16x128xbf16>
    %cst_100 = arith.constant dense<0.000000e+00> : vector<16x384xf32>
    %396 = tpu.matmul %395, %392, %cst_100 {dimension_numbers = #tpu.dot_dimension_numbers<[1], [0], [0], [1], [0, 0, 1, 1], [], []>} : vector<16x128xbf16>, vector<128x384xbf16>, vector<16x384xf32> -> vector<16x384xf32>
    %397 = arith.index_cast %c0_i32_99 : i32 to index
    %c0_101 = arith.constant 0 : index
    %c0_102 = arith.constant 0 : index
    %398 = vector.load %arg20[%397, %c0_101, %c0_102] : memref<5x16x384xf32, #tpu.memory_space<vmem>>, vector<1x16x384xf32>
    %399 = vector.shape_cast %398 : vector<1x16x384xf32> to vector<16x384xf32>
    %400 = vector.extract_strided_slice %399 {offsets = [0, 0], sizes = [16, 128], strides = [1, 1]} : vector<16x384xf32> to vector<16x128xf32>
    %401 = vector.extract_strided_slice %396 {offsets = [0, 0], sizes = [16, 128], strides = [1, 1]} : vector<16x384xf32> to vector<16x128xf32>
    %402 = arith.addf %400, %401 : vector<16x128xf32>
    %403 = arith.negf %402 : vector<16x128xf32>
    %404 = math.exp %403 : vector<16x128xf32>
    %cst_103 = arith.constant 1.000000e+00 : f32
    %405 = vector.broadcast %cst_103 : f32 to vector<16x128xf32>
    %406 = arith.addf %405, %404 : vector<16x128xf32>
    %407 = arith.divf %405, %406 : vector<16x128xf32>
    %408 = vector.extract_strided_slice %399 {offsets = [0, 128], sizes = [16, 128], strides = [1, 1]} : vector<16x384xf32> to vector<16x128xf32>
    %409 = vector.extract_strided_slice %396 {offsets = [0, 128], sizes = [16, 128], strides = [1, 1]} : vector<16x384xf32> to vector<16x128xf32>
    %410 = arith.addf %408, %409 : vector<16x128xf32>
    %411 = arith.negf %410 : vector<16x128xf32>
    %412 = math.exp %411 : vector<16x128xf32>
    %cst_104 = arith.constant 1.000000e+00 : f32
    %413 = vector.broadcast %cst_104 : f32 to vector<16x128xf32>
    %414 = arith.addf %413, %412 : vector<16x128xf32>
    %415 = arith.divf %413, %414 : vector<16x128xf32>
    %416 = vector.extract_strided_slice %399 {offsets = [0, 256], sizes = [16, 128], strides = [1, 1]} : vector<16x384xf32> to vector<16x128xf32>
    %417 = vector.extract_strided_slice %396 {offsets = [0, 256], sizes = [16, 128], strides = [1, 1]} : vector<16x384xf32> to vector<16x128xf32>
    %418 = vector.broadcast %393 : vector<1x128xf32> to vector<16x128xf32>
    %419 = arith.addf %417, %418 : vector<16x128xf32>
    %420 = arith.mulf %407, %419 : vector<16x128xf32>
    %421 = arith.addf %416, %420 : vector<16x128xf32>
    %422 = math.tanh %421 : vector<16x128xf32>
    %cst_105 = arith.constant 1.000000e+00 : f32
    %423 = vector.broadcast %cst_105 : f32 to vector<16x128xf32>
    %424 = arith.subf %423, %415 : vector<16x128xf32>
    %425 = arith.mulf %424, %422 : vector<16x128xf32>
    %426 = arith.mulf %415, %394 : vector<16x128xf32>
    %427 = arith.addf %425, %426 : vector<16x128xf32>
    %c1_i32_106 = arith.constant 1 : i32
    %428 = arith.truncf %427 : vector<16x128xf32> to vector<16x128xbf16>
    %cst_107 = arith.constant dense<0.000000e+00> : vector<16x384xf32>
    %429 = tpu.matmul %428, %392, %cst_107 {dimension_numbers = #tpu.dot_dimension_numbers<[1], [0], [0], [1], [0, 0, 1, 1], [], []>} : vector<16x128xbf16>, vector<128x384xbf16>, vector<16x384xf32> -> vector<16x384xf32>
    %430 = arith.index_cast %c1_i32_106 : i32 to index
    %c0_108 = arith.constant 0 : index
    %c0_109 = arith.constant 0 : index
    %431 = vector.load %arg20[%430, %c0_108, %c0_109] : memref<5x16x384xf32, #tpu.memory_space<vmem>>, vector<1x16x384xf32>
    %432 = vector.shape_cast %431 : vector<1x16x384xf32> to vector<16x384xf32>
    %433 = vector.extract_strided_slice %432 {offsets = [0, 0], sizes = [16, 128], strides = [1, 1]} : vector<16x384xf32> to vector<16x128xf32>
    %434 = vector.extract_strided_slice %429 {offsets = [0, 0], sizes = [16, 128], strides = [1, 1]} : vector<16x384xf32> to vector<16x128xf32>
    %435 = arith.addf %433, %434 : vector<16x128xf32>
    %436 = arith.negf %435 : vector<16x128xf32>
    %437 = math.exp %436 : vector<16x128xf32>
    %cst_110 = arith.constant 1.000000e+00 : f32
    %438 = vector.broadcast %cst_110 : f32 to vector<16x128xf32>
    %439 = arith.addf %438, %437 : vector<16x128xf32>
    %440 = arith.divf %438, %439 : vector<16x128xf32>
    %441 = vector.extract_strided_slice %432 {offsets = [0, 128], sizes = [16, 128], strides = [1, 1]} : vector<16x384xf32> to vector<16x128xf32>
    %442 = vector.extract_strided_slice %429 {offsets = [0, 128], sizes = [16, 128], strides = [1, 1]} : vector<16x384xf32> to vector<16x128xf32>
    %443 = arith.addf %441, %442 : vector<16x128xf32>
    %444 = arith.negf %443 : vector<16x128xf32>
    %445 = math.exp %444 : vector<16x128xf32>
    %cst_111 = arith.constant 1.000000e+00 : f32
    %446 = vector.broadcast %cst_111 : f32 to vector<16x128xf32>
    %447 = arith.addf %446, %445 : vector<16x128xf32>
    %448 = arith.divf %446, %447 : vector<16x128xf32>
    %449 = vector.extract_strided_slice %432 {offsets = [0, 256], sizes = [16, 128], strides = [1, 1]} : vector<16x384xf32> to vector<16x128xf32>
    %450 = vector.extract_strided_slice %429 {offsets = [0, 256], sizes = [16, 128], strides = [1, 1]} : vector<16x384xf32> to vector<16x128xf32>
    %451 = vector.broadcast %393 : vector<1x128xf32> to vector<16x128xf32>
    %452 = arith.addf %450, %451 : vector<16x128xf32>
    %453 = arith.mulf %440, %452 : vector<16x128xf32>
    %454 = arith.addf %449, %453 : vector<16x128xf32>
    %455 = math.tanh %454 : vector<16x128xf32>
    %cst_112 = arith.constant 1.000000e+00 : f32
    %456 = vector.broadcast %cst_112 : f32 to vector<16x128xf32>
    %457 = arith.subf %456, %448 : vector<16x128xf32>
    %458 = arith.mulf %457, %455 : vector<16x128xf32>
    %459 = arith.mulf %448, %427 : vector<16x128xf32>
    %460 = arith.addf %458, %459 : vector<16x128xf32>
    %c2_i32_113 = arith.constant 2 : i32
    %461 = arith.truncf %460 : vector<16x128xf32> to vector<16x128xbf16>
    %cst_114 = arith.constant dense<0.000000e+00> : vector<16x384xf32>
    %462 = tpu.matmul %461, %392, %cst_114 {dimension_numbers = #tpu.dot_dimension_numbers<[1], [0], [0], [1], [0, 0, 1, 1], [], []>} : vector<16x128xbf16>, vector<128x384xbf16>, vector<16x384xf32> -> vector<16x384xf32>
    %463 = arith.index_cast %c2_i32_113 : i32 to index
    %c0_115 = arith.constant 0 : index
    %c0_116 = arith.constant 0 : index
    %464 = vector.load %arg20[%463, %c0_115, %c0_116] : memref<5x16x384xf32, #tpu.memory_space<vmem>>, vector<1x16x384xf32>
    %465 = vector.shape_cast %464 : vector<1x16x384xf32> to vector<16x384xf32>
    %466 = vector.extract_strided_slice %465 {offsets = [0, 0], sizes = [16, 128], strides = [1, 1]} : vector<16x384xf32> to vector<16x128xf32>
    %467 = vector.extract_strided_slice %462 {offsets = [0, 0], sizes = [16, 128], strides = [1, 1]} : vector<16x384xf32> to vector<16x128xf32>
    %468 = arith.addf %466, %467 : vector<16x128xf32>
    %469 = arith.negf %468 : vector<16x128xf32>
    %470 = math.exp %469 : vector<16x128xf32>
    %cst_117 = arith.constant 1.000000e+00 : f32
    %471 = vector.broadcast %cst_117 : f32 to vector<16x128xf32>
    %472 = arith.addf %471, %470 : vector<16x128xf32>
    %473 = arith.divf %471, %472 : vector<16x128xf32>
    %474 = vector.extract_strided_slice %465 {offsets = [0, 128], sizes = [16, 128], strides = [1, 1]} : vector<16x384xf32> to vector<16x128xf32>
    %475 = vector.extract_strided_slice %462 {offsets = [0, 128], sizes = [16, 128], strides = [1, 1]} : vector<16x384xf32> to vector<16x128xf32>
    %476 = arith.addf %474, %475 : vector<16x128xf32>
    %477 = arith.negf %476 : vector<16x128xf32>
    %478 = math.exp %477 : vector<16x128xf32>
    %cst_118 = arith.constant 1.000000e+00 : f32
    %479 = vector.broadcast %cst_118 : f32 to vector<16x128xf32>
    %480 = arith.addf %479, %478 : vector<16x128xf32>
    %481 = arith.divf %479, %480 : vector<16x128xf32>
    %482 = vector.extract_strided_slice %465 {offsets = [0, 256], sizes = [16, 128], strides = [1, 1]} : vector<16x384xf32> to vector<16x128xf32>
    %483 = vector.extract_strided_slice %462 {offsets = [0, 256], sizes = [16, 128], strides = [1, 1]} : vector<16x384xf32> to vector<16x128xf32>
    %484 = vector.broadcast %393 : vector<1x128xf32> to vector<16x128xf32>
    %485 = arith.addf %483, %484 : vector<16x128xf32>
    %486 = arith.mulf %473, %485 : vector<16x128xf32>
    %487 = arith.addf %482, %486 : vector<16x128xf32>
    %488 = math.tanh %487 : vector<16x128xf32>
    %cst_119 = arith.constant 1.000000e+00 : f32
    %489 = vector.broadcast %cst_119 : f32 to vector<16x128xf32>
    %490 = arith.subf %489, %481 : vector<16x128xf32>
    %491 = arith.mulf %490, %488 : vector<16x128xf32>
    %492 = arith.mulf %481, %460 : vector<16x128xf32>
    %493 = arith.addf %491, %492 : vector<16x128xf32>
    %c3_i32_120 = arith.constant 3 : i32
    %494 = arith.truncf %493 : vector<16x128xf32> to vector<16x128xbf16>
    %cst_121 = arith.constant dense<0.000000e+00> : vector<16x384xf32>
    %495 = tpu.matmul %494, %392, %cst_121 {dimension_numbers = #tpu.dot_dimension_numbers<[1], [0], [0], [1], [0, 0, 1, 1], [], []>} : vector<16x128xbf16>, vector<128x384xbf16>, vector<16x384xf32> -> vector<16x384xf32>
    %496 = arith.index_cast %c3_i32_120 : i32 to index
    %c0_122 = arith.constant 0 : index
    %c0_123 = arith.constant 0 : index
    %497 = vector.load %arg20[%496, %c0_122, %c0_123] : memref<5x16x384xf32, #tpu.memory_space<vmem>>, vector<1x16x384xf32>
    %498 = vector.shape_cast %497 : vector<1x16x384xf32> to vector<16x384xf32>
    %499 = vector.extract_strided_slice %498 {offsets = [0, 0], sizes = [16, 128], strides = [1, 1]} : vector<16x384xf32> to vector<16x128xf32>
    %500 = vector.extract_strided_slice %495 {offsets = [0, 0], sizes = [16, 128], strides = [1, 1]} : vector<16x384xf32> to vector<16x128xf32>
    %501 = arith.addf %499, %500 : vector<16x128xf32>
    %502 = arith.negf %501 : vector<16x128xf32>
    %503 = math.exp %502 : vector<16x128xf32>
    %cst_124 = arith.constant 1.000000e+00 : f32
    %504 = vector.broadcast %cst_124 : f32 to vector<16x128xf32>
    %505 = arith.addf %504, %503 : vector<16x128xf32>
    %506 = arith.divf %504, %505 : vector<16x128xf32>
    %507 = vector.extract_strided_slice %498 {offsets = [0, 128], sizes = [16, 128], strides = [1, 1]} : vector<16x384xf32> to vector<16x128xf32>
    %508 = vector.extract_strided_slice %495 {offsets = [0, 128], sizes = [16, 128], strides = [1, 1]} : vector<16x384xf32> to vector<16x128xf32>
    %509 = arith.addf %507, %508 : vector<16x128xf32>
    %510 = arith.negf %509 : vector<16x128xf32>
    %511 = math.exp %510 : vector<16x128xf32>
    %cst_125 = arith.constant 1.000000e+00 : f32
    %512 = vector.broadcast %cst_125 : f32 to vector<16x128xf32>
    %513 = arith.addf %512, %511 : vector<16x128xf32>
    %514 = arith.divf %512, %513 : vector<16x128xf32>
    %515 = vector.extract_strided_slice %498 {offsets = [0, 256], sizes = [16, 128], strides = [1, 1]} : vector<16x384xf32> to vector<16x128xf32>
    %516 = vector.extract_strided_slice %495 {offsets = [0, 256], sizes = [16, 128], strides = [1, 1]} : vector<16x384xf32> to vector<16x128xf32>
    %517 = vector.broadcast %393 : vector<1x128xf32> to vector<16x128xf32>
    %518 = arith.addf %516, %517 : vector<16x128xf32>
    %519 = arith.mulf %506, %518 : vector<16x128xf32>
    %520 = arith.addf %515, %519 : vector<16x128xf32>
    %521 = math.tanh %520 : vector<16x128xf32>
    %cst_126 = arith.constant 1.000000e+00 : f32
    %522 = vector.broadcast %cst_126 : f32 to vector<16x128xf32>
    %523 = arith.subf %522, %514 : vector<16x128xf32>
    %524 = arith.mulf %523, %521 : vector<16x128xf32>
    %525 = arith.mulf %514, %493 : vector<16x128xf32>
    %526 = arith.addf %524, %525 : vector<16x128xf32>
    %c4_i32_127 = arith.constant 4 : i32
    %527 = arith.truncf %526 : vector<16x128xf32> to vector<16x128xbf16>
    %cst_128 = arith.constant dense<0.000000e+00> : vector<16x384xf32>
    %528 = tpu.matmul %527, %392, %cst_128 {dimension_numbers = #tpu.dot_dimension_numbers<[1], [0], [0], [1], [0, 0, 1, 1], [], []>} : vector<16x128xbf16>, vector<128x384xbf16>, vector<16x384xf32> -> vector<16x384xf32>
    %529 = arith.index_cast %c4_i32_127 : i32 to index
    %c0_129 = arith.constant 0 : index
    %c0_130 = arith.constant 0 : index
    %530 = vector.load %arg20[%529, %c0_129, %c0_130] : memref<5x16x384xf32, #tpu.memory_space<vmem>>, vector<1x16x384xf32>
    %531 = vector.shape_cast %530 : vector<1x16x384xf32> to vector<16x384xf32>
    %532 = vector.extract_strided_slice %531 {offsets = [0, 0], sizes = [16, 128], strides = [1, 1]} : vector<16x384xf32> to vector<16x128xf32>
    %533 = vector.extract_strided_slice %528 {offsets = [0, 0], sizes = [16, 128], strides = [1, 1]} : vector<16x384xf32> to vector<16x128xf32>
    %534 = arith.addf %532, %533 : vector<16x128xf32>
    %535 = arith.negf %534 : vector<16x128xf32>
    %536 = math.exp %535 : vector<16x128xf32>
    %cst_131 = arith.constant 1.000000e+00 : f32
    %537 = vector.broadcast %cst_131 : f32 to vector<16x128xf32>
    %538 = arith.addf %537, %536 : vector<16x128xf32>
    %539 = arith.divf %537, %538 : vector<16x128xf32>
    %540 = vector.extract_strided_slice %531 {offsets = [0, 128], sizes = [16, 128], strides = [1, 1]} : vector<16x384xf32> to vector<16x128xf32>
    %541 = vector.extract_strided_slice %528 {offsets = [0, 128], sizes = [16, 128], strides = [1, 1]} : vector<16x384xf32> to vector<16x128xf32>
    %542 = arith.addf %540, %541 : vector<16x128xf32>
    %543 = arith.negf %542 : vector<16x128xf32>
    %544 = math.exp %543 : vector<16x128xf32>
    %cst_132 = arith.constant 1.000000e+00 : f32
    %545 = vector.broadcast %cst_132 : f32 to vector<16x128xf32>
    %546 = arith.addf %545, %544 : vector<16x128xf32>
    %547 = arith.divf %545, %546 : vector<16x128xf32>
    %548 = vector.extract_strided_slice %531 {offsets = [0, 256], sizes = [16, 128], strides = [1, 1]} : vector<16x384xf32> to vector<16x128xf32>
    %549 = vector.extract_strided_slice %528 {offsets = [0, 256], sizes = [16, 128], strides = [1, 1]} : vector<16x384xf32> to vector<16x128xf32>
    %550 = vector.broadcast %393 : vector<1x128xf32> to vector<16x128xf32>
    %551 = arith.addf %549, %550 : vector<16x128xf32>
    %552 = arith.mulf %539, %551 : vector<16x128xf32>
    %553 = arith.addf %548, %552 : vector<16x128xf32>
    %554 = math.tanh %553 : vector<16x128xf32>
    %cst_133 = arith.constant 1.000000e+00 : f32
    %555 = vector.broadcast %cst_133 : f32 to vector<16x128xf32>
    %556 = arith.subf %555, %547 : vector<16x128xf32>
    %557 = arith.mulf %556, %554 : vector<16x128xf32>
    %558 = arith.mulf %547, %526 : vector<16x128xf32>
    %559 = arith.addf %557, %558 : vector<16x128xf32>
    %c5_i32_134 = arith.constant 5 : i32
    %c0_135 = arith.constant 0 : index
    %c0_136 = arith.constant 0 : index
    %560 = vector.load %arg13[%c0_135, %c0_136] : memref<128x6xf32, #tpu.memory_space<vmem>>, vector<128x6xf32>
    %cst_137 = arith.constant dense<0.000000e+00> : vector<8x6xf32>
    %561 = tpu.matmul %391, %560, %cst_137 {dimension_numbers = #tpu.dot_dimension_numbers<[1], [0], [0], [1], [0, 0, 1, 1], [], []>} : vector<8x128xf32>, vector<128x6xf32>, vector<8x6xf32> -> vector<8x6xf32>
    %c0_138 = arith.constant 0 : index
    %c0_139 = arith.constant 0 : index
    %562 = vector.load %arg15[%c0_138, %c0_139] : memref<1x6xf32, #tpu.memory_space<vmem>>, vector<1x6xf32>
    %563 = vector.broadcast %562 : vector<1x6xf32> to vector<8x6xf32>
    %564 = arith.addf %561, %563 : vector<8x6xf32>
    %565 = vector.shape_cast %559 : vector<16x128xf32> to vector<2x8x128xf32>
    %566 = vector.extract_strided_slice %565 {offsets = [0, 0, 0], sizes = [1, 8, 128], strides = [1, 1, 1]} : vector<2x8x128xf32> to vector<1x8x128xf32>
    %567 = vector.shape_cast %566 : vector<1x8x128xf32> to vector<8x128xf32>
    %c0_140 = arith.constant 0 : index
    %c0_141 = arith.constant 0 : index
    %c0_142 = arith.constant 0 : index
    %568 = vector.load %arg14[%c0_140, %c0_141, %c0_142] : memref<2x128x6xf32, #tpu.memory_space<vmem>>, vector<1x128x6xf32>
    %569 = vector.shape_cast %568 : vector<1x128x6xf32> to vector<128x6xf32>
    %cst_143 = arith.constant dense<0.000000e+00> : vector<8x6xf32>
    %570 = tpu.matmul %567, %569, %cst_143 {dimension_numbers = #tpu.dot_dimension_numbers<[1], [0], [0], [1], [0, 0, 1, 1], [], []>} : vector<8x128xf32>, vector<128x6xf32>, vector<8x6xf32> -> vector<8x6xf32>
    %571 = arith.addf %564, %570 : vector<8x6xf32>
    %572 = vector.extract_strided_slice %565 {offsets = [1, 0, 0], sizes = [1, 8, 128], strides = [1, 1, 1]} : vector<2x8x128xf32> to vector<1x8x128xf32>
    %573 = vector.shape_cast %572 : vector<1x8x128xf32> to vector<8x128xf32>
    %c1 = arith.constant 1 : index
    %c0_144 = arith.constant 0 : index
    %c0_145 = arith.constant 0 : index
    %574 = vector.load %arg14[%c1, %c0_144, %c0_145] : memref<2x128x6xf32, #tpu.memory_space<vmem>>, vector<1x128x6xf32>
    %575 = vector.shape_cast %574 : vector<1x128x6xf32> to vector<128x6xf32>
    %cst_146 = arith.constant dense<0.000000e+00> : vector<8x6xf32>
    %576 = tpu.matmul %573, %575, %cst_146 {dimension_numbers = #tpu.dot_dimension_numbers<[1], [0], [0], [1], [0, 0, 1, 1], [], []>} : vector<8x128xf32>, vector<128x6xf32>, vector<8x6xf32> -> vector<8x6xf32>
    %577 = arith.addf %571, %576 : vector<8x6xf32>
    %c0_147 = arith.constant 0 : index
    %c0_148 = arith.constant 0 : index
    %578 = vector.load %arg2[%c0_147, %c0_148] : memref<8x128xf32, #tpu.memory_space<vmem>>, vector<8x128xf32>
    %c0_149 = arith.constant 0 : index
    %c0_150 = arith.constant 0 : index
    %579 = vector.load %arg16[%c0_149, %c0_150] : memref<128x6xf32, #tpu.memory_space<vmem>>, vector<128x6xf32>
    %cst_151 = arith.constant dense<0.000000e+00> : vector<8x6xf32>
    %580 = tpu.matmul %578, %579, %cst_151 {dimension_numbers = #tpu.dot_dimension_numbers<[1], [0], [0], [1], [0, 0, 1, 1], [], []>} : vector<8x128xf32>, vector<128x6xf32>, vector<8x6xf32> -> vector<8x6xf32>
    %581 = arith.addf %577, %580 : vector<8x6xf32>
    %c0_152 = arith.constant 0 : index
    %c0_153 = arith.constant 0 : index
    %582 = vector.load %arg17[%c0_152, %c0_153] : memref<1x6xf32, #tpu.memory_space<vmem>>, vector<1x6xf32>
    %583 = vector.broadcast %582 : vector<1x6xf32> to vector<8x6xf32>
    %584 = arith.addf %581, %583 : vector<8x6xf32>
    %585 = arith.negf %584 : vector<8x6xf32>
    %586 = math.exp %585 : vector<8x6xf32>
    %cst_154 = arith.constant 1.000000e+00 : f32
    %587 = vector.broadcast %cst_154 : f32 to vector<8x6xf32>
    %588 = arith.addf %587, %586 : vector<8x6xf32>
    %589 = arith.divf %587, %588 : vector<8x6xf32>
    %c0_155 = arith.constant 0 : index
    %c0_156 = arith.constant 0 : index
    %590 = vector.load %arg18[%c0_155, %c0_156] : memref<8x6xf32, #tpu.memory_space<vmem>>, vector<8x6xf32>
    tpu.vector_store %arg18[%c0_155, %c0_156], %589 {strides = array<i32>} : memref<8x6xf32, #tpu.memory_space<vmem>>, vector<8x6xf32>,
    return
  }
  func.func @transform_0(%arg0: i32) -> (i32, i32, i32) {
    %c0_i32 = arith.constant 0 : i32
    %c0_i32_0 = arith.constant 0 : i32
    %c0_i32_1 = arith.constant 0 : i32
    return %c0_i32, %arg0, %c0_i32_0 : i32, i32, i32
  }
  func.func @transform_1(%arg0: i32) -> (i32, i32) {
    %c0_i32 = arith.constant 0 : i32
    %c0_i32_0 = arith.constant 0 : i32
    return %arg0, %c0_i32 : i32, i32
  }
  func.func @transform_2(%arg0: i32) -> (i32, i32) {
    %c0_i32 = arith.constant 0 : i32
    %c0_i32_0 = arith.constant 0 : i32
    %c0_i32_1 = arith.constant 0 : i32
    return %c0_i32, %c0_i32_0 : i32, i32
  }
  func.func @transform_3(%arg0: i32) -> (i32, i32) {
    %c0_i32 = arith.constant 0 : i32
    %c0_i32_0 = arith.constant 0 : i32
    %c0_i32_1 = arith.constant 0 : i32
    return %c0_i32, %c0_i32_0 : i32, i32
  }
  func.func @transform_4(%arg0: i32) -> (i32, i32) {
    %c0_i32 = arith.constant 0 : i32
    %c0_i32_0 = arith.constant 0 : i32
    %c0_i32_1 = arith.constant 0 : i32
    return %c0_i32, %c0_i32_0 : i32, i32
  }
  func.func @transform_5(%arg0: i32) -> (i32, i32) {
    %c0_i32 = arith.constant 0 : i32
    %c0_i32_0 = arith.constant 0 : i32
    %c0_i32_1 = arith.constant 0 : i32
    return %c0_i32, %c0_i32_0 : i32, i32
  }
  func.func @transform_6(%arg0: i32) -> (i32, i32) {
    %c0_i32 = arith.constant 0 : i32
    %c0_i32_0 = arith.constant 0 : i32
    %c0_i32_1 = arith.constant 0 : i32
    return %c0_i32, %c0_i32_0 : i32, i32
  }
  func.func @transform_7(%arg0: i32) -> (i32, i32) {
    %c0_i32 = arith.constant 0 : i32
    %c0_i32_0 = arith.constant 0 : i32
    %c0_i32_1 = arith.constant 0 : i32
    return %c0_i32, %c0_i32_0 : i32, i32
  }
  func.func @transform_8(%arg0: i32) -> (i32, i32) {
    %c0_i32 = arith.constant 0 : i32
    %c0_i32_0 = arith.constant 0 : i32
    %c0_i32_1 = arith.constant 0 : i32
    return %c0_i32, %c0_i32_0 : i32, i32
  }
  func.func @transform_9(%arg0: i32) -> (i32, i32) {
    %c0_i32 = arith.constant 0 : i32
    %c0_i32_0 = arith.constant 0 : i32
    %c0_i32_1 = arith.constant 0 : i32
    return %c0_i32, %c0_i32_0 : i32, i32
  }
  func.func @transform_10(%arg0: i32) -> (i32, i32) {
    %c0_i32 = arith.constant 0 : i32
    %c0_i32_0 = arith.constant 0 : i32
    %c0_i32_1 = arith.constant 0 : i32
    return %c0_i32, %c0_i32_0 : i32, i32
  }
  func.func @transform_11(%arg0: i32) -> (i32, i32) {
    %c0_i32 = arith.constant 0 : i32
    %c0_i32_0 = arith.constant 0 : i32
    %c0_i32_1 = arith.constant 0 : i32
    return %c0_i32, %c0_i32_0 : i32, i32
  }
  func.func @transform_12(%arg0: i32) -> (i32, i32) {
    %c0_i32 = arith.constant 0 : i32
    %c0_i32_0 = arith.constant 0 : i32
    %c0_i32_1 = arith.constant 0 : i32
    return %c0_i32, %c0_i32_0 : i32, i32
  }
  func.func @transform_13(%arg0: i32) -> (i32, i32, i32) {
    %c0_i32 = arith.constant 0 : i32
    %c0_i32_0 = arith.constant 0 : i32
    %c0_i32_1 = arith.constant 0 : i32
    %c0_i32_2 = arith.constant 0 : i32
    return %c0_i32, %c0_i32_0, %c0_i32_1 : i32, i32, i32
  }
  func.func @transform_14(%arg0: i32) -> (i32, i32) {
    %c0_i32 = arith.constant 0 : i32
    %c0_i32_0 = arith.constant 0 : i32
    %c0_i32_1 = arith.constant 0 : i32
    return %c0_i32, %c0_i32_0 : i32, i32
  }
  func.func @transform_15(%arg0: i32) -> (i32, i32) {
    %c0_i32 = arith.constant 0 : i32
    %c0_i32_0 = arith.constant 0 : i32
    %c0_i32_1 = arith.constant 0 : i32
    return %c0_i32, %c0_i32_0 : i32, i32
  }
  func.func @transform_16(%arg0: i32) -> (i32, i32) {
    %c0_i32 = arith.constant 0 : i32
    %c0_i32_0 = arith.constant 0 : i32
    %c0_i32_1 = arith.constant 0 : i32
    return %c0_i32, %c0_i32_0 : i32, i32
  }
  func.func @transform_17(%arg0: i32) -> (i32, i32) {
    %c0_i32 = arith.constant 0 : i32
    %c0_i32_0 = arith.constant 0 : i32
    return %arg0, %c0_i32 : i32, i32
  }
}

</mosaic_0001>

<llo_original>
// kernel: _lambda_.1
$region0: #{_lambda_.1}
  #allocation0 [shape = 'u32[]', space=smem, size = 0x4, offset = 0x4, fixed_abs, tag = 'smem constant byte address 0x4 - core index']
  #allocation1 [shape = 'u32[144,128]{1,0:T(1,128)}', space=vmem, size = 0x12000, scoped, tag = 'internal scratch']
  #allocation2 [shape = 'f32[11,8,384]{2,1,0:T(8,128)}', space=vmem, size = 0x21000, scoped, tag = 'scratch operand']
  #allocation3 [shape = 'f32[5,16,384]{2,1,0:T(8,128)}', space=vmem, size = 0x1e000, scoped, tag = 'scratch operand']
  %s0 = inlined_call_operand.vmem [shape: f32[11,8,48], index: 0, kind: input, shape index: {}]
  %s1 = inlined_call_operand.vmem [shape: f32[8,128], index: 1, kind: input, shape index: {}]
  %s2 = inlined_call_operand.vmem [shape: bf16[48,32], index: 2, kind: input, shape index: {}]
  %s3 = inlined_call_operand.vmem [shape: f32[1,32], index: 3, kind: input, shape index: {}]
  %s4 = inlined_call_operand.vmem [shape: bf16[32,384], index: 4, kind: input, shape index: {}]
  %s5 = inlined_call_operand.vmem [shape: bf16[128,384], index: 5, kind: input, shape index: {}]
  %s6 = inlined_call_operand.vmem [shape: f32[1,384], index: 6, kind: input, shape index: {}]
  %s7 = inlined_call_operand.vmem [shape: f32[1,128], index: 7, kind: input, shape index: {}]
  %s8 = inlined_call_operand.vmem [shape: bf16[32,384], index: 8, kind: input, shape index: {}]
  %s9 = inlined_call_operand.vmem [shape: bf16[128,384], index: 9, kind: input, shape index: {}]
  %s10 = inlined_call_operand.vmem [shape: f32[1,384], index: 10, kind: input, shape index: {}]
  %s11 = inlined_call_operand.vmem [shape: f32[1,128], index: 11, kind: input, shape index: {}]
  %s12 = inlined_call_operand.vmem [shape: f32[128,6], index: 12, kind: input, shape index: {}]
  %s13 = inlined_call_operand.vmem [shape: f32[2,128,6], index: 13, kind: input, shape index: {}]
  %s14 = inlined_call_operand.vmem [shape: f32[1,6], index: 14, kind: input, shape index: {}]
  %s15 = inlined_call_operand.vmem [shape: f32[128,6], index: 15, kind: input, shape index: {}]
  %s16 = inlined_call_operand.vmem [shape: f32[1,6], index: 16, kind: input, shape index: {}]
  %s17 = inlined_call_operand.vmem [shape: f32[8,6], index: 17, kind: output, shape index: {}]
  %s18 = sld [smem:[#allocation0]]
  $region78: #{_lambda_.1} parent=0
    _
  %s20 = ssub.s32 1, %s18
  %s21 = scalar_select 0, %s20, %s18
  // Predicated region
  $region2: #{_lambda_.1} parent=0 // pred_check
    _
  $region3: #{_lambda_.1} parent=0 // pred_check_branch
    %23 = sbr.rel (0) target = $region5
  $region4: #{_lambda_.1} parent=0 // pred_region
    _
  $region5: #{_lambda_.1} parent=0 // pred_fallthru
    _
  // Predicated region
  $region6: #{_lambda_.1} parent=0 // pred_check
    _
  $region7: #{_lambda_.1} parent=0 // pred_check_branch
    %25 = sbr.rel (0) target = $region9
  $region8: #{_lambda_.1} parent=0 // pred_region
    _
  $region9: #{_lambda_.1} parent=0 // pred_fallthru
    _
  // Predicated region
  $region10: #{_lambda_.1} parent=0 // pred_check
    _
  $region11: #{_lambda_.1} parent=0 // pred_check_branch
    %27 = sbr.rel (0) target = $region13
  $region12: #{_lambda_.1} parent=0 // pred_region
    _
  $region13: #{_lambda_.1} parent=0 // pred_fallthru
    _
  // Predicated region
  $region14: #{_lambda_.1} parent=0 // pred_check
    _
  $region15: #{_lambda_.1} parent=0 // pred_check_branch
    %29 = sbr.rel (0) target = $region17
  $region16: #{_lambda_.1} parent=0 // pred_region
    _
  $region17: #{_lambda_.1} parent=0 // pred_fallthru
    _
  // Predicated region
  $region18: #{_lambda_.1} parent=0 // pred_check
    _
  $region19: #{_lambda_.1} parent=0 // pred_check_branch
    %31 = sbr.rel (0) target = $region21
  $region20: #{_lambda_.1} parent=0 // pred_region
    _
  $region21: #{_lambda_.1} parent=0 // pred_fallthru
    _
  // Predicated region
  $region22: #{_lambda_.1} parent=0 // pred_check
    _
  $region23: #{_lambda_.1} parent=0 // pred_check_branch
    %33 = sbr.rel (0) target = $region25
  $region24: #{_lambda_.1} parent=0 // pred_region
    _
  $region25: #{_lambda_.1} parent=0 // pred_fallthru
    _
  // Predicated region
  $region26: #{_lambda_.1} parent=0 // pred_check
    _
  $region27: #{_lambda_.1} parent=0 // pred_check_branch
    %35 = sbr.rel (0) target = $region29
  $region28: #{_lambda_.1} parent=0 // pred_region
    _
  $region29: #{_lambda_.1} parent=0 // pred_fallthru
    _
  // Predicated region
  $region30: #{_lambda_.1} parent=0 // pred_check
    _
  $region31: #{_lambda_.1} parent=0 // pred_check_branch
    %37 = sbr.rel (0) target = $region33
  $region32: #{_lambda_.1} parent=0 // pred_region
    _
  $region33: #{_lambda_.1} parent=0 // pred_fallthru
    _
  // Predicated region
  $region34: #{_lambda_.1} parent=0 // pred_check
    _
  $region35: #{_lambda_.1} parent=0 // pred_check_branch
    %39 = sbr.rel (0) target = $region37
  $region36: #{_lambda_.1} parent=0 // pred_region
    _
  $region37: #{_lambda_.1} parent=0 // pred_fallthru
    _
  // Predicated region
  $region38: #{_lambda_.1} parent=0 // pred_check
    _
  $region39: #{_lambda_.1} parent=0 // pred_check_branch
    %41 = sbr.rel (0) target = $region41
  $region40: #{_lambda_.1} parent=0 // pred_region
    _
  $region41: #{_lambda_.1} parent=0 // pred_fallthru
    _
  // Predicated region
  $region42: #{_lambda_.1} parent=0 // pred_check
    _
  $region43: #{_lambda_.1} parent=0 // pred_check_branch
    %43 = sbr.rel (0) target = $region45
  $region44: #{_lambda_.1} parent=0 // pred_region
    _
  $region45: #{_lambda_.1} parent=0 // pred_fallthru
    _
  // Predicated region
  $region46: #{_lambda_.1} parent=0 // pred_check
    _
  $region47: #{_lambda_.1} parent=0 // pred_check_branch
    %45 = sbr.rel (0) target = $region49
  $region48: #{_lambda_.1} parent=0 // pred_region
    _
  $region49: #{_lambda_.1} parent=0 // pred_fallthru
    _
  // Predicated region
  $region50: #{_lambda_.1} parent=0 // pred_check
    _
  $region51: #{_lambda_.1} parent=0 // pred_check_branch
    %47 = sbr.rel (0) target = $region53
  $region52: #{_lambda_.1} parent=0 // pred_region
    _
  $region53: #{_lambda_.1} parent=0 // pred_fallthru
    _
  // Predicated region
  $region54: #{_lambda_.1} parent=0 // pred_check
    _
  $region55: #{_lambda_.1} parent=0 // pred_check_branch
    %49 = sbr.rel (0) target = $region57
  $region56: #{_lambda_.1} parent=0 // pred_region
    _
  $region57: #{_lambda_.1} parent=0 // pred_fallthru
    _
  // Predicated region
  $region58: #{_lambda_.1} parent=0 // pred_check
    _
  $region59: #{_lambda_.1} parent=0 // pred_check_branch
    %51 = sbr.rel (0) target = $region61
  $region60: #{_lambda_.1} parent=0 // pred_region
    _
  $region61: #{_lambda_.1} parent=0 // pred_fallthru
    _
  // Predicated region
  $region62: #{_lambda_.1} parent=0 // pred_check
    _
  $region63: #{_lambda_.1} parent=0 // pred_check_branch
    %53 = sbr.rel (0) target = $region65
  $region64: #{_lambda_.1} parent=0 // pred_region
    _
  $region65: #{_lambda_.1} parent=0 // pred_fallthru
    _
  // Predicated region
  $region66: #{_lambda_.1} parent=0 // pred_check
    _
  $region67: #{_lambda_.1} parent=0 // pred_check_branch
    %55 = sbr.rel (0) target = $region69
  $region68: #{_lambda_.1} parent=0 // pred_region
    _
  $region69: #{_lambda_.1} parent=0 // pred_fallthru
    _
  %v57 = vld [vmem:[%s0] sm:$0xff]
  %v58 = vld [vmem:[%s0 + $0x8] sm:$0xff]
  %v59 = vld [vmem:[%s0 + $0x10] sm:$0xff]
  %v60 = vld [vmem:[%s0 + $0x18] sm:$0xff]
  %v61 = vld [vmem:[%s0 + $0x20] sm:$0xff]
  %v62 = vld [vmem:[%s0 + $0x28] sm:$0xff]
  %v63 = vld [vmem:[%s0 + $0x30] sm:$0xff]
  %v64 = vld [vmem:[%s0 + $0x38] sm:$0xff]
  %v65 = vld [vmem:[%s0 + $0x40] sm:$0xff]
  %v66 = vld [vmem:[%s0 + $0x48] sm:$0xff]
  %v67 = vld [vmem:[%s0 + $0x50] sm:$0xff]
  %v68 = vpack.c.bf16 %v57, %v57
  %v69 = vpack.c.bf16 %v58, %v58
  %v70 = vpack.c.bf16 %v59, %v59
  %v71 = vpack.c.bf16 %v60, %v60
  %v72 = vpack.c.bf16 %v61, %v61
  %v73 = vpack.c.bf16 %v62, %v62
  %v74 = vpack.c.bf16 %v63, %v63
  %v75 = vpack.c.bf16 %v64, %v64
  %v76 = vpack.c.bf16 %v65, %v65
  %v77 = vpack.c.bf16 %v66, %v66
  %v78 = vpack.c.bf16 %v67, %v67
  %v79 = vld [vmem:[%s2] sm:$0xf]
  %v80 = vld [vmem:[%s2 + $0x4] sm:$0xf]
  %v81 = vld [vmem:[%s2 + $0x8] sm:$0xf]
  %v82 = vld [vmem:[%s2 + $0xc] sm:$0xf]
  %v83 = vld [vmem:[%s2 + $0x10] sm:$0xf]
  %v84 = vld [vmem:[%s2 + $0x14] sm:$0xf]
  %v85 = vld [vmem:[%s3] sm:$0x1]
  %v87 = vlaneseq
  %v88 = vshrl.u32 %v87, 7
  %v89 = vsub.s32 0, %v88
  %v90 = vrot.slane %v85, %v89
  %v103 = vunpack.c.l.b16 %v68
  %v104 = vunpack.c.l.b16 %v69
  %v105 = vunpack.c.l.b16 %v70
  %v106 = vunpack.c.l.b16 %v71
  %v107 = vunpack.c.l.b16 %v72
  %v108 = vunpack.c.l.b16 %v73
  %v109 = vunpack.c.l.b16 %v74
  %v110 = vunpack.c.l.b16 %v75
  %v111 = vunpack.c.l.b16 %v76
  %v112 = vunpack.c.l.b16 %v77
  %v113 = vunpack.c.l.b16 %v78
  %v114 = vpack.c.b16 %v104, %v103
  %v115 = vpack.c.b16 %v106, %v105
  %v116 = vpack.c.b16 %v108, %v107
  %v117 = vpack.c.b16 %v110, %v109
  %v118 = vpack.c.b16 %v112, %v111
  %v119 = vpack.c.b16 %v113, %v113
  %v126 = vunpack.c.l.b16 %v79
  %v127 = vunpack.c.l.b16 %v80
  %v128 = vunpack.c.l.b16 %v81
  %v129 = vunpack.c.l.b16 %v82
  %v130 = vunpack.c.l.b16 %v83
  %v131 = vunpack.c.l.b16 %v84
  %v132 = vpack.c.b16 %v127, %v126
  %v133 = vpack.c.b16 %v129, %v128
  %v134 = vpack.c.b16 %v131, %v130
  %vm138 = vcmask 392192
  %v140 = vsel %vm138, %v114, 0
  %v143 = vsel %vm138, %v115, 0
  %v146 = vsel %vm138, %v116, 0
  %v149 = vsel %vm138, %v117, 0
  %v152 = vsel %vm138, %v118, 0
  %v155 = vsel %vm138, %v119, 0
  %157 = vmatprep.subr.bf16.mxu0 0
  %158 = vmatpush1.bf16.msra.mxu0 %v132
  %159 = vmatprep.subr.bf16.mxu0 0
  %160 = vmatpush1.bf16.msra.mxu0 %v133
  %161 = vmatprep.subr.bf16.mxu0 0
  %162 = vmatpush1.bf16.msra.mxu0 %v134
  %163 = vmatprep.subr.bf16.mxu0 0
  %164 = vmatpush1.bf16.msra.mxu0 0
  %165 = vmatprep.subr.bf16.mxu0 0
  %166 = vmatpush1.bf16.msra.mxu0 0
  %167 = vmatprep.subr.bf16.mxu0 0
  %168 = vmatpush1.bf16.msra.mxu0 0
  %169 = vmatprep.subr.bf16.mxu0 0
  %170 = vmatpush1.bf16.msra.mxu0 0
  %171 = vmatprep.subr.bf16.mxu0 0
  %172 = vmatpush1.bf16.msra.mxu0 0
  %173 = vmatprep.subr.bf16.mxu0 0
  %174 = vmatpush1.bf16.msra.mxu0 0
  %175 = vmatprep.subr.bf16.mxu0 0
  %176 = vmatpush1.bf16.msra.mxu0 0
  %177 = vmatprep.subr.bf16.mxu0 0
  %178 = vmatpush1.bf16.msra.mxu0 0
  %179 = vmatprep.subr.bf16.mxu0 0
  %180 = vmatpush1.bf16.msra.mxu0 0
  %181 = vmatprep.subr.bf16.mxu0 0
  %182 = vmatpush1.bf16.msra.mxu0 0
  %183 = vmatprep.subr.bf16.mxu0 0
  %184 = vmatpush1.bf16.msra.mxu0 0
  %185 = vmatprep.subr.bf16.mxu0 0
  %186 = vmatpush1.bf16.msra.mxu0 0
  %187 = vmatprep.subr.bf16.mxu0 0
  %188 = vmatpush1.bf16.msra.mxu0 0
  %189 = vmatprep.mubr.bf16.mxu0 0
  %190 = vmatmul.mubr.bf16.gmra.mrb[0].mxu0 %v140
  %v191 = vpop.f32.mrb[0].mxu0
  %v192 = vadd.f32 %v90, %v191
  %v193 = vpop.f32.mrb[0].mxu0
  %v194 = vpop.f32.mrb[0].mxu0
  %v195 = vadd.f32 %v90, %v194
  %v196 = vpop.f32.mrb[0].mxu0
  %197 = vmatprep.mubr.bf16.mxu0 0
  %198 = vmatmul.mubr.bf16.gmra.mrb[0].mxu0 %v143
  %v199 = vpop.f32.mrb[0].mxu0
  %v200 = vadd.f32 %v90, %v199
  %v201 = vpop.f32.mrb[0].mxu0
  %v202 = vpop.f32.mrb[0].mxu0
  %v203 = vadd.f32 %v90, %v202
  %v204 = vpop.f32.mrb[0].mxu0
  %205 = vmatprep.mubr.bf16.mxu0 0
  %206 = vmatmul.mubr.bf16.gmra.mrb[0].mxu0 %v146
  %v207 = vpop.f32.mrb[0].mxu0
  %v208 = vadd.f32 %v90, %v207
  %v209 = vpop.f32.mrb[0].mxu0
  %v210 = vpop.f32.mrb[0].mxu0
  %v211 = vadd.f32 %v90, %v210
  %v212 = vpop.f32.mrb[0].mxu0
  %213 = vmatprep.mubr.bf16.mxu0 0
  %214 = vmatmul.mubr.bf16.gmra.mrb[0].mxu0 %v149
  %v215 = vpop.f32.mrb[0].mxu0
  %v216 = vadd.f32 %v90, %v215
  %v217 = vpop.f32.mrb[0].mxu0
  %v218 = vpop.f32.mrb[0].mxu0
  %v219 = vadd.f32 %v90, %v218
  %v220 = vpop.f32.mrb[0].mxu0
  %221 = vmatprep.mubr.bf16.mxu0 0
  %222 = vmatmul.mubr.bf16.gmra.mrb[0].mxu0 %v152
  %v223 = vpop.f32.mrb[0].mxu0
  %v224 = vadd.f32 %v90, %v223
  %v225 = vpop.f32.mrb[0].mxu0
  %v226 = vpop.f32.mrb[0].mxu0
  %v227 = vadd.f32 %v90, %v226
  %v228 = vpop.f32.mrb[0].mxu0
  %229 = vmatprep.mubr.bf16.mxu0 0
  %230 = vmatmul.mubr.bf16.gmra.mrb[0].mxu0 %v155
  %v231 = vpop.f32.mrb[0].mxu0
  %v232 = vadd.f32 %v90, %v231
  %v233 = vpop.f32.mrb[0].mxu0
  %v234 = vpop.f32.mrb[0].mxu0
  %v235 = vpop.f32.mrb[0].mxu0
  %236 = vdwg.mxu0
  %v237 = vmax.f32 %v192, 0.0
  %v238 = vmax.f32 %v195, 0.0
  %v239 = vmax.f32 %v200, 0.0
  %v240 = vmax.f32 %v203, 0.0
  %v241 = vmax.f32 %v208, 0.0
  %v242 = vmax.f32 %v211, 0.0
  %v243 = vmax.f32 %v216, 0.0
  %v244 = vmax.f32 %v219, 0.0
  %v245 = vmax.f32 %v224, 0.0
  %v246 = vmax.f32 %v227, 0.0
  %v247 = vmax.f32 %v232, 0.0
  %v248 = vpack.c.bf16 %v238, %v237
  %v249 = vpack.c.bf16 %v240, %v239
  %v250 = vpack.c.bf16 %v242, %v241
  %v251 = vpack.c.bf16 %v244, %v243
  %v252 = vpack.c.bf16 %v246, %v245
  %v253 = vpack.c.bf16 %v247, %v247
  %v254 = vld [vmem:[%s4] sm:$0xff]
  %v255 = vld [vmem:[%s4 + $0x8] sm:$0xf]
  %v256 = vld [vmem:[%s4 + $0xc] sm:$0xff]
  %v257 = vld [vmem:[%s4 + $0x14] sm:$0xf]
  %v258 = vld [vmem:[%s4 + $0x18] sm:$0xff]
  %v259 = vld [vmem:[%s4 + $0x20] sm:$0xf]
  %v260 = vld [vmem:[%s4 + $0x24] sm:$0xff]
  %v261 = vld [vmem:[%s4 + $0x2c] sm:$0xf]
  %v262 = vld [vmem:[%s6] sm:$0x7]
  %v264 = vlaneseq
  %v265 = vshrl.u32 %v264, 7
  %v266 = vsub.s32 0, %v265
  %v267 = vrot.slane %v262, %v266
  %v268 = vlaneseq
  %v269 = vshrl.u32 %v268, 7
  %v270 = vsub.s32 1, %v269
  %v271 = vrot.slane %v262, %v270
  %v272 = vlaneseq
  %v273 = vshrl.u32 %v272, 7
  %v274 = vsub.s32 2, %v273
  %v275 = vrot.slane %v262, %v274
  %v287 = vunpack.c.l.b16 %v254
  %v288 = vunpack.c.h.b16 %v254
  %v289 = vunpack.c.l.b16 %v255
  %v290 = vunpack.c.l.b16 %v256
  %v291 = vunpack.c.h.b16 %v256
  %v292 = vunpack.c.l.b16 %v257
  %v293 = vunpack.c.l.b16 %v258
  %v294 = vunpack.c.h.b16 %v258
  %v295 = vunpack.c.l.b16 %v259
  %v296 = vunpack.c.l.b16 %v260
  %v297 = vunpack.c.h.b16 %v260
  %v298 = vunpack.c.l.b16 %v261
  %v299 = vpack.c.b16 %v290, %v287
  %v300 = vpack.c.b16 %v291, %v288
  %v301 = vpack.c.b16 %v292, %v289
  %v302 = vpack.c.b16 %v296, %v293
  %v303 = vpack.c.b16 %v297, %v294
  %v304 = vpack.c.b16 %v298, %v295
  %vm311 = vcmask 261120
  %v313 = vsel %vm311, %v248, 0
  %v316 = vsel %vm311, %v249, 0
  %v319 = vsel %vm311, %v250, 0
  %v322 = vsel %vm311, %v251, 0
  %v325 = vsel %vm311, %v252, 0
  %v328 = vsel %vm311, %v253, 0
  %330 = vmatprep.subr.bf16.mxu0 %v300
  %331 = vmatpush1.bf16.msra.mxu0 %v299
  %332 = vmatprep.subr.bf16.mxu0 %v303
  %333 = vmatpush1.bf16.msra.mxu0 %v302
  %334 = vmatprep.subr.bf16.mxu0 0
  %335 = vmatpush1.bf16.msra.mxu0 0
  %336 = vmatprep.subr.bf16.mxu0 0
  %337 = vmatpush1.bf16.msra.mxu0 0
  %338 = vmatprep.subr.bf16.mxu0 0
  %339 = vmatpush1.bf16.msra.mxu0 0
  %340 = vmatprep.subr.bf16.mxu0 0
  %341 = vmatpush1.bf16.msra.mxu0 0
  %342 = vmatprep.subr.bf16.mxu0 0
  %343 = vmatpush1.bf16.msra.mxu0 0
  %344 = vmatprep.subr.bf16.mxu0 0
  %345 = vmatpush1.bf16.msra.mxu0 0
  %346 = vmatprep.subr.bf16.mxu0 0
  %347 = vmatpush1.bf16.msra.mxu0 0
  %348 = vmatprep.subr.bf16.mxu0 0
  %349 = vmatpush1.bf16.msra.mxu0 0
  %350 = vmatprep.subr.bf16.mxu0 0
  %351 = vmatpush1.bf16.msra.mxu0 0
  %352 = vmatprep.subr.bf16.mxu0 0
  %353 = vmatpush1.bf16.msra.mxu0 0
  %354 = vmatprep.subr.bf16.mxu0 0
  %355 = vmatpush1.bf16.msra.mxu0 0
  %356 = vmatprep.subr.bf16.mxu0 0
  %357 = vmatpush1.bf16.msra.mxu0 0
  %358 = vmatprep.subr.bf16.mxu0 0
  %359 = vmatpush1.bf16.msra.mxu0 0
  %360 = vmatprep.subr.bf16.mxu0 0
  %361 = vmatpush1.bf16.msra.mxu0 0
  %362 = vmatprep.mubr.bf16.mxu0 0
  %363 = vmatmul.mubr.bf16.gmra.mrb[0].mxu0 %v313
  %v364 = vpop.f32.mrb[0].mxu0
  %v365 = vadd.f32 %v267, %v364
  %v366 = vpop.f32.mrb[0].mxu0
  %v367 = vadd.f32 %v271, %v366
  %v368 = vpop.f32.mrb[0].mxu0
  %v369 = vadd.f32 %v267, %v368
  %v370 = vpop.f32.mrb[0].mxu0
  %v371 = vadd.f32 %v271, %v370
  %372 = vmatprep.mubr.bf16.mxu0 0
  %373 = vmatmul.mubr.bf16.gmra.mrb[0].mxu0 %v316
  %v374 = vpop.f32.mrb[0].mxu0
  %v375 = vadd.f32 %v267, %v374
  %v376 = vpop.f32.mrb[0].mxu0
  %v377 = vadd.f32 %v271, %v376
  %v378 = vpop.f32.mrb[0].mxu0
  %v379 = vadd.f32 %v267, %v378
  %v380 = vpop.f32.mrb[0].mxu0
  %v381 = vadd.f32 %v271, %v380
  %382 = vmatprep.mubr.bf16.mxu0 0
  %383 = vmatmul.mubr.bf16.gmra.mrb[0].mxu0 %v319
  %v384 = vpop.f32.mrb[0].mxu0
  %v385 = vadd.f32 %v267, %v384
  %v386 = vpop.f32.mrb[0].mxu0
  %v387 = vadd.f32 %v271, %v386
  %v388 = vpop.f32.mrb[0].mxu0
  %v389 = vadd.f32 %v267, %v388
  %v390 = vpop.f32.mrb[0].mxu0
  %v391 = vadd.f32 %v271, %v390
  %392 = vmatprep.mubr.bf16.mxu0 0
  %393 = vmatmul.mubr.bf16.gmra.mrb[0].mxu0 %v322
  %v394 = vpop.f32.mrb[0].mxu0
  %v395 = vadd.f32 %v267, %v394
  %v396 = vpop.f32.mrb[0].mxu0
  %v397 = vadd.f32 %v271, %v396
  %v398 = vpop.f32.mrb[0].mxu0
  %v399 = vadd.f32 %v267, %v398
  %v400 = vpop.f32.mrb[0].mxu0
  %v401 = vadd.f32 %v271, %v400
  %402 = vmatprep.mubr.bf16.mxu0 0
  %403 = vmatmul.mubr.bf16.gmra.mrb[0].mxu0 %v325
  %v404 = vpop.f32.mrb[0].mxu0
  %v405 = vadd.f32 %v267, %v404
  %v406 = vpop.f32.mrb[0].mxu0
  %v407 = vadd.f32 %v271, %v406
  %v408 = vpop.f32.mrb[0].mxu0
  %v409 = vadd.f32 %v267, %v408
  %v410 = vpop.f32.mrb[0].mxu0
  %v411 = vadd.f32 %v271, %v410
  %412 = vmatprep.mubr.bf16.mxu0 0
  %413 = vmatmul.mubr.bf16.gmra.mrb[0].mxu0 %v328
  %v414 = vpop.f32.mrb[0].mxu0
  %v415 = vadd.f32 %v267, %v414
  %v416 = vpop.f32.mrb[0].mxu0
  %v417 = vadd.f32 %v271, %v416
  %v418 = vpop.f32.mrb[0].mxu0
  %v419 = vpop.f32.mrb[0].mxu0
  %420 = vdwg.mxu0
  %421 = vmatprep.subr.bf16.mxu0 0
  %422 = vmatpush1.bf16.msra.mxu0 %v301
  %423 = vmatprep.subr.bf16.mxu0 0
  %424 = vmatpush1.bf16.msra.mxu0 %v304
  %425 = vmatprep.subr.bf16.mxu0 0
  %426 = vmatpush1.bf16.msra.mxu0 0
  %427 = vmatprep.subr.bf16.mxu0 0
  %428 = vmatpush1.bf16.msra.mxu0 0
  %429 = vmatprep.subr.bf16.mxu0 0
  %430 = vmatpush1.bf16.msra.mxu0 0
  %431 = vmatprep.subr.bf16.mxu0 0
  %432 = vmatpush1.bf16.msra.mxu0 0
  %433 = vmatprep.subr.bf16.mxu0 0
  %434 = vmatpush1.bf16.msra.mxu0 0
  %435 = vmatprep.subr.bf16.mxu0 0
  %436 = vmatpush1.bf16.msra.mxu0 0
  %437 = vmatprep.subr.bf16.mxu0 0
  %438 = vmatpush1.bf16.msra.mxu0 0
  %439 = vmatprep.subr.bf16.mxu0 0
  %440 = vmatpush1.bf16.msra.mxu0 0
  %441 = vmatprep.subr.bf16.mxu0 0
  %442 = vmatpush1.bf16.msra.mxu0 0
  %443 = vmatprep.subr.bf16.mxu0 0
  %444 = vmatpush1.bf16.msra.mxu0 0
  %445 = vmatprep.subr.bf16.mxu0 0
  %446 = vmatpush1.bf16.msra.mxu0 0
  %447 = vmatprep.subr.bf16.mxu0 0
  %448 = vmatpush1.bf16.msra.mxu0 0
  %449 = vmatprep.subr.bf16.mxu0 0
  %450 = vmatpush1.bf16.msra.mxu0 0
  %451 = vmatprep.subr.bf16.mxu0 0
  %452 = vmatpush1.bf16.msra.mxu0 0
  %453 = vmatprep.mubr.bf16.mxu0 0
  %454 = vmatmul.mubr.bf16.gmra.mrb[0].mxu0 %v313
  %v455 = vpop.f32.mrb[0].mxu0
  %v456 = vadd.f32 %v275, %v455
  %v457 = vpop.f32.mrb[0].mxu0
  %v458 = vpop.f32.mrb[0].mxu0
  %v459 = vadd.f32 %v275, %v458
  %v460 = vpop.f32.mrb[0].mxu0
  %461 = vmatprep.mubr.bf16.mxu0 0
  %462 = vmatmul.mubr.bf16.gmra.mrb[0].mxu0 %v316
  %v463 = vpop.f32.mrb[0].mxu0
  %v464 = vadd.f32 %v275, %v463
  %v465 = vpop.f32.mrb[0].mxu0
  %v466 = vpop.f32.mrb[0].mxu0
  %v467 = vadd.f32 %v275, %v466
  %v468 = vpop.f32.mrb[0].mxu0
  %469 = vmatprep.mubr.bf16.mxu0 0
  %470 = vmatmul.mubr.bf16.gmra.mrb[0].mxu0 %v319
  %v471 = vpop.f32.mrb[0].mxu0
  %v472 = vadd.f32 %v275, %v471
  %v473 = vpop.f32.mrb[0].mxu0
  %v474 = vpop.f32.mrb[0].mxu0
  %v475 = vadd.f32 %v275, %v474
  %v476 = vpop.f32.mrb[0].mxu0
  %477 = vmatprep.mubr.bf16.mxu0 0
  %478 = vmatmul.mubr.bf16.gmra.mrb[0].mxu0 %v322
  %v479 = vpop.f32.mrb[0].mxu0
  %v480 = vadd.f32 %v275, %v479
  %v481 = vpop.f32.mrb[0].mxu0
  %v482 = vpop.f32.mrb[0].mxu0
  %v483 = vadd.f32 %v275, %v482
  %v484 = vpop.f32.mrb[0].mxu0
  %485 = vmatprep.mubr.bf16.mxu0 0
  %486 = vmatmul.mubr.bf16.gmra.mrb[0].mxu0 %v325
  %v487 = vpop.f32.mrb[0].mxu0
  %v488 = vadd.f32 %v275, %v487
  %v489 = vpop.f32.mrb[0].mxu0
  %v490 = vpop.f32.mrb[0].mxu0
  %v491 = vadd.f32 %v275, %v490
  %v492 = vpop.f32.mrb[0].mxu0
  %493 = vmatprep.mubr.bf16.mxu0 0
  %494 = vmatmul.mubr.bf16.gmra.mrb[0].mxu0 %v328
  %v495 = vpop.f32.mrb[0].mxu0
  %v496 = vadd.f32 %v275, %v495
  %v497 = vpop.f32.mrb[0].mxu0
  %v498 = vpop.f32.mrb[0].mxu0
  %v499 = vpop.f32.mrb[0].mxu0
  %500 = vdwg.mxu0
  %501 = vst [vmem:[#allocation2] sm:$0xff] %v365
  %502 = vst [vmem:[#allocation2 + $0x8] sm:$0xff] %v367
  %503 = vst [vmem:[#allocation2 + $0x10] sm:$0xff] %v456
  %504 = vst [vmem:[#allocation2 + $0x18] sm:$0xff] %v369
  %505 = vst [vmem:[#allocation2 + $0x20] sm:$0xff] %v371
  %506 = vst [vmem:[#allocation2 + $0x28] sm:$0xff] %v459
  %507 = vst [vmem:[#allocation2 + $0x30] sm:$0xff] %v375
  %508 = vst [vmem:[#allocation2 + $0x38] sm:$0xff] %v377
  %509 = vst [vmem:[#allocation2 + $0x40] sm:$0xff] %v464
  %510 = vst [vmem:[#allocation2 + $0x48] sm:$0xff] %v379
  %511 = vst [vmem:[#allocation2 + $0x50] sm:$0xff] %v381
  %512 = vst [vmem:[#allocation2 + $0x58] sm:$0xff] %v467
  %513 = vst [vmem:[#allocation2 + $0x60] sm:$0xff] %v385
  %514 = vst [vmem:[#allocation2 + $0x68] sm:$0xff] %v387
  %515 = vst [vmem:[#allocation2 + $0x70] sm:$0xff] %v472
  %516 = vst [vmem:[#allocation2 + $0x78] sm:$0xff] %v389
  %517 = vst [vmem:[#allocation2 + $0x80] sm:$0xff] %v391
  %518 = vst [vmem:[#allocation2 + $0x88] sm:$0xff] %v475
  %519 = vst [vmem:[#allocation2 + $0x90] sm:$0xff] %v395
  %520 = vst [vmem:[#allocation2 + $0x98] sm:$0xff] %v397
  %521 = vst [vmem:[#allocation2 + $0xa0] sm:$0xff] %v480
  %522 = vst [vmem:[#allocation2 + $0xa8] sm:$0xff] %v399
  %523 = vst [vmem:[#allocation2 + $0xb0] sm:$0xff] %v401
  %524 = vst [vmem:[#allocation2 + $0xb8] sm:$0xff] %v483
  %525 = vst [vmem:[#allocation2 + $0xc0] sm:$0xff] %v405
  %526 = vst [vmem:[#allocation2 + $0xc8] sm:$0xff] %v407
  %527 = vst [vmem:[#allocation2 + $0xd0] sm:$0xff] %v488
  %528 = vst [vmem:[#allocation2 + $0xd8] sm:$0xff] %v409
  %529 = vst [vmem:[#allocation2 + $0xe0] sm:$0xff] %v411
  %530 = vst [vmem:[#allocation2 + $0xe8] sm:$0xff] %v491
  %531 = vst [vmem:[#allocation2 + $0xf0] sm:$0xff] %v415
  %532 = vst [vmem:[#allocation2 + $0xf8] sm:$0xff] %v417
  %533 = vst [vmem:[#allocation2 + $0x100] sm:$0xff] %v496
  %v534 = vld [vmem:[%s8] sm:$0xff]
  %v535 = vld [vmem:[%s8 + $0x8] sm:$0xf]
  %v536 = vld [vmem:[%s8 + $0xc] sm:$0xff]
  %v537 = vld [vmem:[%s8 + $0x14] sm:$0xf]
  %v538 = vld [vmem:[%s8 + $0x18] sm:$0xff]
  %v539 = vld [vmem:[%s8 + $0x20] sm:$0xf]
  %v540 = vld [vmem:[%s8 + $0x24] sm:$0xff]
  %v541 = vld [vmem:[%s8 + $0x2c] sm:$0xf]
  %v542 = vld [vmem:[%s10] sm:$0x7]
  %v544 = vlaneseq
  %v545 = vshrl.u32 %v544, 7
  %v546 = vsub.s32 0, %v545
  %v547 = vrot.slane %v542, %v546
  %v548 = vlaneseq
  %v549 = vshrl.u32 %v548, 7
  %v550 = vsub.s32 1, %v549
  %v551 = vrot.slane %v542, %v550
  %v552 = vlaneseq
  %v553 = vshrl.u32 %v552, 7
  %v554 = vsub.s32 2, %v553
  %v555 = vrot.slane %v542, %v554
  %v567 = vunpack.c.l.b16 %v534
  %v568 = vunpack.c.h.b16 %v534
  %v569 = vunpack.c.l.b16 %v535
  %v570 = vunpack.c.l.b16 %v536
  %v571 = vunpack.c.h.b16 %v536
  %v572 = vunpack.c.l.b16 %v537
  %v573 = vunpack.c.l.b16 %v538
  %v574 = vunpack.c.h.b16 %v538
  %v575 = vunpack.c.l.b16 %v539
  %v576 = vunpack.c.l.b16 %v540
  %v577 = vunpack.c.h.b16 %v540
  %v578 = vunpack.c.l.b16 %v541
  %v579 = vpack.c.b16 %v570, %v567
  %v580 = vpack.c.b16 %v571, %v568
  %v581 = vpack.c.b16 %v572, %v569
  %v582 = vpack.c.b16 %v576, %v573
  %v583 = vpack.c.b16 %v577, %v574
  %v584 = vpack.c.b16 %v578, %v575
  %591 = vmatprep.subr.bf16.mxu0 %v580
  %592 = vmatpush1.bf16.msra.mxu0 %v579
  %593 = vmatprep.subr.bf16.mxu0 %v583
  %594 = vmatpush1.bf16.msra.mxu0 %v582
  %595 = vmatprep.subr.bf16.mxu0 0
  %596 = vmatpush1.bf16.msra.mxu0 0
  %597 = vmatprep.subr.bf16.mxu0 0
  %598 = vmatpush1.bf16.msra.mxu0 0
  %599 = vmatprep.subr.bf16.mxu0 0
  %600 = vmatpush1.bf16.msra.mxu0 0
  %601 = vmatprep.subr.bf16.mxu0 0
  %602 = vmatpush1.bf16.msra.mxu0 0
  %603 = vmatprep.subr.bf16.mxu0 0
  %604 = vmatpush1.bf16.msra.mxu0 0
  %605 = vmatprep.subr.bf16.mxu0 0
  %606 = vmatpush1.bf16.msra.mxu0 0
  %607 = vmatprep.subr.bf16.mxu0 0
  %608 = vmatpush1.bf16.msra.mxu0 0
  %609 = vmatprep.subr.bf16.mxu0 0
  %610 = vmatpush1.bf16.msra.mxu0 0
  %611 = vmatprep.subr.bf16.mxu0 0
  %612 = vmatpush1.bf16.msra.mxu0 0
  %613 = vmatprep.subr.bf16.mxu0 0
  %614 = vmatpush1.bf16.msra.mxu0 0
  %615 = vmatprep.subr.bf16.mxu0 0
  %616 = vmatpush1.bf16.msra.mxu0 0
  %617 = vmatprep.subr.bf16.mxu0 0
  %618 = vmatpush1.bf16.msra.mxu0 0
  %619 = vmatprep.subr.bf16.mxu0 0
  %620 = vmatpush1.bf16.msra.mxu0 0
  %621 = vmatprep.subr.bf16.mxu0 0
  %622 = vmatpush1.bf16.msra.mxu0 0
  %623 = vmatprep.mubr.bf16.mxu0 0
  %624 = vmatmul.mubr.bf16.gmra.mrb[0].mxu0 %v313
  %v625 = vpop.f32.mrb[0].mxu0
  %v626 = vpop.f32.mrb[0].mxu0
  %v627 = vpop.f32.mrb[0].mxu0
  %v628 = vadd.f32 %v547, %v627
  %v629 = vpop.f32.mrb[0].mxu0
  %v630 = vadd.f32 %v551, %v629
  %631 = vmatprep.mubr.bf16.mxu0 0
  %632 = vmatmul.mubr.bf16.gmra.mrb[0].mxu0 %v316
  %v633 = vpop.f32.mrb[0].mxu0
  %v634 = vadd.f32 %v547, %v633
  %v635 = vpop.f32.mrb[0].mxu0
  %v636 = vadd.f32 %v551, %v635
  %v637 = vpop.f32.mrb[0].mxu0
  %v638 = vadd.f32 %v547, %v637
  %v639 = vpop.f32.mrb[0].mxu0
  %v640 = vadd.f32 %v551, %v639
  %641 = vmatprep.mubr.bf16.mxu0 0
  %642 = vmatmul.mubr.bf16.gmra.mrb[0].mxu0 %v319
  %v643 = vpop.f32.mrb[0].mxu0
  %v644 = vadd.f32 %v547, %v643
  %v645 = vpop.f32.mrb[0].mxu0
  %v646 = vadd.f32 %v551, %v645
  %v647 = vpop.f32.mrb[0].mxu0
  %v648 = vadd.f32 %v547, %v647
  %v649 = vpop.f32.mrb[0].mxu0
  %v650 = vadd.f32 %v551, %v649
  %651 = vmatprep.mubr.bf16.mxu0 0
  %652 = vmatmul.mubr.bf16.gmra.mrb[0].mxu0 %v322
  %v653 = vpop.f32.mrb[0].mxu0
  %v654 = vadd.f32 %v547, %v653
  %v655 = vpop.f32.mrb[0].mxu0
  %v656 = vadd.f32 %v551, %v655
  %v657 = vpop.f32.mrb[0].mxu0
  %v658 = vadd.f32 %v547, %v657
  %v659 = vpop.f32.mrb[0].mxu0
  %v660 = vadd.f32 %v551, %v659
  %661 = vmatprep.mubr.bf16.mxu0 0
  %662 = vmatmul.mubr.bf16.gmra.mrb[0].mxu0 %v325
  %v663 = vpop.f32.mrb[0].mxu0
  %v664 = vadd.f32 %v547, %v663
  %v665 = vpop.f32.mrb[0].mxu0
  %v666 = vadd.f32 %v551, %v665
  %v667 = vpop.f32.mrb[0].mxu0
  %v668 = vadd.f32 %v547, %v667
  %v669 = vpop.f32.mrb[0].mxu0
  %v670 = vadd.f32 %v551, %v669
  %671 = vmatprep.mubr.bf16.mxu0 0
  %672 = vmatmul.mubr.bf16.gmra.mrb[0].mxu0 %v328
  %v673 = vpop.f32.mrb[0].mxu0
  %v674 = vadd.f32 %v547, %v673
  %v675 = vpop.f32.mrb[0].mxu0
  %v676 = vadd.f32 %v551, %v675
  %v677 = vpop.f32.mrb[0].mxu0
  %v678 = vpop.f32.mrb[0].mxu0
  %679 = vdwg.mxu0
  %680 = vmatprep.subr.bf16.mxu0 0
  %681 = vmatpush1.bf16.msra.mxu0 %v581
  %682 = vmatprep.subr.bf16.mxu0 0
  %683 = vmatpush1.bf16.msra.mxu0 %v584
  %684 = vmatprep.subr.bf16.mxu0 0
  %685 = vmatpush1.bf16.msra.mxu0 0
  %686 = vmatprep.subr.bf16.mxu0 0
  %687 = vmatpush1.bf16.msra.mxu0 0
  %688 = vmatprep.subr.bf16.mxu0 0
  %689 = vmatpush1.bf16.msra.mxu0 0
  %690 = vmatprep.subr.bf16.mxu0 0
  %691 = vmatpush1.bf16.msra.mxu0 0
  %692 = vmatprep.subr.bf16.mxu0 0
  %693 = vmatpush1.bf16.msra.mxu0 0
  %694 = vmatprep.subr.bf16.mxu0 0
  %695 = vmatpush1.bf16.msra.mxu0 0
  %696 = vmatprep.subr.bf16.mxu0 0
  %697 = vmatpush1.bf16.msra.mxu0 0
  %698 = vmatprep.subr.bf16.mxu0 0
  %699 = vmatpush1.bf16.msra.mxu0 0
  %700 = vmatprep.subr.bf16.mxu0 0
  %701 = vmatpush1.bf16.msra.mxu0 0
  %702 = vmatprep.subr.bf16.mxu0 0
  %703 = vmatpush1.bf16.msra.mxu0 0
  %704 = vmatprep.subr.bf16.mxu0 0
  %705 = vmatpush1.bf16.msra.mxu0 0
  %706 = vmatprep.subr.bf16.mxu0 0
  %707 = vmatpush1.bf16.msra.mxu0 0
  %708 = vmatprep.subr.bf16.mxu0 0
  %709 = vmatpush1.bf16.msra.mxu0 0
  %710 = vmatprep.subr.bf16.mxu0 0
  %711 = vmatpush1.bf16.msra.mxu0 0
  %712 = vmatprep.mubr.bf16.mxu0 0
  %713 = vmatmul.mubr.bf16.gmra.mrb[0].mxu0 %v313
  %v714 = vpop.f32.mrb[0].mxu0
  %v715 = vpop.f32.mrb[0].mxu0
  %v716 = vpop.f32.mrb[0].mxu0
  %v717 = vadd.f32 %v555, %v716
  %v718 = vpop.f32.mrb[0].mxu0
  %719 = vmatprep.mubr.bf16.mxu0 0
  %720 = vmatmul.mubr.bf16.gmra.mrb[0].mxu0 %v316
  %v721 = vpop.f32.mrb[0].mxu0
  %v722 = vadd.f32 %v555, %v721
  %v723 = vpop.f32.mrb[0].mxu0
  %v724 = vpop.f32.mrb[0].mxu0
  %v725 = vadd.f32 %v555, %v724
  %v726 = vpop.f32.mrb[0].mxu0
  %727 = vmatprep.mubr.bf16.mxu0 0
  %728 = vmatmul.mubr.bf16.gmra.mrb[0].mxu0 %v319
  %v729 = vpop.f32.mrb[0].mxu0
  %v730 = vadd.f32 %v555, %v729
  %v731 = vpop.f32.mrb[0].mxu0
  %v732 = vpop.f32.mrb[0].mxu0
  %v733 = vadd.f32 %v555, %v732
  %v734 = vpop.f32.mrb[0].mxu0
  %735 = vmatprep.mubr.bf16.mxu0 0
  %736 = vmatmul.mubr.bf16.gmra.mrb[0].mxu0 %v322
  %v737 = vpop.f32.mrb[0].mxu0
  %v738 = vadd.f32 %v555, %v737
  %v739 = vpop.f32.mrb[0].mxu0
  %v740 = vpop.f32.mrb[0].mxu0
  %v741 = vadd.f32 %v555, %v740
  %v742 = vpop.f32.mrb[0].mxu0
  %743 = vmatprep.mubr.bf16.mxu0 0
  %744 = vmatmul.mubr.bf16.gmra.mrb[0].mxu0 %v325
  %v745 = vpop.f32.mrb[0].mxu0
  %v746 = vadd.f32 %v555, %v745
  %v747 = vpop.f32.mrb[0].mxu0
  %v748 = vpop.f32.mrb[0].mxu0
  %v749 = vadd.f32 %v555, %v748
  %v750 = vpop.f32.mrb[0].mxu0
  %751 = vmatprep.mubr.bf16.mxu0 0
  %752 = vmatmul.mubr.bf16.gmra.mrb[0].mxu0 %v328
  %v753 = vpop.f32.mrb[0].mxu0
  %v754 = vadd.f32 %v555, %v753
  %v755 = vpop.f32.mrb[0].mxu0
  %v756 = vpop.f32.mrb[0].mxu0
  %v757 = vpop.f32.mrb[0].mxu0
  %758 = vdwg.mxu0
  %759 = vst [vmem:[#allocation3] sm:$0xff] %v628
  %760 = vst [vmem:[#allocation3 + $0x8] sm:$0xff] %v630
  %761 = vst [vmem:[#allocation3 + $0x10] sm:$0xff] %v717
  %762 = vst [vmem:[#allocation3 + $0x18] sm:$0xff] %v634
  %763 = vst [vmem:[#allocation3 + $0x20] sm:$0xff] %v636
  %764 = vst [vmem:[#allocation3 + $0x28] sm:$0xff] %v722
  %765 = vst [vmem:[#allocation3 + $0x30] sm:$0xff] %v638
  %766 = vst [vmem:[#allocation3 + $0x38] sm:$0xff] %v640
  %767 = vst [vmem:[#allocation3 + $0x40] sm:$0xff] %v725
  %768 = vst [vmem:[#allocation3 + $0x48] sm:$0xff] %v644
  %769 = vst [vmem:[#allocation3 + $0x50] sm:$0xff] %v646
  %770 = vst [vmem:[#allocation3 + $0x58] sm:$0xff] %v730
  %771 = vst [vmem:[#allocation3 + $0x60] sm:$0xff] %v648
  %772 = vst [vmem:[#allocation3 + $0x68] sm:$0xff] %v650
  %773 = vst [vmem:[#allocation3 + $0x70] sm:$0xff] %v733
  %774 = vst [vmem:[#allocation3 + $0x78] sm:$0xff] %v654
  %775 = vst [vmem:[#allocation3 + $0x80] sm:$0xff] %v656
  %776 = vst [vmem:[#allocation3 + $0x88] sm:$0xff] %v738
  %777 = vst [vmem:[#allocation3 + $0x90] sm:$0xff] %v658
  %778 = vst [vmem:[#allocation3 + $0x98] sm:$0xff] %v660
  %779 = vst [vmem:[#allocation3 + $0xa0] sm:$0xff] %v741
  %780 = vst [vmem:[#allocation3 + $0xa8] sm:$0xff] %v664
  %781 = vst [vmem:[#allocation3 + $0xb0] sm:$0xff] %v666
  %782 = vst [vmem:[#allocation3 + $0xb8] sm:$0xff] %v746
  %783 = vst [vmem:[#allocation3 + $0xc0] sm:$0xff] %v668
  %784 = vst [vmem:[#allocation3 + $0xc8] sm:$0xff] %v670
  %785 = vst [vmem:[#allocation3 + $0xd0] sm:$0xff] %v749
  %786 = vst [vmem:[#allocation3 + $0xd8] sm:$0xff] %v674
  %787 = vst [vmem:[#allocation3 + $0xe0] sm:$0xff] %v676
  %788 = vst [vmem:[#allocation3 + $0xe8] sm:$0xff] %v754
  %v789 = vld [vmem:[%s5] sm:$0xff]
  %v790 = vld [vmem:[%s5 + $0x8] sm:$0xf]
  %v791 = vld [vmem:[%s5 + $0xc] sm:$0xff]
  %v792 = vld [vmem:[%s5 + $0x14] sm:$0xf]
  %v793 = vld [vmem:[%s5 + $0x18] sm:$0xff]
  %v794 = vld [vmem:[%s5 + $0x20] sm:$0xf]
  %v795 = vld [vmem:[%s5 + $0x24] sm:$0xff]
  %v796 = vld [vmem:[%s5 + $0x2c] sm:$0xf]
  %v797 = vld [vmem:[%s5 + $0x30] sm:$0xff]
  %v798 = vld [vmem:[%s5 + $0x38] sm:$0xf]
  %v799 = vld [vmem:[%s5 + $0x3c] sm:$0xff]
  %v800 = vld [vmem:[%s5 + $0x44] sm:$0xf]
  %v801 = vld [vmem:[%s5 + $0x48] sm:$0xff]
  %v802 = vld [vmem:[%s5 + $0x50] sm:$0xf]
  %v803 = vld [vmem:[%s5 + $0x54] sm:$0xff]
  %v804 = vld [vmem:[%s5 + $0x5c] sm:$0xf]
  %v805 = vld [vmem:[%s5 + $0x60] sm:$0xff]
  %v806 = vld [vmem:[%s5 + $0x68] sm:$0xf]
  %v807 = vld [vmem:[%s5 + $0x6c] sm:$0xff]
  %v808 = vld [vmem:[%s5 + $0x74] sm:$0xf]
  %v809 = vld [vmem:[%s5 + $0x78] sm:$0xff]
  %v810 = vld [vmem:[%s5 + $0x80] sm:$0xf]
  %v811 = vld [vmem:[%s5 + $0x84] sm:$0xff]
  %v812 = vld [vmem:[%s5 + $0x8c] sm:$0xf]
  %v813 = vld [vmem:[%s5 + $0x90] sm:$0xff]
  %v814 = vld [vmem:[%s5 + $0x98] sm:$0xf]
  %v815 = vld [vmem:[%s5 + $0x9c] sm:$0xff]
  %v816 = vld [vmem:[%s5 + $0xa4] sm:$0xf]
  %v817 = vld [vmem:[%s5 + $0xa8] sm:$0xff]
  %v818 = vld [vmem:[%s5 + $0xb0] sm:$0xf]
  %v819 = vld [vmem:[%s5 + $0xb4] sm:$0xff]
  %v820 = vld [vmem:[%s5 + $0xbc] sm:$0xf]
  %v821 = vld [vmem:[%s7] sm:$0x1]
  %v854 = vunpack.c.l.b16 %v789
  %v855 = vunpack.c.h.b16 %v789
  %v856 = vunpack.c.l.b16 %v790
  %v857 = vunpack.c.l.b16 %v791
  %v858 = vunpack.c.h.b16 %v791
  %v859 = vunpack.c.l.b16 %v792
  %v860 = vunpack.c.l.b16 %v793
  %v861 = vunpack.c.h.b16 %v793
  %v862 = vunpack.c.l.b16 %v794
  %v863 = vunpack.c.l.b16 %v795
  %v864 = vunpack.c.h.b16 %v795
  %v865 = vunpack.c.l.b16 %v796
  %v866 = vunpack.c.l.b16 %v797
  %v867 = vunpack.c.h.b16 %v797
  %v868 = vunpack.c.l.b16 %v798
  %v869 = vunpack.c.l.b16 %v799
  %v870 = vunpack.c.h.b16 %v799
  %v871 = vunpack.c.l.b16 %v800
  %v872 = vunpack.c.l.b16 %v801
  %v873 = vunpack.c.h.b16 %v801
  %v874 = vunpack.c.l.b16 %v802
  %v875 = vunpack.c.l.b16 %v803
  %v876 = vunpack.c.h.b16 %v803
  %v877 = vunpack.c.l.b16 %v804
  %v878 = vunpack.c.l.b16 %v805
  %v879 = vunpack.c.h.b16 %v805
  %v880 = vunpack.c.l.b16 %v806
  %v881 = vunpack.c.l.b16 %v807
  %v882 = vunpack.c.h.b16 %v807
  %v883 = vunpack.c.l.b16 %v808
  %v884 = vunpack.c.l.b16 %v809
  %v885 = vunpack.c.h.b16 %v809
  %v886 = vunpack.c.l.b16 %v810
  %v887 = vunpack.c.l.b16 %v811
  %v888 = vunpack.c.h.b16 %v811
  %v889 = vunpack.c.l.b16 %v812
  %v890 = vunpack.c.l.b16 %v813
  %v891 = vunpack.c.h.b16 %v813
  %v892 = vunpack.c.l.b16 %v814
  %v893 = vunpack.c.l.b16 %v815
  %v894 = vunpack.c.h.b16 %v815
  %v895 = vunpack.c.l.b16 %v816
  %v896 = vunpack.c.l.b16 %v817
  %v897 = vunpack.c.h.b16 %v817
  %v898 = vunpack.c.l.b16 %v818
  %v899 = vunpack.c.l.b16 %v819
  %v900 = vunpack.c.h.b16 %v819
  %v901 = vunpack.c.l.b16 %v820
  %v902 = vpack.c.b16 %v857, %v854
  %v903 = vpack.c.b16 %v858, %v855
  %v904 = vpack.c.b16 %v859, %v856
  %v905 = vpack.c.b16 %v863, %v860
  %v906 = vpack.c.b16 %v864, %v861
  %v907 = vpack.c.b16 %v865, %v862
  %v908 = vpack.c.b16 %v869, %v866
  %v909 = vpack.c.b16 %v870, %v867
  %v910 = vpack.c.b16 %v871, %v868
  %v911 = vpack.c.b16 %v875, %v872
  %v912 = vpack.c.b16 %v876, %v873
  %v913 = vpack.c.b16 %v877, %v874
  %v914 = vpack.c.b16 %v881, %v878
  %v915 = vpack.c.b16 %v882, %v879
  %v916 = vpack.c.b16 %v883, %v880
  %v917 = vpack.c.b16 %v887, %v884
  %v918 = vpack.c.b16 %v888, %v885
  %v919 = vpack.c.b16 %v889, %v886
  %v920 = vpack.c.b16 %v893, %v890
  %v921 = vpack.c.b16 %v894, %v891
  %v922 = vpack.c.b16 %v895, %v892
  %v923 = vpack.c.b16 %v899, %v896
  %v924 = vpack.c.b16 %v900, %v897
  %v925 = vpack.c.b16 %v901, %v898
  %950 = vmatprep.subr.bf16.mxu0 %v903
  %951 = vmatpush1.bf16.msra.mxu0 %v902
  %952 = vmatprep.subr.bf16.mxu0 %v906
  %953 = vmatpush1.bf16.msra.mxu0 %v905
  %954 = vmatprep.subr.bf16.mxu0 %v909
  %955 = vmatpush1.bf16.msra.mxu0 %v908
  %956 = vmatprep.subr.bf16.mxu0 %v912
  %957 = vmatpush1.bf16.msra.mxu0 %v911
  %958 = vmatprep.subr.bf16.mxu0 %v915
  %959 = vmatpush1.bf16.msra.mxu0 %v914
  %960 = vmatprep.subr.bf16.mxu0 %v918
  %961 = vmatpush1.bf16.msra.mxu0 %v917
  %962 = vmatprep.subr.bf16.mxu0 %v921
  %963 = vmatpush1.bf16.msra.mxu0 %v920
  %964 = vmatprep.subr.bf16.mxu0 %v924
  %965 = vmatpush1.bf16.msra.mxu0 %v923
  %966 = vmatprep.subr.bf16.mxu0 0
  %967 = vmatpush1.bf16.msra.mxu0 0
  %968 = vmatprep.subr.bf16.mxu0 0
  %969 = vmatpush1.bf16.msra.mxu0 0
  %970 = vmatprep.subr.bf16.mxu0 0
  %971 = vmatpush1.bf16.msra.mxu0 0
  %972 = vmatprep.subr.bf16.mxu0 0
  %973 = vmatpush1.bf16.msra.mxu0 0
  %974 = vmatprep.subr.bf16.mxu0 0
  %975 = vmatpush1.bf16.msra.mxu0 0
  %976 = vmatprep.subr.bf16.mxu0 0
  %977 = vmatpush1.bf16.msra.mxu0 0
  %978 = vmatprep.subr.bf16.mxu0 0
  %979 = vmatpush1.bf16.msra.mxu0 0
  %980 = vmatprep.subr.bf16.mxu0 0
  %981 = vmatpush1.bf16.msra.mxu0 0
  %982 = vmatprep.mubr.bf16.mxu0 0
  %983 = vmatmul.mubr.bf16.gmra.mrb[0].mxu0 0
  %v984 = vpop.f32.mrb[0].mxu0
  %v985 = vadd.f32 0.0, %v984
  %v986 = vpop.f32.mrb[0].mxu0
  %v987 = vadd.f32 0.0, %v986
  %v988 = vpop.f32.mrb[0].mxu0
  %v989 = vpop.f32.mrb[0].mxu0
  %990 = vdwg.mxu0
  %991 = vmatprep.subr.bf16.mxu0 0
  %992 = vmatpush1.bf16.msra.mxu0 %v904
  %993 = vmatprep.subr.bf16.mxu0 0
  %994 = vmatpush1.bf16.msra.mxu0 %v907
  %995 = vmatprep.subr.bf16.mxu0 0
  %996 = vmatpush1.bf16.msra.mxu0 %v910
  %997 = vmatprep.subr.bf16.mxu0 0
  %998 = vmatpush1.bf16.msra.mxu0 %v913
  %999 = vmatprep.subr.bf16.mxu0 0
  %1000 = vmatpush1.bf16.msra.mxu0 %v916
  %1001 = vmatprep.subr.bf16.mxu0 0
  %1002 = vmatpush1.bf16.msra.mxu0 %v919
  %1003 = vmatprep.subr.bf16.mxu0 0
  %1004 = vmatpush1.bf16.msra.mxu0 %v922
  %1005 = vmatprep.subr.bf16.mxu0 0
  %1006 = vmatpush1.bf16.msra.mxu0 %v925
  %1007 = vmatprep.subr.bf16.mxu0 0
  %1008 = vmatpush1.bf16.msra.mxu0 0
  %1009 = vmatprep.subr.bf16.mxu0 0
  %1010 = vmatpush1.bf16.msra.mxu0 0
  %1011 = vmatprep.subr.bf16.mxu0 0
  %1012 = vmatpush1.bf16.msra.mxu0 0
  %1013 = vmatprep.subr.bf16.mxu0 0
  %1014 = vmatpush1.bf16.msra.mxu0 0
  %1015 = vmatprep.subr.bf16.mxu0 0
  %1016 = vmatpush1.bf16.msra.mxu0 0
  %1017 = vmatprep.subr.bf16.mxu0 0
  %1018 = vmatpush1.bf16.msra.mxu0 0
  %1019 = vmatprep.subr.bf16.mxu0 0
  %1020 = vmatpush1.bf16.msra.mxu0 0
  %1021 = vmatprep.subr.bf16.mxu0 0
  %1022 = vmatpush1.bf16.msra.mxu0 0
  %1023 = vmatprep.mubr.bf16.mxu0 0
  %1024 = vmatmul.mubr.bf16.gmra.mrb[0].mxu0 0
  %v1025 = vpop.f32.mrb[0].mxu0
  %v1026 = vadd.f32 0.0, %v1025
  %v1027 = vpop.f32.mrb[0].mxu0
  %v1028 = vpop.f32.mrb[0].mxu0
  %v1029 = vpop.f32.mrb[0].mxu0
  %1030 = vdwg.mxu0
  %v1031 = vld [vmem:[#allocation2] sm:$0xff]
  %v1032 = vld [vmem:[#allocation2 + $0x8] sm:$0xff]
  %v1033 = vld [vmem:[#allocation2 + $0x10] sm:$0xff]
  %v1034 = vadd.f32 %v1031, %v985
  %v1035 = vxor.u32 %v1034, 2147483648
  %v1036 = vmul.f32 %v1035, 1.442695
  %v1037 = vpow.pop %v1036
  %v1038 = vadd.f32 %v1037, 1.0
  %v1039 = vrcp.pop %v1038
  %v1040 = vmul.f32 1.0, %v1039
  %v1041 = vadd.f32 %v1032, %v987
  %v1042 = vxor.u32 %v1041, 2147483648
  %v1043 = vmul.f32 %v1042, 1.442695
  %v1044 = vpow.pop %v1043
  %v1045 = vadd.f32 %v1044, 1.0
  %v1046 = vrcp.pop %v1045
  %v1047 = vmul.f32 1.0, %v1046
  %v1049 = vlaneseq
  %v1050 = vshrl.u32 %v1049, 7
  %v1051 = vsub.s32 0, %v1050
  %v1052 = vrot.slane %v821, %v1051
  %v1054 = vadd.f32 %v1026, %v1052
  %v1055 = vmul.f32 %v1040, %v1054
  %v1056 = vadd.f32 %v1033, %v1055
  %v1057 = vtanh.pop %v1056
  %v1058 = vsub.f32 1.0, %v1047
  %v1059 = vmul.f32 %v1058, %v1057
  %v1060 = vmul.f32 %v1047, 0.0
  %v1061 = vadd.f32 %v1059, %v1060
  %v1062 = vpack.c.bf16 %v1061, %v1061
  %1063 = vmatprep.subr.bf16.mxu0 %v903
  %1064 = vmatpush1.bf16.msra.mxu0 %v902
  %1065 = vmatprep.subr.bf16.mxu0 %v906
  %1066 = vmatpush1.bf16.msra.mxu0 %v905
  %1067 = vmatprep.subr.bf16.mxu0 %v909
  %1068 = vmatpush1.bf16.msra.mxu0 %v908
  %1069 = vmatprep.subr.bf16.mxu0 %v912
  %1070 = vmatpush1.bf16.msra.mxu0 %v911
  %1071 = vmatprep.subr.bf16.mxu0 %v915
  %1072 = vmatpush1.bf16.msra.mxu0 %v914
  %1073 = vmatprep.subr.bf16.mxu0 %v918
  %1074 = vmatpush1.bf16.msra.mxu0 %v917
  %1075 = vmatprep.subr.bf16.mxu0 %v921
  %1076 = vmatpush1.bf16.msra.mxu0 %v920
  %1077 = vmatprep.subr.bf16.mxu0 %v924
  %1078 = vmatpush1.bf16.msra.mxu0 %v923
  %1079 = vmatprep.subr.bf16.mxu0 0
  %1080 = vmatpush1.bf16.msra.mxu0 0
  %1081 = vmatprep.subr.bf16.mxu0 0
  %1082 = vmatpush1.bf16.msra.mxu0 0
  %1083 = vmatprep.subr.bf16.mxu0 0
  %1084 = vmatpush1.bf16.msra.mxu0 0
  %1085 = vmatprep.subr.bf16.mxu0 0
  %1086 = vmatpush1.bf16.msra.mxu0 0
  %1087 = vmatprep.subr.bf16.mxu0 0
  %1088 = vmatpush1.bf16.msra.mxu0 0
  %1089 = vmatprep.subr.bf16.mxu0 0
  %1090 = vmatpush1.bf16.msra.mxu0 0
  %1091 = vmatprep.subr.bf16.mxu0 0
  %1092 = vmatpush1.bf16.msra.mxu0 0
  %1093 = vmatprep.subr.bf16.mxu0 0
  %1094 = vmatpush1.bf16.msra.mxu0 0
  %1095 = vmatprep.mubr.bf16.mxu0 0
  %1096 = vmatmul.mubr.bf16.gmra.mrb[0].mxu0 %v1062
  %v1097 = vpop.f32.mrb[0].mxu0
  %v1098 = vadd.f32 0.0, %v1097
  %v1099 = vpop.f32.mrb[0].mxu0
  %v1100 = vadd.f32 0.0, %v1099
  %v1101 = vpop.f32.mrb[0].mxu0
  %v1102 = vpop.f32.mrb[0].mxu0
  %1103 = vdwg.mxu0
  %1104 = vmatprep.subr.bf16.mxu0 0
  %1105 = vmatpush1.bf16.msra.mxu0 %v904
  %1106 = vmatprep.subr.bf16.mxu0 0
  %1107 = vmatpush1.bf16.msra.mxu0 %v907
  %1108 = vmatprep.subr.bf16.mxu0 0
  %1109 = vmatpush1.bf16.msra.mxu0 %v910
  %1110 = vmatprep.subr.bf16.mxu0 0
  %1111 = vmatpush1.bf16.msra.mxu0 %v913
  %1112 = vmatprep.subr.bf16.mxu0 0
  %1113 = vmatpush1.bf16.msra.mxu0 %v916
  %1114 = vmatprep.subr.bf16.mxu0 0
  %1115 = vmatpush1.bf16.msra.mxu0 %v919
  %1116 = vmatprep.subr.bf16.mxu0 0
  %1117 = vmatpush1.bf16.msra.mxu0 %v922
  %1118 = vmatprep.subr.bf16.mxu0 0
  %1119 = vmatpush1.bf16.msra.mxu0 %v925
  %1120 = vmatprep.subr.bf16.mxu0 0
  %1121 = vmatpush1.bf16.msra.mxu0 0
  %1122 = vmatprep.subr.bf16.mxu0 0
  %1123 = vmatpush1.bf16.msra.mxu0 0
  %1124 = vmatprep.subr.bf16.mxu0 0
  %1125 = vmatpush1.bf16.msra.mxu0 0
  %1126 = vmatprep.subr.bf16.mxu0 0
  %1127 = vmatpush1.bf16.msra.mxu0 0
  %1128 = vmatprep.subr.bf16.mxu0 0
  %1129 = vmatpush1.bf16.msra.mxu0 0
  %1130 = vmatprep.subr.bf16.mxu0 0
  %1131 = vmatpush1.bf16.msra.mxu0 0
  %1132 = vmatprep.subr.bf16.mxu0 0
  %1133 = vmatpush1.bf16.msra.mxu0 0
  %1134 = vmatprep.subr.bf16.mxu0 0
  %1135 = vmatpush1.bf16.msra.mxu0 0
  %1136 = vmatprep.mubr.bf16.mxu0 0
  %1137 = vmatmul.mubr.bf16.gmra.mrb[0].mxu0 %v1062
  %v1138 = vpop.f32.mrb[0].mxu0
  %v1139 = vadd.f32 0.0, %v1138
  %v1140 = vpop.f32.mrb[0].mxu0
  %v1141 = vpop.f32.mrb[0].mxu0
  %v1142 = vpop.f32.mrb[0].mxu0
  %1143 = vdwg.mxu0
  %s1144 = scalar_lea.vmem [#allocation2], 24
  %v1145 = vld [vmem:[%s1144] sm:$0xff]
  %v1146 = vld [vmem:[%s1144 + $0x8] sm:$0xff]
  %v1147 = vld [vmem:[%s1144 + $0x10] sm:$0xff]
  %v1148 = vadd.f32 %v1145, %v1098
  %v1149 = vxor.u32 %v1148, 2147483648
  %v1150 = vmul.f32 %v1149, 1.442695
  %v1151 = vpow.pop %v1150
  %v1152 = vadd.f32 %v1151, 1.0
  %v1153 = vrcp.pop %v1152
  %v1154 = vmul.f32 1.0, %v1153
  %v1155 = vadd.f32 %v1146, %v1100
  %v1156 = vxor.u32 %v1155, 2147483648
  %v1157 = vmul.f32 %v1156, 1.442695
  %v1158 = vpow.pop %v1157
  %v1159 = vadd.f32 %v1158, 1.0
  %v1160 = vrcp.pop %v1159
  %v1161 = vmul.f32 1.0, %v1160
  %v1162 = vadd.f32 %v1139, %v1052
  %v1163 = vmul.f32 %v1154, %v1162
  %v1164 = vadd.f32 %v1147, %v1163
  %v1165 = vtanh.pop %v1164
  %v1166 = vsub.f32 1.0, %v1161
  %v1167 = vmul.f32 %v1166, %v1165
  %v1168 = vmul.f32 %v1161, %v1061
  %v1169 = vadd.f32 %v1167, %v1168
  %v1170 = vpack.c.bf16 %v1169, %v1169
  %1171 = vmatprep.subr.bf16.mxu0 %v903
  %1172 = vmatpush1.bf16.msra.mxu0 %v902
  %1173 = vmatprep.subr.bf16.mxu0 %v906
  %1174 = vmatpush1.bf16.msra.mxu0 %v905
  %1175 = vmatprep.subr.bf16.mxu0 %v909
  %1176 = vmatpush1.bf16.msra.mxu0 %v908
  %1177 = vmatprep.subr.bf16.mxu0 %v912
  %1178 = vmatpush1.bf16.msra.mxu0 %v911
  %1179 = vmatprep.subr.bf16.mxu0 %v915
  %1180 = vmatpush1.bf16.msra.mxu0 %v914
  %1181 = vmatprep.subr.bf16.mxu0 %v918
  %1182 = vmatpush1.bf16.msra.mxu0 %v917
  %1183 = vmatprep.subr.bf16.mxu0 %v921
  %1184 = vmatpush1.bf16.msra.mxu0 %v920
  %1185 = vmatprep.subr.bf16.mxu0 %v924
  %1186 = vmatpush1.bf16.msra.mxu0 %v923
  %1187 = vmatprep.subr.bf16.mxu0 0
  %1188 = vmatpush1.bf16.msra.mxu0 0
  %1189 = vmatprep.subr.bf16.mxu0 0
  %1190 = vmatpush1.bf16.msra.mxu0 0
  %1191 = vmatprep.subr.bf16.mxu0 0
  %1192 = vmatpush1.bf16.msra.mxu0 0
  %1193 = vmatprep.subr.bf16.mxu0 0
  %1194 = vmatpush1.bf16.msra.mxu0 0
  %1195 = vmatprep.subr.bf16.mxu0 0
  %1196 = vmatpush1.bf16.msra.mxu0 0
  %1197 = vmatprep.subr.bf16.mxu0 0
  %1198 = vmatpush1.bf16.msra.mxu0 0
  %1199 = vmatprep.subr.bf16.mxu0 0
  %1200 = vmatpush1.bf16.msra.mxu0 0
  %1201 = vmatprep.subr.bf16.mxu0 0
  %1202 = vmatpush1.bf16.msra.mxu0 0
  %1203 = vmatprep.mubr.bf16.mxu0 0
  %1204 = vmatmul.mubr.bf16.gmra.mrb[0].mxu0 %v1170
  %v1205 = vpop.f32.mrb[0].mxu0
  %v1206 = vadd.f32 0.0, %v1205
  %v1207 = vpop.f32.mrb[0].mxu0
  %v1208 = vadd.f32 0.0, %v1207
  %v1209 = vpop.f32.mrb[0].mxu0
  %v1210 = vpop.f32.mrb[0].mxu0
  %1211 = vdwg.mxu0
  %1212 = vmatprep.subr.bf16.mxu0 0
  %1213 = vmatpush1.bf16.msra.mxu0 %v904
  %1214 = vmatprep.subr.bf16.mxu0 0
  %1215 = vmatpush1.bf16.msra.mxu0 %v907
  %1216 = vmatprep.subr.bf16.mxu0 0
  %1217 = vmatpush1.bf16.msra.mxu0 %v910
  %1218 = vmatprep.subr.bf16.mxu0 0
  %1219 = vmatpush1.bf16.msra.mxu0 %v913
  %1220 = vmatprep.subr.bf16.mxu0 0
  %1221 = vmatpush1.bf16.msra.mxu0 %v916
  %1222 = vmatprep.subr.bf16.mxu0 0
  %1223 = vmatpush1.bf16.msra.mxu0 %v919
  %1224 = vmatprep.subr.bf16.mxu0 0
  %1225 = vmatpush1.bf16.msra.mxu0 %v922
  %1226 = vmatprep.subr.bf16.mxu0 0
  %1227 = vmatpush1.bf16.msra.mxu0 %v925
  %1228 = vmatprep.subr.bf16.mxu0 0
  %1229 = vmatpush1.bf16.msra.mxu0 0
  %1230 = vmatprep.subr.bf16.mxu0 0
  %1231 = vmatpush1.bf16.msra.mxu0 0
  %1232 = vmatprep.subr.bf16.mxu0 0
  %1233 = vmatpush1.bf16.msra.mxu0 0
  %1234 = vmatprep.subr.bf16.mxu0 0
  %1235 = vmatpush1.bf16.msra.mxu0 0
  %1236 = vmatprep.subr.bf16.mxu0 0
  %1237 = vmatpush1.bf16.msra.mxu0 0
  %1238 = vmatprep.subr.bf16.mxu0 0
  %1239 = vmatpush1.bf16.msra.mxu0 0
  %1240 = vmatprep.subr.bf16.mxu0 0
  %1241 = vmatpush1.bf16.msra.mxu0 0
  %1242 = vmatprep.subr.bf16.mxu0 0
  %1243 = vmatpush1.bf16.msra.mxu0 0
  %1244 = vmatprep.mubr.bf16.mxu0 0
  %1245 = vmatmul.mubr.bf16.gmra.mrb[0].mxu0 %v1170
  %v1246 = vpop.f32.mrb[0].mxu0
  %v1247 = vadd.f32 0.0, %v1246
  %v1248 = vpop.f32.mrb[0].mxu0
  %v1249 = vpop.f32.mrb[0].mxu0
  %v1250 = vpop.f32.mrb[0].mxu0
  %1251 = vdwg.mxu0
  %s1252 = scalar_lea.vmem [#allocation2], 48
  %v1253 = vld [vmem:[%s1252] sm:$0xff]
  %v1254 = vld [vmem:[%s1252 + $0x8] sm:$0xff]
  %v1255 = vld [vmem:[%s1252 + $0x10] sm:$0xff]
  %v1256 = vadd.f32 %v1253, %v1206
  %v1257 = vxor.u32 %v1256, 2147483648
  %v1258 = vmul.f32 %v1257, 1.442695
  %v1259 = vpow.pop %v1258
  %v1260 = vadd.f32 %v1259, 1.0
  %v1261 = vrcp.pop %v1260
  %v1262 = vmul.f32 1.0, %v1261
  %v1263 = vadd.f32 %v1254, %v1208
  %v1264 = vxor.u32 %v1263, 2147483648
  %v1265 = vmul.f32 %v1264, 1.442695
  %v1266 = vpow.pop %v1265
  %v1267 = vadd.f32 %v1266, 1.0
  %v1268 = vrcp.pop %v1267
  %v1269 = vmul.f32 1.0, %v1268
  %v1270 = vadd.f32 %v1247, %v1052
  %v1271 = vmul.f32 %v1262, %v1270
  %v1272 = vadd.f32 %v1255, %v1271
  %v1273 = vtanh.pop %v1272
  %v1274 = vsub.f32 1.0, %v1269
  %v1275 = vmul.f32 %v1274, %v1273
  %v1276 = vmul.f32 %v1269, %v1169
  %v1277 = vadd.f32 %v1275, %v1276
  %v1278 = vpack.c.bf16 %v1277, %v1277
  %1279 = vmatprep.subr.bf16.mxu0 %v903
  %1280 = vmatpush1.bf16.msra.mxu0 %v902
  %1281 = vmatprep.subr.bf16.mxu0 %v906
  %1282 = vmatpush1.bf16.msra.mxu0 %v905
  %1283 = vmatprep.subr.bf16.mxu0 %v909
  %1284 = vmatpush1.bf16.msra.mxu0 %v908
  %1285 = vmatprep.subr.bf16.mxu0 %v912
  %1286 = vmatpush1.bf16.msra.mxu0 %v911
  %1287 = vmatprep.subr.bf16.mxu0 %v915
  %1288 = vmatpush1.bf16.msra.mxu0 %v914
  %1289 = vmatprep.subr.bf16.mxu0 %v918
  %1290 = vmatpush1.bf16.msra.mxu0 %v917
  %1291 = vmatprep.subr.bf16.mxu0 %v921
  %1292 = vmatpush1.bf16.msra.mxu0 %v920
  %1293 = vmatprep.subr.bf16.mxu0 %v924
  %1294 = vmatpush1.bf16.msra.mxu0 %v923
  %1295 = vmatprep.subr.bf16.mxu0 0
  %1296 = vmatpush1.bf16.msra.mxu0 0
  %1297 = vmatprep.subr.bf16.mxu0 0
  %1298 = vmatpush1.bf16.msra.mxu0 0
  %1299 = vmatprep.subr.bf16.mxu0 0
  %1300 = vmatpush1.bf16.msra.mxu0 0
  %1301 = vmatprep.subr.bf16.mxu0 0
  %1302 = vmatpush1.bf16.msra.mxu0 0
  %1303 = vmatprep.subr.bf16.mxu0 0
  %1304 = vmatpush1.bf16.msra.mxu0 0
  %1305 = vmatprep.subr.bf16.mxu0 0
  %1306 = vmatpush1.bf16.msra.mxu0 0
  %1307 = vmatprep.subr.bf16.mxu0 0
  %1308 = vmatpush1.bf16.msra.mxu0 0
  %1309 = vmatprep.subr.bf16.mxu0 0
  %1310 = vmatpush1.bf16.msra.mxu0 0
  %1311 = vmatprep.mubr.bf16.mxu0 0
  %1312 = vmatmul.mubr.bf16.gmra.mrb[0].mxu0 %v1278
  %v1313 = vpop.f32.mrb[0].mxu0
  %v1314 = vadd.f32 0.0, %v1313
  %v1315 = vpop.f32.mrb[0].mxu0
  %v1316 = vadd.f32 0.0, %v1315
  %v1317 = vpop.f32.mrb[0].mxu0
  %v1318 = vpop.f32.mrb[0].mxu0
  %1319 = vdwg.mxu0
  %1320 = vmatprep.subr.bf16.mxu0 0
  %1321 = vmatpush1.bf16.msra.mxu0 %v904
  %1322 = vmatprep.subr.bf16.mxu0 0
  %1323 = vmatpush1.bf16.msra.mxu0 %v907
  %1324 = vmatprep.subr.bf16.mxu0 0
  %1325 = vmatpush1.bf16.msra.mxu0 %v910
  %1326 = vmatprep.subr.bf16.mxu0 0
  %1327 = vmatpush1.bf16.msra.mxu0 %v913
  %1328 = vmatprep.subr.bf16.mxu0 0
  %1329 = vmatpush1.bf16.msra.mxu0 %v916
  %1330 = vmatprep.subr.bf16.mxu0 0
  %1331 = vmatpush1.bf16.msra.mxu0 %v919
  %1332 = vmatprep.subr.bf16.mxu0 0
  %1333 = vmatpush1.bf16.msra.mxu0 %v922
  %1334 = vmatprep.subr.bf16.mxu0 0
  %1335 = vmatpush1.bf16.msra.mxu0 %v925
  %1336 = vmatprep.subr.bf16.mxu0 0
  %1337 = vmatpush1.bf16.msra.mxu0 0
  %1338 = vmatprep.subr.bf16.mxu0 0
  %1339 = vmatpush1.bf16.msra.mxu0 0
  %1340 = vmatprep.subr.bf16.mxu0 0
  %1341 = vmatpush1.bf16.msra.mxu0 0
  %1342 = vmatprep.subr.bf16.mxu0 0
  %1343 = vmatpush1.bf16.msra.mxu0 0
  %1344 = vmatprep.subr.bf16.mxu0 0
  %1345 = vmatpush1.bf16.msra.mxu0 0
  %1346 = vmatprep.subr.bf16.mxu0 0
  %1347 = vmatpush1.bf16.msra.mxu0 0
  %1348 = vmatprep.subr.bf16.mxu0 0
  %1349 = vmatpush1.bf16.msra.mxu0 0
  %1350 = vmatprep.subr.bf16.mxu0 0
  %1351 = vmatpush1.bf16.msra.mxu0 0
  %1352 = vmatprep.mubr.bf16.mxu0 0
  %1353 = vmatmul.mubr.bf16.gmra.mrb[0].mxu0 %v1278
  %v1354 = vpop.f32.mrb[0].mxu0
  %v1355 = vadd.f32 0.0, %v1354
  %v1356 = vpop.f32.mrb[0].mxu0
  %v1357 = vpop.f32.mrb[0].mxu0
  %v1358 = vpop.f32.mrb[0].mxu0
  %1359 = vdwg.mxu0
  %s1360 = scalar_lea.vmem [#allocation2], 72
  %v1361 = vld [vmem:[%s1360] sm:$0xff]
  %v1362 = vld [vmem:[%s1360 + $0x8] sm:$0xff]
  %v1363 = vld [vmem:[%s1360 + $0x10] sm:$0xff]
  %v1364 = vadd.f32 %v1361, %v1314
  %v1365 = vxor.u32 %v1364, 2147483648
  %v1366 = vmul.f32 %v1365, 1.442695
  %v1367 = vpow.pop %v1366
  %v1368 = vadd.f32 %v1367, 1.0
  %v1369 = vrcp.pop %v1368
  %v1370 = vmul.f32 1.0, %v1369
  %v1371 = vadd.f32 %v1362, %v1316
  %v1372 = vxor.u32 %v1371, 2147483648
  %v1373 = vmul.f32 %v1372, 1.442695
  %v1374 = vpow.pop %v1373
  %v1375 = vadd.f32 %v1374, 1.0
  %v1376 = vrcp.pop %v1375
  %v1377 = vmul.f32 1.0, %v1376
  %v1378 = vadd.f32 %v1355, %v1052
  %v1379 = vmul.f32 %v1370, %v1378
  %v1380 = vadd.f32 %v1363, %v1379
  %v1381 = vtanh.pop %v1380
  %v1382 = vsub.f32 1.0, %v1377
  %v1383 = vmul.f32 %v1382, %v1381
  %v1384 = vmul.f32 %v1377, %v1277
  %v1385 = vadd.f32 %v1383, %v1384
  %v1386 = vpack.c.bf16 %v1385, %v1385
  %1387 = vmatprep.subr.bf16.mxu0 %v903
  %1388 = vmatpush1.bf16.msra.mxu0 %v902
  %1389 = vmatprep.subr.bf16.mxu0 %v906
  %1390 = vmatpush1.bf16.msra.mxu0 %v905
  %1391 = vmatprep.subr.bf16.mxu0 %v909
  %1392 = vmatpush1.bf16.msra.mxu0 %v908
  %1393 = vmatprep.subr.bf16.mxu0 %v912
  %1394 = vmatpush1.bf16.msra.mxu0 %v911
  %1395 = vmatprep.subr.bf16.mxu0 %v915
  %1396 = vmatpush1.bf16.msra.mxu0 %v914
  %1397 = vmatprep.subr.bf16.mxu0 %v918
  %1398 = vmatpush1.bf16.msra.mxu0 %v917
  %1399 = vmatprep.subr.bf16.mxu0 %v921
  %1400 = vmatpush1.bf16.msra.mxu0 %v920
  %1401 = vmatprep.subr.bf16.mxu0 %v924
  %1402 = vmatpush1.bf16.msra.mxu0 %v923
  %1403 = vmatprep.subr.bf16.mxu0 0
  %1404 = vmatpush1.bf16.msra.mxu0 0
  %1405 = vmatprep.subr.bf16.mxu0 0
  %1406 = vmatpush1.bf16.msra.mxu0 0
  %1407 = vmatprep.subr.bf16.mxu0 0
  %1408 = vmatpush1.bf16.msra.mxu0 0
  %1409 = vmatprep.subr.bf16.mxu0 0
  %1410 = vmatpush1.bf16.msra.mxu0 0
  %1411 = vmatprep.subr.bf16.mxu0 0
  %1412 = vmatpush1.bf16.msra.mxu0 0
  %1413 = vmatprep.subr.bf16.mxu0 0
  %1414 = vmatpush1.bf16.msra.mxu0 0
  %1415 = vmatprep.subr.bf16.mxu0 0
  %1416 = vmatpush1.bf16.msra.mxu0 0
  %1417 = vmatprep.subr.bf16.mxu0 0
  %1418 = vmatpush1.bf16.msra.mxu0 0
  %1419 = vmatprep.mubr.bf16.mxu0 0
  %1420 = vmatmul.mubr.bf16.gmra.mrb[0].mxu0 %v1386
  %v1421 = vpop.f32.mrb[0].mxu0
  %v1422 = vadd.f32 0.0, %v1421
  %v1423 = vpop.f32.mrb[0].mxu0
  %v1424 = vadd.f32 0.0, %v1423
  %v1425 = vpop.f32.mrb[0].mxu0
  %v1426 = vpop.f32.mrb[0].mxu0
  %1427 = vdwg.mxu0
  %1428 = vmatprep.subr.bf16.mxu0 0
  %1429 = vmatpush1.bf16.msra.mxu0 %v904
  %1430 = vmatprep.subr.bf16.mxu0 0
  %1431 = vmatpush1.bf16.msra.mxu0 %v907
  %1432 = vmatprep.subr.bf16.mxu0 0
  %1433 = vmatpush1.bf16.msra.mxu0 %v910
  %1434 = vmatprep.subr.bf16.mxu0 0
  %1435 = vmatpush1.bf16.msra.mxu0 %v913
  %1436 = vmatprep.subr.bf16.mxu0 0
  %1437 = vmatpush1.bf16.msra.mxu0 %v916
  %1438 = vmatprep.subr.bf16.mxu0 0
  %1439 = vmatpush1.bf16.msra.mxu0 %v919
  %1440 = vmatprep.subr.bf16.mxu0 0
  %1441 = vmatpush1.bf16.msra.mxu0 %v922
  %1442 = vmatprep.subr.bf16.mxu0 0
  %1443 = vmatpush1.bf16.msra.mxu0 %v925
  %1444 = vmatprep.subr.bf16.mxu0 0
  %1445 = vmatpush1.bf16.msra.mxu0 0
  %1446 = vmatprep.subr.bf16.mxu0 0
  %1447 = vmatpush1.bf16.msra.mxu0 0
  %1448 = vmatprep.subr.bf16.mxu0 0
  %1449 = vmatpush1.bf16.msra.mxu0 0
  %1450 = vmatprep.subr.bf16.mxu0 0
  %1451 = vmatpush1.bf16.msra.mxu0 0
  %1452 = vmatprep.subr.bf16.mxu0 0
  %1453 = vmatpush1.bf16.msra.mxu0 0
  %1454 = vmatprep.subr.bf16.mxu0 0
  %1455 = vmatpush1.bf16.msra.mxu0 0
  %1456 = vmatprep.subr.bf16.mxu0 0
  %1457 = vmatpush1.bf16.msra.mxu0 0
  %1458 = vmatprep.subr.bf16.mxu0 0
  %1459 = vmatpush1.bf16.msra.mxu0 0
  %1460 = vmatprep.mubr.bf16.mxu0 0
  %1461 = vmatmul.mubr.bf16.gmra.mrb[0].mxu0 %v1386
  %v1462 = vpop.f32.mrb[0].mxu0
  %v1463 = vadd.f32 0.0, %v1462
  %v1464 = vpop.f32.mrb[0].mxu0
  %v1465 = vpop.f32.mrb[0].mxu0
  %v1466 = vpop.f32.mrb[0].mxu0
  %1467 = vdwg.mxu0
  %s1468 = scalar_lea.vmem [#allocation2], 96
  %v1469 = vld [vmem:[%s1468] sm:$0xff]
  %v1470 = vld [vmem:[%s1468 + $0x8] sm:$0xff]
  %v1471 = vld [vmem:[%s1468 + $0x10] sm:$0xff]
  %v1472 = vadd.f32 %v1469, %v1422
  %v1473 = vxor.u32 %v1472, 2147483648
  %v1474 = vmul.f32 %v1473, 1.442695
  %v1475 = vpow.pop %v1474
  %v1476 = vadd.f32 %v1475, 1.0
  %v1477 = vrcp.pop %v1476
  %v1478 = vmul.f32 1.0, %v1477
  %v1479 = vadd.f32 %v1470, %v1424
  %v1480 = vxor.u32 %v1479, 2147483648
  %v1481 = vmul.f32 %v1480, 1.442695
  %v1482 = vpow.pop %v1481
  %v1483 = vadd.f32 %v1482, 1.0
  %v1484 = vrcp.pop %v1483
  %v1485 = vmul.f32 1.0, %v1484
  %v1486 = vadd.f32 %v1463, %v1052
  %v1487 = vmul.f32 %v1478, %v1486
  %v1488 = vadd.f32 %v1471, %v1487
  %v1489 = vtanh.pop %v1488
  %v1490 = vsub.f32 1.0, %v1485
  %v1491 = vmul.f32 %v1490, %v1489
  %v1492 = vmul.f32 %v1485, %v1385
  %v1493 = vadd.f32 %v1491, %v1492
  %v1494 = vpack.c.bf16 %v1493, %v1493
  %1495 = vmatprep.subr.bf16.mxu0 %v903
  %1496 = vmatpush1.bf16.msra.mxu0 %v902
  %1497 = vmatprep.subr.bf16.mxu0 %v906
  %1498 = vmatpush1.bf16.msra.mxu0 %v905
  %1499 = vmatprep.subr.bf16.mxu0 %v909
  %1500 = vmatpush1.bf16.msra.mxu0 %v908
  %1501 = vmatprep.subr.bf16.mxu0 %v912
  %1502 = vmatpush1.bf16.msra.mxu0 %v911
  %1503 = vmatprep.subr.bf16.mxu0 %v915
  %1504 = vmatpush1.bf16.msra.mxu0 %v914
  %1505 = vmatprep.subr.bf16.mxu0 %v918
  %1506 = vmatpush1.bf16.msra.mxu0 %v917
  %1507 = vmatprep.subr.bf16.mxu0 %v921
  %1508 = vmatpush1.bf16.msra.mxu0 %v920
  %1509 = vmatprep.subr.bf16.mxu0 %v924
  %1510 = vmatpush1.bf16.msra.mxu0 %v923
  %1511 = vmatprep.subr.bf16.mxu0 0
  %1512 = vmatpush1.bf16.msra.mxu0 0
  %1513 = vmatprep.subr.bf16.mxu0 0
  %1514 = vmatpush1.bf16.msra.mxu0 0
  %1515 = vmatprep.subr.bf16.mxu0 0
  %1516 = vmatpush1.bf16.msra.mxu0 0
  %1517 = vmatprep.subr.bf16.mxu0 0
  %1518 = vmatpush1.bf16.msra.mxu0 0
  %1519 = vmatprep.subr.bf16.mxu0 0
  %1520 = vmatpush1.bf16.msra.mxu0 0
  %1521 = vmatprep.subr.bf16.mxu0 0
  %1522 = vmatpush1.bf16.msra.mxu0 0
  %1523 = vmatprep.subr.bf16.mxu0 0
  %1524 = vmatpush1.bf16.msra.mxu0 0
  %1525 = vmatprep.subr.bf16.mxu0 0
  %1526 = vmatpush1.bf16.msra.mxu0 0
  %1527 = vmatprep.mubr.bf16.mxu0 0
  %1528 = vmatmul.mubr.bf16.gmra.mrb[0].mxu0 %v1494
  %v1529 = vpop.f32.mrb[0].mxu0
  %v1530 = vadd.f32 0.0, %v1529
  %v1531 = vpop.f32.mrb[0].mxu0
  %v1532 = vadd.f32 0.0, %v1531
  %v1533 = vpop.f32.mrb[0].mxu0
  %v1534 = vpop.f32.mrb[0].mxu0
  %1535 = vdwg.mxu0
  %1536 = vmatprep.subr.bf16.mxu0 0
  %1537 = vmatpush1.bf16.msra.mxu0 %v904
  %1538 = vmatprep.subr.bf16.mxu0 0
  %1539 = vmatpush1.bf16.msra.mxu0 %v907
  %1540 = vmatprep.subr.bf16.mxu0 0
  %1541 = vmatpush1.bf16.msra.mxu0 %v910
  %1542 = vmatprep.subr.bf16.mxu0 0
  %1543 = vmatpush1.bf16.msra.mxu0 %v913
  %1544 = vmatprep.subr.bf16.mxu0 0
  %1545 = vmatpush1.bf16.msra.mxu0 %v916
  %1546 = vmatprep.subr.bf16.mxu0 0
  %1547 = vmatpush1.bf16.msra.mxu0 %v919
  %1548 = vmatprep.subr.bf16.mxu0 0
  %1549 = vmatpush1.bf16.msra.mxu0 %v922
  %1550 = vmatprep.subr.bf16.mxu0 0
  %1551 = vmatpush1.bf16.msra.mxu0 %v925
  %1552 = vmatprep.subr.bf16.mxu0 0
  %1553 = vmatpush1.bf16.msra.mxu0 0
  %1554 = vmatprep.subr.bf16.mxu0 0
  %1555 = vmatpush1.bf16.msra.mxu0 0
  %1556 = vmatprep.subr.bf16.mxu0 0
  %1557 = vmatpush1.bf16.msra.mxu0 0
  %1558 = vmatprep.subr.bf16.mxu0 0
  %1559 = vmatpush1.bf16.msra.mxu0 0
  %1560 = vmatprep.subr.bf16.mxu0 0
  %1561 = vmatpush1.bf16.msra.mxu0 0
  %1562 = vmatprep.subr.bf16.mxu0 0
  %1563 = vmatpush1.bf16.msra.mxu0 0
  %1564 = vmatprep.subr.bf16.mxu0 0
  %1565 = vmatpush1.bf16.msra.mxu0 0
  %1566 = vmatprep.subr.bf16.mxu0 0
  %1567 = vmatpush1.bf16.msra.mxu0 0
  %1568 = vmatprep.mubr.bf16.mxu0 0
  %1569 = vmatmul.mubr.bf16.gmra.mrb[0].mxu0 %v1494
  %v1570 = vpop.f32.mrb[0].mxu0
  %v1571 = vadd.f32 0.0, %v1570
  %v1572 = vpop.f32.mrb[0].mxu0
  %v1573 = vpop.f32.mrb[0].mxu0
  %v1574 = vpop.f32.mrb[0].mxu0
  %1575 = vdwg.mxu0
  %s1576 = scalar_lea.vmem [#allocation2], 120
  %v1577 = vld [vmem:[%s1576] sm:$0xff]
  %v1578 = vld [vmem:[%s1576 + $0x8] sm:$0xff]
  %v1579 = vld [vmem:[%s1576 + $0x10] sm:$0xff]
  %v1580 = vadd.f32 %v1577, %v1530
  %v1581 = vxor.u32 %v1580, 2147483648
  %v1582 = vmul.f32 %v1581, 1.442695
  %v1583 = vpow.pop %v1582
  %v1584 = vadd.f32 %v1583, 1.0
  %v1585 = vrcp.pop %v1584
  %v1586 = vmul.f32 1.0, %v1585
  %v1587 = vadd.f32 %v1578, %v1532
  %v1588 = vxor.u32 %v1587, 2147483648
  %v1589 = vmul.f32 %v1588, 1.442695
  %v1590 = vpow.pop %v1589
  %v1591 = vadd.f32 %v1590, 1.0
  %v1592 = vrcp.pop %v1591
  %v1593 = vmul.f32 1.0, %v1592
  %v1594 = vadd.f32 %v1571, %v1052
  %v1595 = vmul.f32 %v1586, %v1594
  %v1596 = vadd.f32 %v1579, %v1595
  %v1597 = vtanh.pop %v1596
  %v1598 = vsub.f32 1.0, %v1593
  %v1599 = vmul.f32 %v1598, %v1597
  %v1600 = vmul.f32 %v1593, %v1493
  %v1601 = vadd.f32 %v1599, %v1600
  %v1602 = vpack.c.bf16 %v1601, %v1601
  %1603 = vmatprep.subr.bf16.mxu0 %v903
  %1604 = vmatpush1.bf16.msra.mxu0 %v902
  %1605 = vmatprep.subr.bf16.mxu0 %v906
  %1606 = vmatpush1.bf16.msra.mxu0 %v905
  %1607 = vmatprep.subr.bf16.mxu0 %v909
  %1608 = vmatpush1.bf16.msra.mxu0 %v908
  %1609 = vmatprep.subr.bf16.mxu0 %v912
  %1610 = vmatpush1.bf16.msra.mxu0 %v911
  %1611 = vmatprep.subr.bf16.mxu0 %v915
  %1612 = vmatpush1.bf16.msra.mxu0 %v914
  %1613 = vmatprep.subr.bf16.mxu0 %v918
  %1614 = vmatpush1.bf16.msra.mxu0 %v917
  %1615 = vmatprep.subr.bf16.mxu0 %v921
  %1616 = vmatpush1.bf16.msra.mxu0 %v920
  %1617 = vmatprep.subr.bf16.mxu0 %v924
  %1618 = vmatpush1.bf16.msra.mxu0 %v923
  %1619 = vmatprep.subr.bf16.mxu0 0
  %1620 = vmatpush1.bf16.msra.mxu0 0
  %1621 = vmatprep.subr.bf16.mxu0 0
  %1622 = vmatpush1.bf16.msra.mxu0 0
  %1623 = vmatprep.subr.bf16.mxu0 0
  %1624 = vmatpush1.bf16.msra.mxu0 0
  %1625 = vmatprep.subr.bf16.mxu0 0
  %1626 = vmatpush1.bf16.msra.mxu0 0
  %1627 = vmatprep.subr.bf16.mxu0 0
  %1628 = vmatpush1.bf16.msra.mxu0 0
  %1629 = vmatprep.subr.bf16.mxu0 0
  %1630 = vmatpush1.bf16.msra.mxu0 0
  %1631 = vmatprep.subr.bf16.mxu0 0
  %1632 = vmatpush1.bf16.msra.mxu0 0
  %1633 = vmatprep.subr.bf16.mxu0 0
  %1634 = vmatpush1.bf16.msra.mxu0 0
  %1635 = vmatprep.mubr.bf16.mxu0 0
  %1636 = vmatmul.mubr.bf16.gmra.mrb[0].mxu0 %v1602
  %v1637 = vpop.f32.mrb[0].mxu0
  %v1638 = vadd.f32 0.0, %v1637
  %v1639 = vpop.f32.mrb[0].mxu0
  %v1640 = vadd.f32 0.0, %v1639
  %v1641 = vpop.f32.mrb[0].mxu0
  %v1642 = vpop.f32.mrb[0].mxu0
  %1643 = vdwg.mxu0
  %1644 = vmatprep.subr.bf16.mxu0 0
  %1645 = vmatpush1.bf16.msra.mxu0 %v904
  %1646 = vmatprep.subr.bf16.mxu0 0
  %1647 = vmatpush1.bf16.msra.mxu0 %v907
  %1648 = vmatprep.subr.bf16.mxu0 0
  %1649 = vmatpush1.bf16.msra.mxu0 %v910
  %1650 = vmatprep.subr.bf16.mxu0 0
  %1651 = vmatpush1.bf16.msra.mxu0 %v913
  %1652 = vmatprep.subr.bf16.mxu0 0
  %1653 = vmatpush1.bf16.msra.mxu0 %v916
  %1654 = vmatprep.subr.bf16.mxu0 0
  %1655 = vmatpush1.bf16.msra.mxu0 %v919
  %1656 = vmatprep.subr.bf16.mxu0 0
  %1657 = vmatpush1.bf16.msra.mxu0 %v922
  %1658 = vmatprep.subr.bf16.mxu0 0
  %1659 = vmatpush1.bf16.msra.mxu0 %v925
  %1660 = vmatprep.subr.bf16.mxu0 0
  %1661 = vmatpush1.bf16.msra.mxu0 0
  %1662 = vmatprep.subr.bf16.mxu0 0
  %1663 = vmatpush1.bf16.msra.mxu0 0
  %1664 = vmatprep.subr.bf16.mxu0 0
  %1665 = vmatpush1.bf16.msra.mxu0 0
  %1666 = vmatprep.subr.bf16.mxu0 0
  %1667 = vmatpush1.bf16.msra.mxu0 0
  %1668 = vmatprep.subr.bf16.mxu0 0
  %1669 = vmatpush1.bf16.msra.mxu0 0
  %1670 = vmatprep.subr.bf16.mxu0 0
  %1671 = vmatpush1.bf16.msra.mxu0 0
  %1672 = vmatprep.subr.bf16.mxu0 0
  %1673 = vmatpush1.bf16.msra.mxu0 0
  %1674 = vmatprep.subr.bf16.mxu0 0
  %1675 = vmatpush1.bf16.msra.mxu0 0
  %1676 = vmatprep.mubr.bf16.mxu0 0
  %1677 = vmatmul.mubr.bf16.gmra.mrb[0].mxu0 %v1602
  %v1678 = vpop.f32.mrb[0].mxu0
  %v1679 = vadd.f32 0.0, %v1678
  %v1680 = vpop.f32.mrb[0].mxu0
  %v1681 = vpop.f32.mrb[0].mxu0
  %v1682 = vpop.f32.mrb[0].mxu0
  %1683 = vdwg.mxu0
  %s1684 = scalar_lea.vmem [#allocation2], 144
  %v1685 = vld [vmem:[%s1684] sm:$0xff]
  %v1686 = vld [vmem:[%s1684 + $0x8] sm:$0xff]
  %v1687 = vld [vmem:[%s1684 + $0x10] sm:$0xff]
  %v1688 = vadd.f32 %v1685, %v1638
  %v1689 = vxor.u32 %v1688, 2147483648
  %v1690 = vmul.f32 %v1689, 1.442695
  %v1691 = vpow.pop %v1690
  %v1692 = vadd.f32 %v1691, 1.0
  %v1693 = vrcp.pop %v1692
  %v1694 = vmul.f32 1.0, %v1693
  %v1695 = vadd.f32 %v1686, %v1640
  %v1696 = vxor.u32 %v1695, 2147483648
  %v1697 = vmul.f32 %v1696, 1.442695
  %v1698 = vpow.pop %v1697
  %v1699 = vadd.f32 %v1698, 1.0
  %v1700 = vrcp.pop %v1699
  %v1701 = vmul.f32 1.0, %v1700
  %v1702 = vadd.f32 %v1679, %v1052
  %v1703 = vmul.f32 %v1694, %v1702
  %v1704 = vadd.f32 %v1687, %v1703
  %v1705 = vtanh.pop %v1704
  %v1706 = vsub.f32 1.0, %v1701
  %v1707 = vmul.f32 %v1706, %v1705
  %v1708 = vmul.f32 %v1701, %v1601
  %v1709 = vadd.f32 %v1707, %v1708
  %v1710 = vpack.c.bf16 %v1709, %v1709
  %1711 = vmatprep.subr.bf16.mxu0 %v903
  %1712 = vmatpush1.bf16.msra.mxu0 %v902
  %1713 = vmatprep.subr.bf16.mxu0 %v906
  %1714 = vmatpush1.bf16.msra.mxu0 %v905
  %1715 = vmatprep.subr.bf16.mxu0 %v909
  %1716 = vmatpush1.bf16.msra.mxu0 %v908
  %1717 = vmatprep.subr.bf16.mxu0 %v912
  %1718 = vmatpush1.bf16.msra.mxu0 %v911
  %1719 = vmatprep.subr.bf16.mxu0 %v915
  %1720 = vmatpush1.bf16.msra.mxu0 %v914
  %1721 = vmatprep.subr.bf16.mxu0 %v918
  %1722 = vmatpush1.bf16.msra.mxu0 %v917
  %1723 = vmatprep.subr.bf16.mxu0 %v921
  %1724 = vmatpush1.bf16.msra.mxu0 %v920
  %1725 = vmatprep.subr.bf16.mxu0 %v924
  %1726 = vmatpush1.bf16.msra.mxu0 %v923
  %1727 = vmatprep.subr.bf16.mxu0 0
  %1728 = vmatpush1.bf16.msra.mxu0 0
  %1729 = vmatprep.subr.bf16.mxu0 0
  %1730 = vmatpush1.bf16.msra.mxu0 0
  %1731 = vmatprep.subr.bf16.mxu0 0
  %1732 = vmatpush1.bf16.msra.mxu0 0
  %1733 = vmatprep.subr.bf16.mxu0 0
  %1734 = vmatpush1.bf16.msra.mxu0 0
  %1735 = vmatprep.subr.bf16.mxu0 0
  %1736 = vmatpush1.bf16.msra.mxu0 0
  %1737 = vmatprep.subr.bf16.mxu0 0
  %1738 = vmatpush1.bf16.msra.mxu0 0
  %1739 = vmatprep.subr.bf16.mxu0 0
  %1740 = vmatpush1.bf16.msra.mxu0 0
  %1741 = vmatprep.subr.bf16.mxu0 0
  %1742 = vmatpush1.bf16.msra.mxu0 0
  %1743 = vmatprep.mubr.bf16.mxu0 0
  %1744 = vmatmul.mubr.bf16.gmra.mrb[0].mxu0 %v1710
  %v1745 = vpop.f32.mrb[0].mxu0
  %v1746 = vadd.f32 0.0, %v1745
  %v1747 = vpop.f32.mrb[0].mxu0
  %v1748 = vadd.f32 0.0, %v1747
  %v1749 = vpop.f32.mrb[0].mxu0
  %v1750 = vpop.f32.mrb[0].mxu0
  %1751 = vdwg.mxu0
  %1752 = vmatprep.subr.bf16.mxu0 0
  %1753 = vmatpush1.bf16.msra.mxu0 %v904
  %1754 = vmatprep.subr.bf16.mxu0 0
  %1755 = vmatpush1.bf16.msra.mxu0 %v907
  %1756 = vmatprep.subr.bf16.mxu0 0
  %1757 = vmatpush1.bf16.msra.mxu0 %v910
  %1758 = vmatprep.subr.bf16.mxu0 0
  %1759 = vmatpush1.bf16.msra.mxu0 %v913
  %1760 = vmatprep.subr.bf16.mxu0 0
  %1761 = vmatpush1.bf16.msra.mxu0 %v916
  %1762 = vmatprep.subr.bf16.mxu0 0
  %1763 = vmatpush1.bf16.msra.mxu0 %v919
  %1764 = vmatprep.subr.bf16.mxu0 0
  %1765 = vmatpush1.bf16.msra.mxu0 %v922
  %1766 = vmatprep.subr.bf16.mxu0 0
  %1767 = vmatpush1.bf16.msra.mxu0 %v925
  %1768 = vmatprep.subr.bf16.mxu0 0
  %1769 = vmatpush1.bf16.msra.mxu0 0
  %1770 = vmatprep.subr.bf16.mxu0 0
  %1771 = vmatpush1.bf16.msra.mxu0 0
  %1772 = vmatprep.subr.bf16.mxu0 0
  %1773 = vmatpush1.bf16.msra.mxu0 0
  %1774 = vmatprep.subr.bf16.mxu0 0
  %1775 = vmatpush1.bf16.msra.mxu0 0
  %1776 = vmatprep.subr.bf16.mxu0 0
  %1777 = vmatpush1.bf16.msra.mxu0 0
  %1778 = vmatprep.subr.bf16.mxu0 0
  %1779 = vmatpush1.bf16.msra.mxu0 0
  %1780 = vmatprep.subr.bf16.mxu0 0
  %1781 = vmatpush1.bf16.msra.mxu0 0
  %1782 = vmatprep.subr.bf16.mxu0 0
  %1783 = vmatpush1.bf16.msra.mxu0 0
  %1784 = vmatprep.mubr.bf16.mxu0 0
  %1785 = vmatmul.mubr.bf16.gmra.mrb[0].mxu0 %v1710
  %v1786 = vpop.f32.mrb[0].mxu0
  %v1787 = vadd.f32 0.0, %v1786
  %v1788 = vpop.f32.mrb[0].mxu0
  %v1789 = vpop.f32.mrb[0].mxu0
  %v1790 = vpop.f32.mrb[0].mxu0
  %1791 = vdwg.mxu0
  %s1792 = scalar_lea.vmem [#allocation2], 168
  %v1793 = vld [vmem:[%s1792] sm:$0xff]
  %v1794 = vld [vmem:[%s1792 + $0x8] sm:$0xff]
  %v1795 = vld [vmem:[%s1792 + $0x10] sm:$0xff]
  %v1796 = vadd.f32 %v1793, %v1746
  %v1797 = vxor.u32 %v1796, 2147483648
  %v1798 = vmul.f32 %v1797, 1.442695
  %v1799 = vpow.pop %v1798
  %v1800 = vadd.f32 %v1799, 1.0
  %v1801 = vrcp.pop %v1800
  %v1802 = vmul.f32 1.0, %v1801
  %v1803 = vadd.f32 %v1794, %v1748
  %v1804 = vxor.u32 %v1803, 2147483648
  %v1805 = vmul.f32 %v1804, 1.442695
  %v1806 = vpow.pop %v1805
  %v1807 = vadd.f32 %v1806, 1.0
  %v1808 = vrcp.pop %v1807
  %v1809 = vmul.f32 1.0, %v1808
  %v1810 = vadd.f32 %v1787, %v1052
  %v1811 = vmul.f32 %v1802, %v1810
  %v1812 = vadd.f32 %v1795, %v1811
  %v1813 = vtanh.pop %v1812
  %v1814 = vsub.f32 1.0, %v1809
  %v1815 = vmul.f32 %v1814, %v1813
  %v1816 = vmul.f32 %v1809, %v1709
  %v1817 = vadd.f32 %v1815, %v1816
  %v1818 = vpack.c.bf16 %v1817, %v1817
  %1819 = vmatprep.subr.bf16.mxu0 %v903
  %1820 = vmatpush1.bf16.msra.mxu0 %v902
  %1821 = vmatprep.subr.bf16.mxu0 %v906
  %1822 = vmatpush1.bf16.msra.mxu0 %v905
  %1823 = vmatprep.subr.bf16.mxu0 %v909
  %1824 = vmatpush1.bf16.msra.mxu0 %v908
  %1825 = vmatprep.subr.bf16.mxu0 %v912
  %1826 = vmatpush1.bf16.msra.mxu0 %v911
  %1827 = vmatprep.subr.bf16.mxu0 %v915
  %1828 = vmatpush1.bf16.msra.mxu0 %v914
  %1829 = vmatprep.subr.bf16.mxu0 %v918
  %1830 = vmatpush1.bf16.msra.mxu0 %v917
  %1831 = vmatprep.subr.bf16.mxu0 %v921
  %1832 = vmatpush1.bf16.msra.mxu0 %v920
  %1833 = vmatprep.subr.bf16.mxu0 %v924
  %1834 = vmatpush1.bf16.msra.mxu0 %v923
  %1835 = vmatprep.subr.bf16.mxu0 0
  %1836 = vmatpush1.bf16.msra.mxu0 0
  %1837 = vmatprep.subr.bf16.mxu0 0
  %1838 = vmatpush1.bf16.msra.mxu0 0
  %1839 = vmatprep.subr.bf16.mxu0 0
  %1840 = vmatpush1.bf16.msra.mxu0 0
  %1841 = vmatprep.subr.bf16.mxu0 0
  %1842 = vmatpush1.bf16.msra.mxu0 0
  %1843 = vmatprep.subr.bf16.mxu0 0
  %1844 = vmatpush1.bf16.msra.mxu0 0
  %1845 = vmatprep.subr.bf16.mxu0 0
  %1846 = vmatpush1.bf16.msra.mxu0 0
  %1847 = vmatprep.subr.bf16.mxu0 0
  %1848 = vmatpush1.bf16.msra.mxu0 0
  %1849 = vmatprep.subr.bf16.mxu0 0
  %1850 = vmatpush1.bf16.msra.mxu0 0
  %1851 = vmatprep.mubr.bf16.mxu0 0
  %1852 = vmatmul.mubr.bf16.gmra.mrb[0].mxu0 %v1818
  %v1853 = vpop.f32.mrb[0].mxu0
  %v1854 = vadd.f32 0.0, %v1853
  %v1855 = vpop.f32.mrb[0].mxu0
  %v1856 = vadd.f32 0.0, %v1855
  %v1857 = vpop.f32.mrb[0].mxu0
  %v1858 = vpop.f32.mrb[0].mxu0
  %1859 = vdwg.mxu0
  %1860 = vmatprep.subr.bf16.mxu0 0
  %1861 = vmatpush1.bf16.msra.mxu0 %v904
  %1862 = vmatprep.subr.bf16.mxu0 0
  %1863 = vmatpush1.bf16.msra.mxu0 %v907
  %1864 = vmatprep.subr.bf16.mxu0 0
  %1865 = vmatpush1.bf16.msra.mxu0 %v910
  %1866 = vmatprep.subr.bf16.mxu0 0
  %1867 = vmatpush1.bf16.msra.mxu0 %v913
  %1868 = vmatprep.subr.bf16.mxu0 0
  %1869 = vmatpush1.bf16.msra.mxu0 %v916
  %1870 = vmatprep.subr.bf16.mxu0 0
  %1871 = vmatpush1.bf16.msra.mxu0 %v919
  %1872 = vmatprep.subr.bf16.mxu0 0
  %1873 = vmatpush1.bf16.msra.mxu0 %v922
  %1874 = vmatprep.subr.bf16.mxu0 0
  %1875 = vmatpush1.bf16.msra.mxu0 %v925
  %1876 = vmatprep.subr.bf16.mxu0 0
  %1877 = vmatpush1.bf16.msra.mxu0 0
  %1878 = vmatprep.subr.bf16.mxu0 0
  %1879 = vmatpush1.bf16.msra.mxu0 0
  %1880 = vmatprep.subr.bf16.mxu0 0
  %1881 = vmatpush1.bf16.msra.mxu0 0
  %1882 = vmatprep.subr.bf16.mxu0 0
  %1883 = vmatpush1.bf16.msra.mxu0 0
  %1884 = vmatprep.subr.bf16.mxu0 0
  %1885 = vmatpush1.bf16.msra.mxu0 0
  %1886 = vmatprep.subr.bf16.mxu0 0
  %1887 = vmatpush1.bf16.msra.mxu0 0
  %1888 = vmatprep.subr.bf16.mxu0 0
  %1889 = vmatpush1.bf16.msra.mxu0 0
  %1890 = vmatprep.subr.bf16.mxu0 0
  %1891 = vmatpush1.bf16.msra.mxu0 0
  %1892 = vmatprep.mubr.bf16.mxu0 0
  %1893 = vmatmul.mubr.bf16.gmra.mrb[0].mxu0 %v1818
  %v1894 = vpop.f32.mrb[0].mxu0
  %v1895 = vadd.f32 0.0, %v1894
  %v1896 = vpop.f32.mrb[0].mxu0
  %v1897 = vpop.f32.mrb[0].mxu0
  %v1898 = vpop.f32.mrb[0].mxu0
  %1899 = vdwg.mxu0
  %s1900 = scalar_lea.vmem [#allocation2], 192
  %v1901 = vld [vmem:[%s1900] sm:$0xff]
  %v1902 = vld [vmem:[%s1900 + $0x8] sm:$0xff]
  %v1903 = vld [vmem:[%s1900 + $0x10] sm:$0xff]
  %v1904 = vadd.f32 %v1901, %v1854
  %v1905 = vxor.u32 %v1904, 2147483648
  %v1906 = vmul.f32 %v1905, 1.442695
  %v1907 = vpow.pop %v1906
  %v1908 = vadd.f32 %v1907, 1.0
  %v1909 = vrcp.pop %v1908
  %v1910 = vmul.f32 1.0, %v1909
  %v1911 = vadd.f32 %v1902, %v1856
  %v1912 = vxor.u32 %v1911, 2147483648
  %v1913 = vmul.f32 %v1912, 1.442695
  %v1914 = vpow.pop %v1913
  %v1915 = vadd.f32 %v1914, 1.0
  %v1916 = vrcp.pop %v1915
  %v1917 = vmul.f32 1.0, %v1916
  %v1918 = vadd.f32 %v1895, %v1052
  %v1919 = vmul.f32 %v1910, %v1918
  %v1920 = vadd.f32 %v1903, %v1919
  %v1921 = vtanh.pop %v1920
  %v1922 = vsub.f32 1.0, %v1917
  %v1923 = vmul.f32 %v1922, %v1921
  %v1924 = vmul.f32 %v1917, %v1817
  %v1925 = vadd.f32 %v1923, %v1924
  %v1926 = vpack.c.bf16 %v1925, %v1925
  %1927 = vmatprep.subr.bf16.mxu0 %v903
  %1928 = vmatpush1.bf16.msra.mxu0 %v902
  %1929 = vmatprep.subr.bf16.mxu0 %v906
  %1930 = vmatpush1.bf16.msra.mxu0 %v905
  %1931 = vmatprep.subr.bf16.mxu0 %v909
  %1932 = vmatpush1.bf16.msra.mxu0 %v908
  %1933 = vmatprep.subr.bf16.mxu0 %v912
  %1934 = vmatpush1.bf16.msra.mxu0 %v911
  %1935 = vmatprep.subr.bf16.mxu0 %v915
  %1936 = vmatpush1.bf16.msra.mxu0 %v914
  %1937 = vmatprep.subr.bf16.mxu0 %v918
  %1938 = vmatpush1.bf16.msra.mxu0 %v917
  %1939 = vmatprep.subr.bf16.mxu0 %v921
  %1940 = vmatpush1.bf16.msra.mxu0 %v920
  %1941 = vmatprep.subr.bf16.mxu0 %v924
  %1942 = vmatpush1.bf16.msra.mxu0 %v923
  %1943 = vmatprep.subr.bf16.mxu0 0
  %1944 = vmatpush1.bf16.msra.mxu0 0
  %1945 = vmatprep.subr.bf16.mxu0 0
  %1946 = vmatpush1.bf16.msra.mxu0 0
  %1947 = vmatprep.subr.bf16.mxu0 0
  %1948 = vmatpush1.bf16.msra.mxu0 0
  %1949 = vmatprep.subr.bf16.mxu0 0
  %1950 = vmatpush1.bf16.msra.mxu0 0
  %1951 = vmatprep.subr.bf16.mxu0 0
  %1952 = vmatpush1.bf16.msra.mxu0 0
  %1953 = vmatprep.subr.bf16.mxu0 0
  %1954 = vmatpush1.bf16.msra.mxu0 0
  %1955 = vmatprep.subr.bf16.mxu0 0
  %1956 = vmatpush1.bf16.msra.mxu0 0
  %1957 = vmatprep.subr.bf16.mxu0 0
  %1958 = vmatpush1.bf16.msra.mxu0 0
  %1959 = vmatprep.mubr.bf16.mxu0 0
  %1960 = vmatmul.mubr.bf16.gmra.mrb[0].mxu0 %v1926
  %v1961 = vpop.f32.mrb[0].mxu0
  %v1962 = vadd.f32 0.0, %v1961
  %v1963 = vpop.f32.mrb[0].mxu0
  %v1964 = vadd.f32 0.0, %v1963
  %v1965 = vpop.f32.mrb[0].mxu0
  %v1966 = vpop.f32.mrb[0].mxu0
  %1967 = vdwg.mxu0
  %1968 = vmatprep.subr.bf16.mxu0 0
  %1969 = vmatpush1.bf16.msra.mxu0 %v904
  %1970 = vmatprep.subr.bf16.mxu0 0
  %1971 = vmatpush1.bf16.msra.mxu0 %v907
  %1972 = vmatprep.subr.bf16.mxu0 0
  %1973 = vmatpush1.bf16.msra.mxu0 %v910
  %1974 = vmatprep.subr.bf16.mxu0 0
  %1975 = vmatpush1.bf16.msra.mxu0 %v913
  %1976 = vmatprep.subr.bf16.mxu0 0
  %1977 = vmatpush1.bf16.msra.mxu0 %v916
  %1978 = vmatprep.subr.bf16.mxu0 0
  %1979 = vmatpush1.bf16.msra.mxu0 %v919
  %1980 = vmatprep.subr.bf16.mxu0 0
  %1981 = vmatpush1.bf16.msra.mxu0 %v922
  %1982 = vmatprep.subr.bf16.mxu0 0
  %1983 = vmatpush1.bf16.msra.mxu0 %v925
  %1984 = vmatprep.subr.bf16.mxu0 0
  %1985 = vmatpush1.bf16.msra.mxu0 0
  %1986 = vmatprep.subr.bf16.mxu0 0
  %1987 = vmatpush1.bf16.msra.mxu0 0
  %1988 = vmatprep.subr.bf16.mxu0 0
  %1989 = vmatpush1.bf16.msra.mxu0 0
  %1990 = vmatprep.subr.bf16.mxu0 0
  %1991 = vmatpush1.bf16.msra.mxu0 0
  %1992 = vmatprep.subr.bf16.mxu0 0
  %1993 = vmatpush1.bf16.msra.mxu0 0
  %1994 = vmatprep.subr.bf16.mxu0 0
  %1995 = vmatpush1.bf16.msra.mxu0 0
  %1996 = vmatprep.subr.bf16.mxu0 0
  %1997 = vmatpush1.bf16.msra.mxu0 0
  %1998 = vmatprep.subr.bf16.mxu0 0
  %1999 = vmatpush1.bf16.msra.mxu0 0
  %2000 = vmatprep.mubr.bf16.mxu0 0
  %2001 = vmatmul.mubr.bf16.gmra.mrb[0].mxu0 %v1926
  %v2002 = vpop.f32.mrb[0].mxu0
  %v2003 = vadd.f32 0.0, %v2002
  %v2004 = vpop.f32.mrb[0].mxu0
  %v2005 = vpop.f32.mrb[0].mxu0
  %v2006 = vpop.f32.mrb[0].mxu0
  %2007 = vdwg.mxu0
  %s2008 = scalar_lea.vmem [#allocation2], 216
  %v2009 = vld [vmem:[%s2008] sm:$0xff]
  %v2010 = vld [vmem:[%s2008 + $0x8] sm:$0xff]
  %v2011 = vld [vmem:[%s2008 + $0x10] sm:$0xff]
  %v2012 = vadd.f32 %v2009, %v1962
  %v2013 = vxor.u32 %v2012, 2147483648
  %v2014 = vmul.f32 %v2013, 1.442695
  %v2015 = vpow.pop %v2014
  %v2016 = vadd.f32 %v2015, 1.0
  %v2017 = vrcp.pop %v2016
  %v2018 = vmul.f32 1.0, %v2017
  %v2019 = vadd.f32 %v2010, %v1964
  %v2020 = vxor.u32 %v2019, 2147483648
  %v2021 = vmul.f32 %v2020, 1.442695
  %v2022 = vpow.pop %v2021
  %v2023 = vadd.f32 %v2022, 1.0
  %v2024 = vrcp.pop %v2023
  %v2025 = vmul.f32 1.0, %v2024
  %v2026 = vadd.f32 %v2003, %v1052
  %v2027 = vmul.f32 %v2018, %v2026
  %v2028 = vadd.f32 %v2011, %v2027
  %v2029 = vtanh.pop %v2028
  %v2030 = vsub.f32 1.0, %v2025
  %v2031 = vmul.f32 %v2030, %v2029
  %v2032 = vmul.f32 %v2025, %v1925
  %v2033 = vadd.f32 %v2031, %v2032
  %v2034 = vpack.c.bf16 %v2033, %v2033
  %2035 = vmatprep.subr.bf16.mxu0 %v903
  %2036 = vmatpush1.bf16.msra.mxu0 %v902
  %2037 = vmatprep.subr.bf16.mxu0 %v906
  %2038 = vmatpush1.bf16.msra.mxu0 %v905
  %2039 = vmatprep.subr.bf16.mxu0 %v909
  %2040 = vmatpush1.bf16.msra.mxu0 %v908
  %2041 = vmatprep.subr.bf16.mxu0 %v912
  %2042 = vmatpush1.bf16.msra.mxu0 %v911
  %2043 = vmatprep.subr.bf16.mxu0 %v915
  %2044 = vmatpush1.bf16.msra.mxu0 %v914
  %2045 = vmatprep.subr.bf16.mxu0 %v918
  %2046 = vmatpush1.bf16.msra.mxu0 %v917
  %2047 = vmatprep.subr.bf16.mxu0 %v921
  %2048 = vmatpush1.bf16.msra.mxu0 %v920
  %2049 = vmatprep.subr.bf16.mxu0 %v924
  %2050 = vmatpush1.bf16.msra.mxu0 %v923
  %2051 = vmatprep.subr.bf16.mxu0 0
  %2052 = vmatpush1.bf16.msra.mxu0 0
  %2053 = vmatprep.subr.bf16.mxu0 0
  %2054 = vmatpush1.bf16.msra.mxu0 0
  %2055 = vmatprep.subr.bf16.mxu0 0
  %2056 = vmatpush1.bf16.msra.mxu0 0
  %2057 = vmatprep.subr.bf16.mxu0 0
  %2058 = vmatpush1.bf16.msra.mxu0 0
  %2059 = vmatprep.subr.bf16.mxu0 0
  %2060 = vmatpush1.bf16.msra.mxu0 0
  %2061 = vmatprep.subr.bf16.mxu0 0
  %2062 = vmatpush1.bf16.msra.mxu0 0
  %2063 = vmatprep.subr.bf16.mxu0 0
  %2064 = vmatpush1.bf16.msra.mxu0 0
  %2065 = vmatprep.subr.bf16.mxu0 0
  %2066 = vmatpush1.bf16.msra.mxu0 0
  %2067 = vmatprep.mubr.bf16.mxu0 0
  %2068 = vmatmul.mubr.bf16.gmra.mrb[0].mxu0 %v2034
  %v2069 = vpop.f32.mrb[0].mxu0
  %v2070 = vadd.f32 0.0, %v2069
  %v2071 = vpop.f32.mrb[0].mxu0
  %v2072 = vadd.f32 0.0, %v2071
  %v2073 = vpop.f32.mrb[0].mxu0
  %v2074 = vpop.f32.mrb[0].mxu0
  %2075 = vdwg.mxu0
  %2076 = vmatprep.subr.bf16.mxu0 0
  %2077 = vmatpush1.bf16.msra.mxu0 %v904
  %2078 = vmatprep.subr.bf16.mxu0 0
  %2079 = vmatpush1.bf16.msra.mxu0 %v907
  %2080 = vmatprep.subr.bf16.mxu0 0
  %2081 = vmatpush1.bf16.msra.mxu0 %v910
  %2082 = vmatprep.subr.bf16.mxu0 0
  %2083 = vmatpush1.bf16.msra.mxu0 %v913
  %2084 = vmatprep.subr.bf16.mxu0 0
  %2085 = vmatpush1.bf16.msra.mxu0 %v916
  %2086 = vmatprep.subr.bf16.mxu0 0
  %2087 = vmatpush1.bf16.msra.mxu0 %v919
  %2088 = vmatprep.subr.bf16.mxu0 0
  %2089 = vmatpush1.bf16.msra.mxu0 %v922
  %2090 = vmatprep.subr.bf16.mxu0 0
  %2091 = vmatpush1.bf16.msra.mxu0 %v925
  %2092 = vmatprep.subr.bf16.mxu0 0
  %2093 = vmatpush1.bf16.msra.mxu0 0
  %2094 = vmatprep.subr.bf16.mxu0 0
  %2095 = vmatpush1.bf16.msra.mxu0 0
  %2096 = vmatprep.subr.bf16.mxu0 0
  %2097 = vmatpush1.bf16.msra.mxu0 0
  %2098 = vmatprep.subr.bf16.mxu0 0
  %2099 = vmatpush1.bf16.msra.mxu0 0
  %2100 = vmatprep.subr.bf16.mxu0 0
  %2101 = vmatpush1.bf16.msra.mxu0 0
  %2102 = vmatprep.subr.bf16.mxu0 0
  %2103 = vmatpush1.bf16.msra.mxu0 0
  %2104 = vmatprep.subr.bf16.mxu0 0
  %2105 = vmatpush1.bf16.msra.mxu0 0
  %2106 = vmatprep.subr.bf16.mxu0 0
  %2107 = vmatpush1.bf16.msra.mxu0 0
  %2108 = vmatprep.mubr.bf16.mxu0 0
  %2109 = vmatmul.mubr.bf16.gmra.mrb[0].mxu0 %v2034
  %v2110 = vpop.f32.mrb[0].mxu0
  %v2111 = vadd.f32 0.0, %v2110
  %v2112 = vpop.f32.mrb[0].mxu0
  %v2113 = vpop.f32.mrb[0].mxu0
  %v2114 = vpop.f32.mrb[0].mxu0
  %2115 = vdwg.mxu0
  %s2116 = scalar_lea.vmem [#allocation2], 240
  %v2117 = vld [vmem:[%s2116] sm:$0xff]
  %v2118 = vld [vmem:[%s2116 + $0x8] sm:$0xff]
  %v2119 = vld [vmem:[%s2116 + $0x10] sm:$0xff]
  %v2120 = vadd.f32 %v2117, %v2070
  %v2121 = vxor.u32 %v2120, 2147483648
  %v2122 = vmul.f32 %v2121, 1.442695
  %v2123 = vpow.pop %v2122
  %v2124 = vadd.f32 %v2123, 1.0
  %v2125 = vrcp.pop %v2124
  %v2126 = vmul.f32 1.0, %v2125
  %v2127 = vadd.f32 %v2118, %v2072
  %v2128 = vxor.u32 %v2127, 2147483648
  %v2129 = vmul.f32 %v2128, 1.442695
  %v2130 = vpow.pop %v2129
  %v2131 = vadd.f32 %v2130, 1.0
  %v2132 = vrcp.pop %v2131
  %v2133 = vmul.f32 1.0, %v2132
  %v2134 = vadd.f32 %v2111, %v1052
  %v2135 = vmul.f32 %v2126, %v2134
  %v2136 = vadd.f32 %v2119, %v2135
  %v2137 = vtanh.pop %v2136
  %v2138 = vsub.f32 1.0, %v2133
  %v2139 = vmul.f32 %v2138, %v2137
  %v2140 = vmul.f32 %v2133, %v2033
  %v2141 = vadd.f32 %v2139, %v2140
  %v2142 = vld [vmem:[%s9] sm:$0xff]
  %v2143 = vld [vmem:[%s9 + $0x8] sm:$0xf]
  %v2144 = vld [vmem:[%s9 + $0xc] sm:$0xff]
  %v2145 = vld [vmem:[%s9 + $0x14] sm:$0xf]
  %v2146 = vld [vmem:[%s9 + $0x18] sm:$0xff]
  %v2147 = vld [vmem:[%s9 + $0x20] sm:$0xf]
  %v2148 = vld [vmem:[%s9 + $0x24] sm:$0xff]
  %v2149 = vld [vmem:[%s9 + $0x2c] sm:$0xf]
  %v2150 = vld [vmem:[%s9 + $0x30] sm:$0xff]
  %v2151 = vld [vmem:[%s9 + $0x38] sm:$0xf]
  %v2152 = vld [vmem:[%s9 + $0x3c] sm:$0xff]
  %v2153 = vld [vmem:[%s9 + $0x44] sm:$0xf]
  %v2154 = vld [vmem:[%s9 + $0x48] sm:$0xff]
  %v2155 = vld [vmem:[%s9 + $0x50] sm:$0xf]
  %v2156 = vld [vmem:[%s9 + $0x54] sm:$0xff]
  %v2157 = vld [vmem:[%s9 + $0x5c] sm:$0xf]
  %v2158 = vld [vmem:[%s9 + $0x60] sm:$0xff]
  %v2159 = vld [vmem:[%s9 + $0x68] sm:$0xf]
  %v2160 = vld [vmem:[%s9 + $0x6c] sm:$0xff]
  %v2161 = vld [vmem:[%s9 + $0x74] sm:$0xf]
  %v2162 = vld [vmem:[%s9 + $0x78] sm:$0xff]
  %v2163 = vld [vmem:[%s9 + $0x80] sm:$0xf]
  %v2164 = vld [vmem:[%s9 + $0x84] sm:$0xff]
  %v2165 = vld [vmem:[%s9 + $0x8c] sm:$0xf]
  %v2166 = vld [vmem:[%s9 + $0x90] sm:$0xff]
  %v2167 = vld [vmem:[%s9 + $0x98] sm:$0xf]
  %v2168 = vld [vmem:[%s9 + $0x9c] sm:$0xff]
  %v2169 = vld [vmem:[%s9 + $0xa4] sm:$0xf]
  %v2170 = vld [vmem:[%s9 + $0xa8] sm:$0xff]
  %v2171 = vld [vmem:[%s9 + $0xb0] sm:$0xf]
  %v2172 = vld [vmem:[%s9 + $0xb4] sm:$0xff]
  %v2173 = vld [vmem:[%s9 + $0xbc] sm:$0xf]
  %v2174 = vld [vmem:[%s11] sm:$0x1]
  %v2207 = vunpack.c.l.b16 %v2142
  %v2208 = vunpack.c.h.b16 %v2142
  %v2209 = vunpack.c.l.b16 %v2143
  %v2210 = vunpack.c.l.b16 %v2144
  %v2211 = vunpack.c.h.b16 %v2144
  %v2212 = vunpack.c.l.b16 %v2145
  %v2213 = vunpack.c.l.b16 %v2146
  %v2214 = vunpack.c.h.b16 %v2146
  %v2215 = vunpack.c.l.b16 %v2147
  %v2216 = vunpack.c.l.b16 %v2148
  %v2217 = vunpack.c.h.b16 %v2148
  %v2218 = vunpack.c.l.b16 %v2149
  %v2219 = vunpack.c.l.b16 %v2150
  %v2220 = vunpack.c.h.b16 %v2150
  %v2221 = vunpack.c.l.b16 %v2151
  %v2222 = vunpack.c.l.b16 %v2152
  %v2223 = vunpack.c.h.b16 %v2152
  %v2224 = vunpack.c.l.b16 %v2153
  %v2225 = vunpack.c.l.b16 %v2154
  %v2226 = vunpack.c.h.b16 %v2154
  %v2227 = vunpack.c.l.b16 %v2155
  %v2228 = vunpack.c.l.b16 %v2156
  %v2229 = vunpack.c.h.b16 %v2156
  %v2230 = vunpack.c.l.b16 %v2157
  %v2231 = vunpack.c.l.b16 %v2158
  %v2232 = vunpack.c.h.b16 %v2158
  %v2233 = vunpack.c.l.b16 %v2159
  %v2234 = vunpack.c.l.b16 %v2160
  %v2235 = vunpack.c.h.b16 %v2160
  %v2236 = vunpack.c.l.b16 %v2161
  %v2237 = vunpack.c.l.b16 %v2162
  %v2238 = vunpack.c.h.b16 %v2162
  %v2239 = vunpack.c.l.b16 %v2163
  %v2240 = vunpack.c.l.b16 %v2164
  %v2241 = vunpack.c.h.b16 %v2164
  %v2242 = vunpack.c.l.b16 %v2165
  %v2243 = vunpack.c.l.b16 %v2166
  %v2244 = vunpack.c.h.b16 %v2166
  %v2245 = vunpack.c.l.b16 %v2167
  %v2246 = vunpack.c.l.b16 %v2168
  %v2247 = vunpack.c.h.b16 %v2168
  %v2248 = vunpack.c.l.b16 %v2169
  %v2249 = vunpack.c.l.b16 %v2170
  %v2250 = vunpack.c.h.b16 %v2170
  %v2251 = vunpack.c.l.b16 %v2171
  %v2252 = vunpack.c.l.b16 %v2172
  %v2253 = vunpack.c.h.b16 %v2172
  %v2254 = vunpack.c.l.b16 %v2173
  %v2255 = vpack.c.b16 %v2210, %v2207
  %v2256 = vpack.c.b16 %v2211, %v2208
  %v2257 = vpack.c.b16 %v2212, %v2209
  %v2258 = vpack.c.b16 %v2216, %v2213
  %v2259 = vpack.c.b16 %v2217, %v2214
  %v2260 = vpack.c.b16 %v2218, %v2215
  %v2261 = vpack.c.b16 %v2222, %v2219
  %v2262 = vpack.c.b16 %v2223, %v2220
  %v2263 = vpack.c.b16 %v2224, %v2221
  %v2264 = vpack.c.b16 %v2228, %v2225
  %v2265 = vpack.c.b16 %v2229, %v2226
  %v2266 = vpack.c.b16 %v2230, %v2227
  %v2267 = vpack.c.b16 %v2234, %v2231
  %v2268 = vpack.c.b16 %v2235, %v2232
  %v2269 = vpack.c.b16 %v2236, %v2233
  %v2270 = vpack.c.b16 %v2240, %v2237
  %v2271 = vpack.c.b16 %v2241, %v2238
  %v2272 = vpack.c.b16 %v2242, %v2239
  %v2273 = vpack.c.b16 %v2246, %v2243
  %v2274 = vpack.c.b16 %v2247, %v2244
  %v2275 = vpack.c.b16 %v2248, %v2245
  %v2276 = vpack.c.b16 %v2252, %v2249
  %v2277 = vpack.c.b16 %v2253, %v2250
  %v2278 = vpack.c.b16 %v2254, %v2251
  %2303 = vmatprep.subr.bf16.mxu0 %v2256
  %2304 = vmatpush1.bf16.msra.mxu0 %v2255
  %2305 = vmatprep.subr.bf16.mxu0 %v2259
  %2306 = vmatpush1.bf16.msra.mxu0 %v2258
  %2307 = vmatprep.subr.bf16.mxu0 %v2262
  %2308 = vmatpush1.bf16.msra.mxu0 %v2261
  %2309 = vmatprep.subr.bf16.mxu0 %v2265
  %2310 = vmatpush1.bf16.msra.mxu0 %v2264
  %2311 = vmatprep.subr.bf16.mxu0 %v2268
  %2312 = vmatpush1.bf16.msra.mxu0 %v2267
  %2313 = vmatprep.subr.bf16.mxu0 %v2271
  %2314 = vmatpush1.bf16.msra.mxu0 %v2270
  %2315 = vmatprep.subr.bf16.mxu0 %v2274
  %2316 = vmatpush1.bf16.msra.mxu0 %v2273
  %2317 = vmatprep.subr.bf16.mxu0 %v2277
  %2318 = vmatpush1.bf16.msra.mxu0 %v2276
  %2319 = vmatprep.subr.bf16.mxu0 0
  %2320 = vmatpush1.bf16.msra.mxu0 0
  %2321 = vmatprep.subr.bf16.mxu0 0
  %2322 = vmatpush1.bf16.msra.mxu0 0
  %2323 = vmatprep.subr.bf16.mxu0 0
  %2324 = vmatpush1.bf16.msra.mxu0 0
  %2325 = vmatprep.subr.bf16.mxu0 0
  %2326 = vmatpush1.bf16.msra.mxu0 0
  %2327 = vmatprep.subr.bf16.mxu0 0
  %2328 = vmatpush1.bf16.msra.mxu0 0
  %2329 = vmatprep.subr.bf16.mxu0 0
  %2330 = vmatpush1.bf16.msra.mxu0 0
  %2331 = vmatprep.subr.bf16.mxu0 0
  %2332 = vmatpush1.bf16.msra.mxu0 0
  %2333 = vmatprep.subr.bf16.mxu0 0
  %2334 = vmatpush1.bf16.msra.mxu0 0
  %2335 = vmatprep.mubr.bf16.mxu0 0
  %2336 = vmatmul.mubr.bf16.gmra.mrb[0].mxu0 0
  %v2337 = vpop.f32.mrb[0].mxu0
  %v2338 = vadd.f32 0.0, %v2337
  %v2339 = vpop.f32.mrb[0].mxu0
  %v2340 = vadd.f32 0.0, %v2339
  %v2341 = vpop.f32.mrb[0].mxu0
  %v2342 = vadd.f32 0.0, %v2341
  %v2343 = vpop.f32.mrb[0].mxu0
  %v2344 = vadd.f32 0.0, %v2343
  %2345 = vdwg.mxu0
  %2346 = vmatprep.subr.bf16.mxu0 0
  %2347 = vmatpush1.bf16.msra.mxu0 %v2257
  %2348 = vmatprep.subr.bf16.mxu0 0
  %2349 = vmatpush1.bf16.msra.mxu0 %v2260
  %2350 = vmatprep.subr.bf16.mxu0 0
  %2351 = vmatpush1.bf16.msra.mxu0 %v2263
  %2352 = vmatprep.subr.bf16.mxu0 0
  %2353 = vmatpush1.bf16.msra.mxu0 %v2266
  %2354 = vmatprep.subr.bf16.mxu0 0
  %2355 = vmatpush1.bf16.msra.mxu0 %v2269
  %2356 = vmatprep.subr.bf16.mxu0 0
  %2357 = vmatpush1.bf16.msra.mxu0 %v2272
  %2358 = vmatprep.subr.bf16.mxu0 0
  %2359 = vmatpush1.bf16.msra.mxu0 %v2275
  %2360 = vmatprep.subr.bf16.mxu0 0
  %2361 = vmatpush1.bf16.msra.mxu0 %v2278
  %2362 = vmatprep.subr.bf16.mxu0 0
  %2363 = vmatpush1.bf16.msra.mxu0 0
  %2364 = vmatprep.subr.bf16.mxu0 0
  %2365 = vmatpush1.bf16.msra.mxu0 0
  %2366 = vmatprep.subr.bf16.mxu0 0
  %2367 = vmatpush1.bf16.msra.mxu0 0
  %2368 = vmatprep.subr.bf16.mxu0 0
  %2369 = vmatpush1.bf16.msra.mxu0 0
  %2370 = vmatprep.subr.bf16.mxu0 0
  %2371 = vmatpush1.bf16.msra.mxu0 0
  %2372 = vmatprep.subr.bf16.mxu0 0
  %2373 = vmatpush1.bf16.msra.mxu0 0
  %2374 = vmatprep.subr.bf16.mxu0 0
  %2375 = vmatpush1.bf16.msra.mxu0 0
  %2376 = vmatprep.subr.bf16.mxu0 0
  %2377 = vmatpush1.bf16.msra.mxu0 0
  %2378 = vmatprep.mubr.bf16.mxu0 0
  %2379 = vmatmul.mubr.bf16.gmra.mrb[0].mxu0 0
  %v2380 = vpop.f32.mrb[0].mxu0
  %v2381 = vadd.f32 0.0, %v2380
  %v2382 = vpop.f32.mrb[0].mxu0
  %v2383 = vpop.f32.mrb[0].mxu0
  %v2384 = vadd.f32 0.0, %v2383
  %v2385 = vpop.f32.mrb[0].mxu0
  %2386 = vdwg.mxu0
  %v2387 = vld [vmem:[#allocation3] sm:$0xff]
  %v2388 = vld [vmem:[#allocation3 + $0x8] sm:$0xff]
  %v2389 = vld [vmem:[#allocation3 + $0x10] sm:$0xff]
  %v2390 = vld [vmem:[#allocation3 + $0x18] sm:$0xff]
  %v2391 = vld [vmem:[#allocation3 + $0x20] sm:$0xff]
  %v2392 = vld [vmem:[#allocation3 + $0x28] sm:$0xff]
  %v2393 = vadd.f32 %v2387, %v2338
  %v2394 = vadd.f32 %v2390, %v2342
  %v2395 = vxor.u32 %v2393, 2147483648
  %v2396 = vxor.u32 %v2394, 2147483648
  %v2397 = vmul.f32 %v2395, 1.442695
  %v2398 = vpow.pop %v2397
  %v2399 = vmul.f32 %v2396, 1.442695
  %v2400 = vpow.pop %v2399
  %v2401 = vadd.f32 %v2398, 1.0
  %v2402 = vadd.f32 %v2400, 1.0
  %v2403 = vrcp.pop %v2401
  %v2404 = vmul.f32 1.0, %v2403
  %v2405 = vrcp.pop %v2402
  %v2406 = vmul.f32 1.0, %v2405
  %v2407 = vadd.f32 %v2388, %v2340
  %v2408 = vadd.f32 %v2391, %v2344
  %v2409 = vxor.u32 %v2407, 2147483648
  %v2410 = vxor.u32 %v2408, 2147483648
  %v2411 = vmul.f32 %v2409, 1.442695
  %v2412 = vpow.pop %v2411
  %v2413 = vmul.f32 %v2410, 1.442695
  %v2414 = vpow.pop %v2413
  %v2415 = vadd.f32 %v2412, 1.0
  %v2416 = vadd.f32 %v2414, 1.0
  %v2417 = vrcp.pop %v2415
  %v2418 = vmul.f32 1.0, %v2417
  %v2419 = vrcp.pop %v2416
  %v2420 = vmul.f32 1.0, %v2419
  %v2422 = vlaneseq
  %v2423 = vshrl.u32 %v2422, 7
  %v2424 = vsub.s32 0, %v2423
  %v2425 = vrot.slane %v2174, %v2424
  %v2427 = vadd.f32 %v2381, %v2425
  %v2428 = vadd.f32 %v2384, %v2425
  %v2429 = vmul.f32 %v2404, %v2427
  %v2430 = vmul.f32 %v2406, %v2428
  %v2431 = vadd.f32 %v2389, %v2429
  %v2432 = vadd.f32 %v2392, %v2430
  %v2433 = vtanh.pop %v2431
  %v2434 = vtanh.pop %v2432
  %v2435 = vsub.f32 1.0, %v2418
  %v2436 = vsub.f32 1.0, %v2420
  %v2437 = vmul.f32 %v2435, %v2433
  %v2438 = vmul.f32 %v2436, %v2434
  %v2439 = vmul.f32 %v2418, 0.0
  %v2440 = vmul.f32 %v2420, 0.0
  %v2441 = vadd.f32 %v2437, %v2439
  %v2442 = vadd.f32 %v2438, %v2440
  %v2443 = vpack.c.bf16 %v2442, %v2441
  %2444 = vmatprep.subr.bf16.mxu0 %v2256
  %2445 = vmatpush1.bf16.msra.mxu0 %v2255
  %2446 = vmatprep.subr.bf16.mxu0 %v2259
  %2447 = vmatpush1.bf16.msra.mxu0 %v2258
  %2448 = vmatprep.subr.bf16.mxu0 %v2262
  %2449 = vmatpush1.bf16.msra.mxu0 %v2261
  %2450 = vmatprep.subr.bf16.mxu0 %v2265
  %2451 = vmatpush1.bf16.msra.mxu0 %v2264
  %2452 = vmatprep.subr.bf16.mxu0 %v2268
  %2453 = vmatpush1.bf16.msra.mxu0 %v2267
  %2454 = vmatprep.subr.bf16.mxu0 %v2271
  %2455 = vmatpush1.bf16.msra.mxu0 %v2270
  %2456 = vmatprep.subr.bf16.mxu0 %v2274
  %2457 = vmatpush1.bf16.msra.mxu0 %v2273
  %2458 = vmatprep.subr.bf16.mxu0 %v2277
  %2459 = vmatpush1.bf16.msra.mxu0 %v2276
  %2460 = vmatprep.subr.bf16.mxu0 0
  %2461 = vmatpush1.bf16.msra.mxu0 0
  %2462 = vmatprep.subr.bf16.mxu0 0
  %2463 = vmatpush1.bf16.msra.mxu0 0
  %2464 = vmatprep.subr.bf16.mxu0 0
  %2465 = vmatpush1.bf16.msra.mxu0 0
  %2466 = vmatprep.subr.bf16.mxu0 0
  %2467 = vmatpush1.bf16.msra.mxu0 0
  %2468 = vmatprep.subr.bf16.mxu0 0
  %2469 = vmatpush1.bf16.msra.mxu0 0
  %2470 = vmatprep.subr.bf16.mxu0 0
  %2471 = vmatpush1.bf16.msra.mxu0 0
  %2472 = vmatprep.subr.bf16.mxu0 0
  %2473 = vmatpush1.bf16.msra.mxu0 0
  %2474 = vmatprep.subr.bf16.mxu0 0
  %2475 = vmatpush1.bf16.msra.mxu0 0
  %2476 = vmatprep.mubr.bf16.mxu0 0
  %2477 = vmatmul.mubr.bf16.gmra.mrb[0].mxu0 %v2443
  %v2478 = vpop.f32.mrb[0].mxu0
  %v2479 = vadd.f32 0.0, %v2478
  %v2480 = vpop.f32.mrb[0].mxu0
  %v2481 = vadd.f32 0.0, %v2480
  %v2482 = vpop.f32.mrb[0].mxu0
  %v2483 = vadd.f32 0.0, %v2482
  %v2484 = vpop.f32.mrb[0].mxu0
  %v2485 = vadd.f32 0.0, %v2484
  %2486 = vdwg.mxu0
  %2487 = vmatprep.subr.bf16.mxu0 0
  %2488 = vmatpush1.bf16.msra.mxu0 %v2257
  %2489 = vmatprep.subr.bf16.mxu0 0
  %2490 = vmatpush1.bf16.msra.mxu0 %v2260
  %2491 = vmatprep.subr.bf16.mxu0 0
  %2492 = vmatpush1.bf16.msra.mxu0 %v2263
  %2493 = vmatprep.subr.bf16.mxu0 0
  %2494 = vmatpush1.bf16.msra.mxu0 %v2266
  %2495 = vmatprep.subr.bf16.mxu0 0
  %2496 = vmatpush1.bf16.msra.mxu0 %v2269
  %2497 = vmatprep.subr.bf16.mxu0 0
  %2498 = vmatpush1.bf16.msra.mxu0 %v2272
  %2499 = vmatprep.subr.bf16.mxu0 0
  %2500 = vmatpush1.bf16.msra.mxu0 %v2275
  %2501 = vmatprep.subr.bf16.mxu0 0
  %2502 = vmatpush1.bf16.msra.mxu0 %v2278
  %2503 = vmatprep.subr.bf16.mxu0 0
  %2504 = vmatpush1.bf16.msra.mxu0 0
  %2505 = vmatprep.subr.bf16.mxu0 0
  %2506 = vmatpush1.bf16.msra.mxu0 0
  %2507 = vmatprep.subr.bf16.mxu0 0
  %2508 = vmatpush1.bf16.msra.mxu0 0
  %2509 = vmatprep.subr.bf16.mxu0 0
  %2510 = vmatpush1.bf16.msra.mxu0 0
  %2511 = vmatprep.subr.bf16.mxu0 0
  %2512 = vmatpush1.bf16.msra.mxu0 0
  %2513 = vmatprep.subr.bf16.mxu0 0
  %2514 = vmatpush1.bf16.msra.mxu0 0
  %2515 = vmatprep.subr.bf16.mxu0 0
  %2516 = vmatpush1.bf16.msra.mxu0 0
  %2517 = vmatprep.subr.bf16.mxu0 0
  %2518 = vmatpush1.bf16.msra.mxu0 0
  %2519 = vmatprep.mubr.bf16.mxu0 0
  %2520 = vmatmul.mubr.bf16.gmra.mrb[0].mxu0 %v2443
  %v2521 = vpop.f32.mrb[0].mxu0
  %v2522 = vadd.f32 0.0, %v2521
  %v2523 = vpop.f32.mrb[0].mxu0
  %v2524 = vpop.f32.mrb[0].mxu0
  %v2525 = vadd.f32 0.0, %v2524
  %v2526 = vpop.f32.mrb[0].mxu0
  %2527 = vdwg.mxu0
  %s2528 = scalar_lea.vmem [#allocation3], 48
  %v2529 = vld [vmem:[%s2528] sm:$0xff]
  %v2530 = vld [vmem:[%s2528 + $0x8] sm:$0xff]
  %v2531 = vld [vmem:[%s2528 + $0x10] sm:$0xff]
  %v2532 = vld [vmem:[%s2528 + $0x18] sm:$0xff]
  %v2533 = vld [vmem:[%s2528 + $0x20] sm:$0xff]
  %v2534 = vld [vmem:[%s2528 + $0x28] sm:$0xff]
  %v2535 = vadd.f32 %v2529, %v2479
  %v2536 = vadd.f32 %v2532, %v2483
  %v2537 = vxor.u32 %v2535, 2147483648
  %v2538 = vxor.u32 %v2536, 2147483648
  %v2539 = vmul.f32 %v2537, 1.442695
  %v2540 = vpow.pop %v2539
  %v2541 = vmul.f32 %v2538, 1.442695
  %v2542 = vpow.pop %v2541
  %v2543 = vadd.f32 %v2540, 1.0
  %v2544 = vadd.f32 %v2542, 1.0
  %v2545 = vrcp.pop %v2543
  %v2546 = vmul.f32 1.0, %v2545
  %v2547 = vrcp.pop %v2544
  %v2548 = vmul.f32 1.0, %v2547
  %v2549 = vadd.f32 %v2530, %v2481
  %v2550 = vadd.f32 %v2533, %v2485
  %v2551 = vxor.u32 %v2549, 2147483648
  %v2552 = vxor.u32 %v2550, 2147483648
  %v2553 = vmul.f32 %v2551, 1.442695
  %v2554 = vpow.pop %v2553
  %v2555 = vmul.f32 %v2552, 1.442695
  %v2556 = vpow.pop %v2555
  %v2557 = vadd.f32 %v2554, 1.0
  %v2558 = vadd.f32 %v2556, 1.0
  %v2559 = vrcp.pop %v2557
  %v2560 = vmul.f32 1.0, %v2559
  %v2561 = vrcp.pop %v2558
  %v2562 = vmul.f32 1.0, %v2561
  %v2563 = vadd.f32 %v2522, %v2425
  %v2564 = vadd.f32 %v2525, %v2425
  %v2565 = vmul.f32 %v2546, %v2563
  %v2566 = vmul.f32 %v2548, %v2564
  %v2567 = vadd.f32 %v2531, %v2565
  %v2568 = vadd.f32 %v2534, %v2566
  %v2569 = vtanh.pop %v2567
  %v2570 = vtanh.pop %v2568
  %v2571 = vsub.f32 1.0, %v2560
  %v2572 = vsub.f32 1.0, %v2562
  %v2573 = vmul.f32 %v2571, %v2569
  %v2574 = vmul.f32 %v2572, %v2570
  %v2575 = vmul.f32 %v2560, %v2441
  %v2576 = vmul.f32 %v2562, %v2442
  %v2577 = vadd.f32 %v2573, %v2575
  %v2578 = vadd.f32 %v2574, %v2576
  %v2579 = vpack.c.bf16 %v2578, %v2577
  %2580 = vmatprep.subr.bf16.mxu0 %v2256
  %2581 = vmatpush1.bf16.msra.mxu0 %v2255
  %2582 = vmatprep.subr.bf16.mxu0 %v2259
  %2583 = vmatpush1.bf16.msra.mxu0 %v2258
  %2584 = vmatprep.subr.bf16.mxu0 %v2262
  %2585 = vmatpush1.bf16.msra.mxu0 %v2261
  %2586 = vmatprep.subr.bf16.mxu0 %v2265
  %2587 = vmatpush1.bf16.msra.mxu0 %v2264
  %2588 = vmatprep.subr.bf16.mxu0 %v2268
  %2589 = vmatpush1.bf16.msra.mxu0 %v2267
  %2590 = vmatprep.subr.bf16.mxu0 %v2271
  %2591 = vmatpush1.bf16.msra.mxu0 %v2270
  %2592 = vmatprep.subr.bf16.mxu0 %v2274
  %2593 = vmatpush1.bf16.msra.mxu0 %v2273
  %2594 = vmatprep.subr.bf16.mxu0 %v2277
  %2595 = vmatpush1.bf16.msra.mxu0 %v2276
  %2596 = vmatprep.subr.bf16.mxu0 0
  %2597 = vmatpush1.bf16.msra.mxu0 0
  %2598 = vmatprep.subr.bf16.mxu0 0
  %2599 = vmatpush1.bf16.msra.mxu0 0
  %2600 = vmatprep.subr.bf16.mxu0 0
  %2601 = vmatpush1.bf16.msra.mxu0 0
  %2602 = vmatprep.subr.bf16.mxu0 0
  %2603 = vmatpush1.bf16.msra.mxu0 0
  %2604 = vmatprep.subr.bf16.mxu0 0
  %2605 = vmatpush1.bf16.msra.mxu0 0
  %2606 = vmatprep.subr.bf16.mxu0 0
  %2607 = vmatpush1.bf16.msra.mxu0 0
  %2608 = vmatprep.subr.bf16.mxu0 0
  %2609 = vmatpush1.bf16.msra.mxu0 0
  %2610 = vmatprep.subr.bf16.mxu0 0
  %2611 = vmatpush1.bf16.msra.mxu0 0
  %2612 = vmatprep.mubr.bf16.mxu0 0
  %2613 = vmatmul.mubr.bf16.gmra.mrb[0].mxu0 %v2579
  %v2614 = vpop.f32.mrb[0].mxu0
  %v2615 = vadd.f32 0.0, %v2614
  %v2616 = vpop.f32.mrb[0].mxu0
  %v2617 = vadd.f32 0.0, %v2616
  %v2618 = vpop.f32.mrb[0].mxu0
  %v2619 = vadd.f32 0.0, %v2618
  %v2620 = vpop.f32.mrb[0].mxu0
  %v2621 = vadd.f32 0.0, %v2620
  %2622 = vdwg.mxu0
  %2623 = vmatprep.subr.bf16.mxu0 0
  %2624 = vmatpush1.bf16.msra.mxu0 %v2257
  %2625 = vmatprep.subr.bf16.mxu0 0
  %2626 = vmatpush1.bf16.msra.mxu0 %v2260
  %2627 = vmatprep.subr.bf16.mxu0 0
  %2628 = vmatpush1.bf16.msra.mxu0 %v2263
  %2629 = vmatprep.subr.bf16.mxu0 0
  %2630 = vmatpush1.bf16.msra.mxu0 %v2266
  %2631 = vmatprep.subr.bf16.mxu0 0
  %2632 = vmatpush1.bf16.msra.mxu0 %v2269
  %2633 = vmatprep.subr.bf16.mxu0 0
  %2634 = vmatpush1.bf16.msra.mxu0 %v2272
  %2635 = vmatprep.subr.bf16.mxu0 0
  %2636 = vmatpush1.bf16.msra.mxu0 %v2275
  %2637 = vmatprep.subr.bf16.mxu0 0
  %2638 = vmatpush1.bf16.msra.mxu0 %v2278
  %2639 = vmatprep.subr.bf16.mxu0 0
  %2640 = vmatpush1.bf16.msra.mxu0 0
  %2641 = vmatprep.subr.bf16.mxu0 0
  %2642 = vmatpush1.bf16.msra.mxu0 0
  %2643 = vmatprep.subr.bf16.mxu0 0
  %2644 = vmatpush1.bf16.msra.mxu0 0
  %2645 = vmatprep.subr.bf16.mxu0 0
  %2646 = vmatpush1.bf16.msra.mxu0 0
  %2647 = vmatprep.subr.bf16.mxu0 0
  %2648 = vmatpush1.bf16.msra.mxu0 0
  %2649 = vmatprep.subr.bf16.mxu0 0
  %2650 = vmatpush1.bf16.msra.mxu0 0
  %2651 = vmatprep.subr.bf16.mxu0 0
  %2652 = vmatpush1.bf16.msra.mxu0 0
  %2653 = vmatprep.subr.bf16.mxu0 0
  %2654 = vmatpush1.bf16.msra.mxu0 0
  %2655 = vmatprep.mubr.bf16.mxu0 0
  %2656 = vmatmul.mubr.bf16.gmra.mrb[0].mxu0 %v2579
  %v2657 = vpop.f32.mrb[0].mxu0
  %v2658 = vadd.f32 0.0, %v2657
  %v2659 = vpop.f32.mrb[0].mxu0
  %v2660 = vpop.f32.mrb[0].mxu0
  %v2661 = vadd.f32 0.0, %v2660
  %v2662 = vpop.f32.mrb[0].mxu0
  %2663 = vdwg.mxu0
  %s2664 = scalar_lea.vmem [#allocation3], 96
  %v2665 = vld [vmem:[%s2664] sm:$0xff]
  %v2666 = vld [vmem:[%s2664 + $0x8] sm:$0xff]
  %v2667 = vld [vmem:[%s2664 + $0x10] sm:$0xff]
  %v2668 = vld [vmem:[%s2664 + $0x18] sm:$0xff]
  %v2669 = vld [vmem:[%s2664 + $0x20] sm:$0xff]
  %v2670 = vld [vmem:[%s2664 + $0x28] sm:$0xff]
  %v2671 = vadd.f32 %v2665, %v2615
  %v2672 = vadd.f32 %v2668, %v2619
  %v2673 = vxor.u32 %v2671, 2147483648
  %v2674 = vxor.u32 %v2672, 2147483648
  %v2675 = vmul.f32 %v2673, 1.442695
  %v2676 = vpow.pop %v2675
  %v2677 = vmul.f32 %v2674, 1.442695
  %v2678 = vpow.pop %v2677
  %v2679 = vadd.f32 %v2676, 1.0
  %v2680 = vadd.f32 %v2678, 1.0
  %v2681 = vrcp.pop %v2679
  %v2682 = vmul.f32 1.0, %v2681
  %v2683 = vrcp.pop %v2680
  %v2684 = vmul.f32 1.0, %v2683
  %v2685 = vadd.f32 %v2666, %v2617
  %v2686 = vadd.f32 %v2669, %v2621
  %v2687 = vxor.u32 %v2685, 2147483648
  %v2688 = vxor.u32 %v2686, 2147483648
  %v2689 = vmul.f32 %v2687, 1.442695
  %v2690 = vpow.pop %v2689
  %v2691 = vmul.f32 %v2688, 1.442695
  %v2692 = vpow.pop %v2691
  %v2693 = vadd.f32 %v2690, 1.0
  %v2694 = vadd.f32 %v2692, 1.0
  %v2695 = vrcp.pop %v2693
  %v2696 = vmul.f32 1.0, %v2695
  %v2697 = vrcp.pop %v2694
  %v2698 = vmul.f32 1.0, %v2697
  %v2699 = vadd.f32 %v2658, %v2425
  %v2700 = vadd.f32 %v2661, %v2425
  %v2701 = vmul.f32 %v2682, %v2699
  %v2702 = vmul.f32 %v2684, %v2700
  %v2703 = vadd.f32 %v2667, %v2701
  %v2704 = vadd.f32 %v2670, %v2702
  %v2705 = vtanh.pop %v2703
  %v2706 = vtanh.pop %v2704
  %v2707 = vsub.f32 1.0, %v2696
  %v2708 = vsub.f32 1.0, %v2698
  %v2709 = vmul.f32 %v2707, %v2705
  %v2710 = vmul.f32 %v2708, %v2706
  %v2711 = vmul.f32 %v2696, %v2577
  %v2712 = vmul.f32 %v2698, %v2578
  %v2713 = vadd.f32 %v2709, %v2711
  %v2714 = vadd.f32 %v2710, %v2712
  %v2715 = vpack.c.bf16 %v2714, %v2713
  %2716 = vmatprep.subr.bf16.mxu0 %v2256
  %2717 = vmatpush1.bf16.msra.mxu0 %v2255
  %2718 = vmatprep.subr.bf16.mxu0 %v2259
  %2719 = vmatpush1.bf16.msra.mxu0 %v2258
  %2720 = vmatprep.subr.bf16.mxu0 %v2262
  %2721 = vmatpush1.bf16.msra.mxu0 %v2261
  %2722 = vmatprep.subr.bf16.mxu0 %v2265
  %2723 = vmatpush1.bf16.msra.mxu0 %v2264
  %2724 = vmatprep.subr.bf16.mxu0 %v2268
  %2725 = vmatpush1.bf16.msra.mxu0 %v2267
  %2726 = vmatprep.subr.bf16.mxu0 %v2271
  %2727 = vmatpush1.bf16.msra.mxu0 %v2270
  %2728 = vmatprep.subr.bf16.mxu0 %v2274
  %2729 = vmatpush1.bf16.msra.mxu0 %v2273
  %2730 = vmatprep.subr.bf16.mxu0 %v2277
  %2731 = vmatpush1.bf16.msra.mxu0 %v2276
  %2732 = vmatprep.subr.bf16.mxu0 0
  %2733 = vmatpush1.bf16.msra.mxu0 0
  %2734 = vmatprep.subr.bf16.mxu0 0
  %2735 = vmatpush1.bf16.msra.mxu0 0
  %2736 = vmatprep.subr.bf16.mxu0 0
  %2737 = vmatpush1.bf16.msra.mxu0 0
  %2738 = vmatprep.subr.bf16.mxu0 0
  %2739 = vmatpush1.bf16.msra.mxu0 0
  %2740 = vmatprep.subr.bf16.mxu0 0
  %2741 = vmatpush1.bf16.msra.mxu0 0
  %2742 = vmatprep.subr.bf16.mxu0 0
  %2743 = vmatpush1.bf16.msra.mxu0 0
  %2744 = vmatprep.subr.bf16.mxu0 0
  %2745 = vmatpush1.bf16.msra.mxu0 0
  %2746 = vmatprep.subr.bf16.mxu0 0
  %2747 = vmatpush1.bf16.msra.mxu0 0
  %2748 = vmatprep.mubr.bf16.mxu0 0
  %2749 = vmatmul.mubr.bf16.gmra.mrb[0].mxu0 %v2715
  %v2750 = vpop.f32.mrb[0].mxu0
  %v2751 = vadd.f32 0.0, %v2750
  %v2752 = vpop.f32.mrb[0].mxu0
  %v2753 = vadd.f32 0.0, %v2752
  %v2754 = vpop.f32.mrb[0].mxu0
  %v2755 = vadd.f32 0.0, %v2754
  %v2756 = vpop.f32.mrb[0].mxu0
  %v2757 = vadd.f32 0.0, %v2756
  %2758 = vdwg.mxu0
  %2759 = vmatprep.subr.bf16.mxu0 0
  %2760 = vmatpush1.bf16.msra.mxu0 %v2257
  %2761 = vmatprep.subr.bf16.mxu0 0
  %2762 = vmatpush1.bf16.msra.mxu0 %v2260
  %2763 = vmatprep.subr.bf16.mxu0 0
  %2764 = vmatpush1.bf16.msra.mxu0 %v2263
  %2765 = vmatprep.subr.bf16.mxu0 0
  %2766 = vmatpush1.bf16.msra.mxu0 %v2266
  %2767 = vmatprep.subr.bf16.mxu0 0
  %2768 = vmatpush1.bf16.msra.mxu0 %v2269
  %2769 = vmatprep.subr.bf16.mxu0 0
  %2770 = vmatpush1.bf16.msra.mxu0 %v2272
  %2771 = vmatprep.subr.bf16.mxu0 0
  %2772 = vmatpush1.bf16.msra.mxu0 %v2275
  %2773 = vmatprep.subr.bf16.mxu0 0
  %2774 = vmatpush1.bf16.msra.mxu0 %v2278
  %2775 = vmatprep.subr.bf16.mxu0 0
  %2776 = vmatpush1.bf16.msra.mxu0 0
  %2777 = vmatprep.subr.bf16.mxu0 0
  %2778 = vmatpush1.bf16.msra.mxu0 0
  %2779 = vmatprep.subr.bf16.mxu0 0
  %2780 = vmatpush1.bf16.msra.mxu0 0
  %2781 = vmatprep.subr.bf16.mxu0 0
  %2782 = vmatpush1.bf16.msra.mxu0 0
  %2783 = vmatprep.subr.bf16.mxu0 0
  %2784 = vmatpush1.bf16.msra.mxu0 0
  %2785 = vmatprep.subr.bf16.mxu0 0
  %2786 = vmatpush1.bf16.msra.mxu0 0
  %2787 = vmatprep.subr.bf16.mxu0 0
  %2788 = vmatpush1.bf16.msra.mxu0 0
  %2789 = vmatprep.subr.bf16.mxu0 0
  %2790 = vmatpush1.bf16.msra.mxu0 0
  %2791 = vmatprep.mubr.bf16.mxu0 0
  %2792 = vmatmul.mubr.bf16.gmra.mrb[0].mxu0 %v2715
  %v2793 = vpop.f32.mrb[0].mxu0
  %v2794 = vadd.f32 0.0, %v2793
  %v2795 = vpop.f32.mrb[0].mxu0
  %v2796 = vpop.f32.mrb[0].mxu0
  %v2797 = vadd.f32 0.0, %v2796
  %v2798 = vpop.f32.mrb[0].mxu0
  %2799 = vdwg.mxu0
  %s2800 = scalar_lea.vmem [#allocation3], 144
  %v2801 = vld [vmem:[%s2800] sm:$0xff]
  %v2802 = vld [vmem:[%s2800 + $0x8] sm:$0xff]
  %v2803 = vld [vmem:[%s2800 + $0x10] sm:$0xff]
  %v2804 = vld [vmem:[%s2800 + $0x18] sm:$0xff]
  %v2805 = vld [vmem:[%s2800 + $0x20] sm:$0xff]
  %v2806 = vld [vmem:[%s2800 + $0x28] sm:$0xff]
  %v2807 = vadd.f32 %v2801, %v2751
  %v2808 = vadd.f32 %v2804, %v2755
  %v2809 = vxor.u32 %v2807, 2147483648
  %v2810 = vxor.u32 %v2808, 2147483648
  %v2811 = vmul.f32 %v2809, 1.442695
  %v2812 = vpow.pop %v2811
  %v2813 = vmul.f32 %v2810, 1.442695
  %v2814 = vpow.pop %v2813
  %v2815 = vadd.f32 %v2812, 1.0
  %v2816 = vadd.f32 %v2814, 1.0
  %v2817 = vrcp.pop %v2815
  %v2818 = vmul.f32 1.0, %v2817
  %v2819 = vrcp.pop %v2816
  %v2820 = vmul.f32 1.0, %v2819
  %v2821 = vadd.f32 %v2802, %v2753
  %v2822 = vadd.f32 %v2805, %v2757
  %v2823 = vxor.u32 %v2821, 2147483648
  %v2824 = vxor.u32 %v2822, 2147483648
  %v2825 = vmul.f32 %v2823, 1.442695
  %v2826 = vpow.pop %v2825
  %v2827 = vmul.f32 %v2824, 1.442695
  %v2828 = vpow.pop %v2827
  %v2829 = vadd.f32 %v2826, 1.0
  %v2830 = vadd.f32 %v2828, 1.0
  %v2831 = vrcp.pop %v2829
  %v2832 = vmul.f32 1.0, %v2831
  %v2833 = vrcp.pop %v2830
  %v2834 = vmul.f32 1.0, %v2833
  %v2835 = vadd.f32 %v2794, %v2425
  %v2836 = vadd.f32 %v2797, %v2425
  %v2837 = vmul.f32 %v2818, %v2835
  %v2838 = vmul.f32 %v2820, %v2836
  %v2839 = vadd.f32 %v2803, %v2837
  %v2840 = vadd.f32 %v2806, %v2838
  %v2841 = vtanh.pop %v2839
  %v2842 = vtanh.pop %v2840
  %v2843 = vsub.f32 1.0, %v2832
  %v2844 = vsub.f32 1.0, %v2834
  %v2845 = vmul.f32 %v2843, %v2841
  %v2846 = vmul.f32 %v2844, %v2842
  %v2847 = vmul.f32 %v2832, %v2713
  %v2848 = vmul.f32 %v2834, %v2714
  %v2849 = vadd.f32 %v2845, %v2847
  %v2850 = vadd.f32 %v2846, %v2848
  %v2851 = vpack.c.bf16 %v2850, %v2849
  %2852 = vmatprep.subr.bf16.mxu0 %v2256
  %2853 = vmatpush1.bf16.msra.mxu0 %v2255
  %2854 = vmatprep.subr.bf16.mxu0 %v2259
  %2855 = vmatpush1.bf16.msra.mxu0 %v2258
  %2856 = vmatprep.subr.bf16.mxu0 %v2262
  %2857 = vmatpush1.bf16.msra.mxu0 %v2261
  %2858 = vmatprep.subr.bf16.mxu0 %v2265
  %2859 = vmatpush1.bf16.msra.mxu0 %v2264
  %2860 = vmatprep.subr.bf16.mxu0 %v2268
  %2861 = vmatpush1.bf16.msra.mxu0 %v2267
  %2862 = vmatprep.subr.bf16.mxu0 %v2271
  %2863 = vmatpush1.bf16.msra.mxu0 %v2270
  %2864 = vmatprep.subr.bf16.mxu0 %v2274
  %2865 = vmatpush1.bf16.msra.mxu0 %v2273
  %2866 = vmatprep.subr.bf16.mxu0 %v2277
  %2867 = vmatpush1.bf16.msra.mxu0 %v2276
  %2868 = vmatprep.subr.bf16.mxu0 0
  %2869 = vmatpush1.bf16.msra.mxu0 0
  %2870 = vmatprep.subr.bf16.mxu0 0
  %2871 = vmatpush1.bf16.msra.mxu0 0
  %2872 = vmatprep.subr.bf16.mxu0 0
  %2873 = vmatpush1.bf16.msra.mxu0 0
  %2874 = vmatprep.subr.bf16.mxu0 0
  %2875 = vmatpush1.bf16.msra.mxu0 0
  %2876 = vmatprep.subr.bf16.mxu0 0
  %2877 = vmatpush1.bf16.msra.mxu0 0
  %2878 = vmatprep.subr.bf16.mxu0 0
  %2879 = vmatpush1.bf16.msra.mxu0 0
  %2880 = vmatprep.subr.bf16.mxu0 0
  %2881 = vmatpush1.bf16.msra.mxu0 0
  %2882 = vmatprep.subr.bf16.mxu0 0
  %2883 = vmatpush1.bf16.msra.mxu0 0
  %2884 = vmatprep.mubr.bf16.mxu0 0
  %2885 = vmatmul.mubr.bf16.gmra.mrb[0].mxu0 %v2851
  %v2886 = vpop.f32.mrb[0].mxu0
  %v2887 = vadd.f32 0.0, %v2886
  %v2888 = vpop.f32.mrb[0].mxu0
  %v2889 = vadd.f32 0.0, %v2888
  %v2890 = vpop.f32.mrb[0].mxu0
  %v2891 = vadd.f32 0.0, %v2890
  %v2892 = vpop.f32.mrb[0].mxu0
  %v2893 = vadd.f32 0.0, %v2892
  %2894 = vdwg.mxu0
  %2895 = vmatprep.subr.bf16.mxu0 0
  %2896 = vmatpush1.bf16.msra.mxu0 %v2257
  %2897 = vmatprep.subr.bf16.mxu0 0
  %2898 = vmatpush1.bf16.msra.mxu0 %v2260
  %2899 = vmatprep.subr.bf16.mxu0 0
  %2900 = vmatpush1.bf16.msra.mxu0 %v2263
  %2901 = vmatprep.subr.bf16.mxu0 0
  %2902 = vmatpush1.bf16.msra.mxu0 %v2266
  %2903 = vmatprep.subr.bf16.mxu0 0
  %2904 = vmatpush1.bf16.msra.mxu0 %v2269
  %2905 = vmatprep.subr.bf16.mxu0 0
  %2906 = vmatpush1.bf16.msra.mxu0 %v2272
  %2907 = vmatprep.subr.bf16.mxu0 0
  %2908 = vmatpush1.bf16.msra.mxu0 %v2275
  %2909 = vmatprep.subr.bf16.mxu0 0
  %2910 = vmatpush1.bf16.msra.mxu0 %v2278
  %2911 = vmatprep.subr.bf16.mxu0 0
  %2912 = vmatpush1.bf16.msra.mxu0 0
  %2913 = vmatprep.subr.bf16.mxu0 0
  %2914 = vmatpush1.bf16.msra.mxu0 0
  %2915 = vmatprep.subr.bf16.mxu0 0
  %2916 = vmatpush1.bf16.msra.mxu0 0
  %2917 = vmatprep.subr.bf16.mxu0 0
  %2918 = vmatpush1.bf16.msra.mxu0 0
  %2919 = vmatprep.subr.bf16.mxu0 0
  %2920 = vmatpush1.bf16.msra.mxu0 0
  %2921 = vmatprep.subr.bf16.mxu0 0
  %2922 = vmatpush1.bf16.msra.mxu0 0
  %2923 = vmatprep.subr.bf16.mxu0 0
  %2924 = vmatpush1.bf16.msra.mxu0 0
  %2925 = vmatprep.subr.bf16.mxu0 0
  %2926 = vmatpush1.bf16.msra.mxu0 0
  %2927 = vmatprep.mubr.bf16.mxu0 0
  %2928 = vmatmul.mubr.bf16.gmra.mrb[0].mxu0 %v2851
  %v2929 = vpop.f32.mrb[0].mxu0
  %v2930 = vadd.f32 0.0, %v2929
  %v2931 = vpop.f32.mrb[0].mxu0
  %v2932 = vpop.f32.mrb[0].mxu0
  %v2933 = vadd.f32 0.0, %v2932
  %v2934 = vpop.f32.mrb[0].mxu0
  %2935 = vdwg.mxu0
  %s2936 = scalar_lea.vmem [#allocation3], 192
  %v2937 = vld [vmem:[%s2936] sm:$0xff]
  %v2938 = vld [vmem:[%s2936 + $0x8] sm:$0xff]
  %v2939 = vld [vmem:[%s2936 + $0x10] sm:$0xff]
  %v2940 = vld [vmem:[%s2936 + $0x18] sm:$0xff]
  %v2941 = vld [vmem:[%s2936 + $0x20] sm:$0xff]
  %v2942 = vld [vmem:[%s2936 + $0x28] sm:$0xff]
  %v2943 = vadd.f32 %v2937, %v2887
  %v2944 = vadd.f32 %v2940, %v2891
  %v2945 = vxor.u32 %v2943, 2147483648
  %v2946 = vxor.u32 %v2944, 2147483648
  %v2947 = vmul.f32 %v2945, 1.442695
  %v2948 = vpow.pop %v2947
  %v2949 = vmul.f32 %v2946, 1.442695
  %v2950 = vpow.pop %v2949
  %v2951 = vadd.f32 %v2948, 1.0
  %v2952 = vadd.f32 %v2950, 1.0
  %v2953 = vrcp.pop %v2951
  %v2954 = vmul.f32 1.0, %v2953
  %v2955 = vrcp.pop %v2952
  %v2956 = vmul.f32 1.0, %v2955
  %v2957 = vadd.f32 %v2938, %v2889
  %v2958 = vadd.f32 %v2941, %v2893
  %v2959 = vxor.u32 %v2957, 2147483648
  %v2960 = vxor.u32 %v2958, 2147483648
  %v2961 = vmul.f32 %v2959, 1.442695
  %v2962 = vpow.pop %v2961
  %v2963 = vmul.f32 %v2960, 1.442695
  %v2964 = vpow.pop %v2963
  %v2965 = vadd.f32 %v2962, 1.0
  %v2966 = vadd.f32 %v2964, 1.0
  %v2967 = vrcp.pop %v2965
  %v2968 = vmul.f32 1.0, %v2967
  %v2969 = vrcp.pop %v2966
  %v2970 = vmul.f32 1.0, %v2969
  %v2971 = vadd.f32 %v2930, %v2425
  %v2972 = vadd.f32 %v2933, %v2425
  %v2973 = vmul.f32 %v2954, %v2971
  %v2974 = vmul.f32 %v2956, %v2972
  %v2975 = vadd.f32 %v2939, %v2973
  %v2976 = vadd.f32 %v2942, %v2974
  %v2977 = vtanh.pop %v2975
  %v2978 = vtanh.pop %v2976
  %v2979 = vsub.f32 1.0, %v2968
  %v2980 = vsub.f32 1.0, %v2970
  %v2981 = vmul.f32 %v2979, %v2977
  %v2982 = vmul.f32 %v2980, %v2978
  %v2983 = vmul.f32 %v2968, %v2849
  %v2984 = vmul.f32 %v2970, %v2850
  %v2985 = vadd.f32 %v2981, %v2983
  %v2986 = vadd.f32 %v2982, %v2984
  %v2987 = vld [vmem:[%s12] sm:$0xff]
  %v2988 = vld [vmem:[%s12 + $0x8] sm:$0xff]
  %v2989 = vld [vmem:[%s12 + $0x10] sm:$0xff]
  %v2990 = vld [vmem:[%s12 + $0x18] sm:$0xff]
  %v2991 = vld [vmem:[%s12 + $0x20] sm:$0xff]
  %v2992 = vld [vmem:[%s12 + $0x28] sm:$0xff]
  %v2993 = vld [vmem:[%s12 + $0x30] sm:$0xff]
  %v2994 = vld [vmem:[%s12 + $0x38] sm:$0xff]
  %v2995 = vld [vmem:[%s12 + $0x40] sm:$0xff]
  %v2996 = vld [vmem:[%s12 + $0x48] sm:$0xff]
  %v2997 = vld [vmem:[%s12 + $0x50] sm:$0xff]
  %v2998 = vld [vmem:[%s12 + $0x58] sm:$0xff]
  %v2999 = vld [vmem:[%s12 + $0x60] sm:$0xff]
  %v3000 = vld [vmem:[%s12 + $0x68] sm:$0xff]
  %v3001 = vld [vmem:[%s12 + $0x70] sm:$0xff]
  %v3002 = vld [vmem:[%s12 + $0x78] sm:$0xff]
  %v3003 = vld [vmem:[%s14] sm:$0x1]
  %v3005 = vlaneseq
  %v3006 = vshrl.u32 %v3005, 7
  %v3007 = vsub.s32 0, %v3006
  %v3008 = vrot.slane %v3003, %v3007
  %3010 = vmatprep.subr.mxu0 0.0
  %3011 = vmatpush1.msra.mxu0 %v2987
  %3012 = vmatprep.subr.mxu0 0.0
  %3013 = vmatpush1.msra.mxu0 %v2988
  %3014 = vmatprep.subr.mxu0 0.0
  %3015 = vmatpush1.msra.mxu0 %v2989
  %3016 = vmatprep.subr.mxu0 0.0
  %3017 = vmatpush1.msra.mxu0 %v2990
  %3018 = vmatprep.subr.mxu0 0.0
  %3019 = vmatpush1.msra.mxu0 %v2991
  %3020 = vmatprep.subr.mxu0 0.0
  %3021 = vmatpush1.msra.mxu0 %v2992
  %3022 = vmatprep.subr.mxu0 0.0
  %3023 = vmatpush1.msra.mxu0 %v2993
  %3024 = vmatprep.subr.mxu0 0.0
  %3025 = vmatpush1.msra.mxu0 %v2994
  %3026 = vmatprep.subr.mxu0 0.0
  %3027 = vmatpush1.msra.mxu0 %v2995
  %3028 = vmatprep.subr.mxu0 0.0
  %3029 = vmatpush1.msra.mxu0 %v2996
  %3030 = vmatprep.subr.mxu0 0.0
  %3031 = vmatpush1.msra.mxu0 %v2997
  %3032 = vmatprep.subr.mxu0 0.0
  %3033 = vmatpush1.msra.mxu0 %v2998
  %3034 = vmatprep.subr.mxu0 0.0
  %3035 = vmatpush1.msra.mxu0 %v2999
  %3036 = vmatprep.subr.mxu0 0.0
  %3037 = vmatpush1.msra.mxu0 %v3000
  %3038 = vmatprep.subr.mxu0 0.0
  %3039 = vmatpush1.msra.mxu0 %v3001
  %3040 = vmatprep.subr.mxu0 0.0
  %3041 = vmatpush1.msra.mxu0 %v3002
  %3042 = vmatprep.subr.mxu0 0.0
  %3043 = vmatpush1.msra.mxu0 0.0
  %3044 = vmatprep.subr.mxu0 0.0
  %3045 = vmatpush1.msra.mxu0 0.0
  %3046 = vmatprep.subr.mxu0 0.0
  %3047 = vmatpush1.msra.mxu0 0.0
  %3048 = vmatprep.subr.mxu0 0.0
  %3049 = vmatpush1.msra.mxu0 0.0
  %3050 = vmatprep.subr.mxu0 0.0
  %3051 = vmatpush1.msra.mxu0 0.0
  %3052 = vmatprep.subr.mxu0 0.0
  %3053 = vmatpush1.msra.mxu0 0.0
  %3054 = vmatprep.subr.mxu0 0.0
  %3055 = vmatpush1.msra.mxu0 0.0
  %3056 = vmatprep.subr.mxu0 0.0
  %3057 = vmatpush1.msra.mxu0 0.0
  %3058 = vmatprep.subr.mxu0 0.0
  %3059 = vmatpush1.msra.mxu0 0.0
  %3060 = vmatprep.subr.mxu0 0.0
  %3061 = vmatpush1.msra.mxu0 0.0
  %3062 = vmatprep.subr.mxu0 0.0
  %3063 = vmatpush1.msra.mxu0 0.0
  %3064 = vmatprep.subr.mxu0 0.0
  %3065 = vmatpush1.msra.mxu0 0.0
  %3066 = vmatprep.subr.mxu0 0.0
  %3067 = vmatpush1.msra.mxu0 0.0
  %3068 = vmatprep.subr.mxu0 0.0
  %3069 = vmatpush1.msra.mxu0 0.0
  %3070 = vmatprep.subr.mxu0 0.0
  %3071 = vmatpush1.msra.mxu0 0.0
  %3072 = vmatprep.subr.mxu0 0.0
  %3073 = vmatpush1.msra.mxu0 0.0
  %3074 = vmatprep.mubr.f32.mxu0 0.0
  %3075 = vmatmul.mubr.f32.gmra.mrb[0].mxu0 %v2141
  %v3076 = vpop.f32.mrb[0].mxu0
  %v3077 = vadd.f32 %v3008, %v3076
  %v3078 = vpop.f32.mrb[0].mxu0
  %3079 = vdwg.mxu0
  %v3080 = vld [vmem:[%s13] sm:$0xff]
  %v3081 = vld [vmem:[%s13 + $0x8] sm:$0xff]
  %v3082 = vld [vmem:[%s13 + $0x10] sm:$0xff]
  %v3083 = vld [vmem:[%s13 + $0x18] sm:$0xff]
  %v3084 = vld [vmem:[%s13 + $0x20] sm:$0xff]
  %v3085 = vld [vmem:[%s13 + $0x28] sm:$0xff]
  %v3086 = vld [vmem:[%s13 + $0x30] sm:$0xff]
  %v3087 = vld [vmem:[%s13 + $0x38] sm:$0xff]
  %v3088 = vld [vmem:[%s13 + $0x40] sm:$0xff]
  %v3089 = vld [vmem:[%s13 + $0x48] sm:$0xff]
  %v3090 = vld [vmem:[%s13 + $0x50] sm:$0xff]
  %v3091 = vld [vmem:[%s13 + $0x58] sm:$0xff]
  %v3092 = vld [vmem:[%s13 + $0x60] sm:$0xff]
  %v3093 = vld [vmem:[%s13 + $0x68] sm:$0xff]
  %v3094 = vld [vmem:[%s13 + $0x70] sm:$0xff]
  %v3095 = vld [vmem:[%s13 + $0x78] sm:$0xff]
  %3096 = vmatprep.subr.mxu0 0.0
  %3097 = vmatpush1.msra.mxu0 %v3080
  %3098 = vmatprep.subr.mxu0 0.0
  %3099 = vmatpush1.msra.mxu0 %v3081
  %3100 = vmatprep.subr.mxu0 0.0
  %3101 = vmatpush1.msra.mxu0 %v3082
  %3102 = vmatprep.subr.mxu0 0.0
  %3103 = vmatpush1.msra.mxu0 %v3083
  %3104 = vmatprep.subr.mxu0 0.0
  %3105 = vmatpush1.msra.mxu0 %v3084
  %3106 = vmatprep.subr.mxu0 0.0
  %3107 = vmatpush1.msra.mxu0 %v3085
  %3108 = vmatprep.subr.mxu0 0.0
  %3109 = vmatpush1.msra.mxu0 %v3086
  %3110 = vmatprep.subr.mxu0 0.0
  %3111 = vmatpush1.msra.mxu0 %v3087
  %3112 = vmatprep.subr.mxu0 0.0
  %3113 = vmatpush1.msra.mxu0 %v3088
  %3114 = vmatprep.subr.mxu0 0.0
  %3115 = vmatpush1.msra.mxu0 %v3089
  %3116 = vmatprep.subr.mxu0 0.0
  %3117 = vmatpush1.msra.mxu0 %v3090
  %3118 = vmatprep.subr.mxu0 0.0
  %3119 = vmatpush1.msra.mxu0 %v3091
  %3120 = vmatprep.subr.mxu0 0.0
  %3121 = vmatpush1.msra.mxu0 %v3092
  %3122 = vmatprep.subr.mxu0 0.0
  %3123 = vmatpush1.msra.mxu0 %v3093
  %3124 = vmatprep.subr.mxu0 0.0
  %3125 = vmatpush1.msra.mxu0 %v3094
  %3126 = vmatprep.subr.mxu0 0.0
  %3127 = vmatpush1.msra.mxu0 %v3095
  %3128 = vmatprep.subr.mxu0 0.0
  %3129 = vmatpush1.msra.mxu0 0.0
  %3130 = vmatprep.subr.mxu0 0.0
  %3131 = vmatpush1.msra.mxu0 0.0
  %3132 = vmatprep.subr.mxu0 0.0
  %3133 = vmatpush1.msra.mxu0 0.0
  %3134 = vmatprep.subr.mxu0 0.0
  %3135 = vmatpush1.msra.mxu0 0.0
  %3136 = vmatprep.subr.mxu0 0.0
  %3137 = vmatpush1.msra.mxu0 0.0
  %3138 = vmatprep.subr.mxu0 0.0
  %3139 = vmatpush1.msra.mxu0 0.0
  %3140 = vmatprep.subr.mxu0 0.0
  %3141 = vmatpush1.msra.mxu0 0.0
  %3142 = vmatprep.subr.mxu0 0.0
  %3143 = vmatpush1.msra.mxu0 0.0
  %3144 = vmatprep.subr.mxu0 0.0
  %3145 = vmatpush1.msra.mxu0 0.0
  %3146 = vmatprep.subr.mxu0 0.0
  %3147 = vmatpush1.msra.mxu0 0.0
  %3148 = vmatprep.subr.mxu0 0.0
  %3149 = vmatpush1.msra.mxu0 0.0
  %3150 = vmatprep.subr.mxu0 0.0
  %3151 = vmatpush1.msra.mxu0 0.0
  %3152 = vmatprep.subr.mxu0 0.0
  %3153 = vmatpush1.msra.mxu0 0.0
  %3154 = vmatprep.subr.mxu0 0.0
  %3155 = vmatpush1.msra.mxu0 0.0
  %3156 = vmatprep.subr.mxu0 0.0
  %3157 = vmatpush1.msra.mxu0 0.0
  %3158 = vmatprep.subr.mxu0 0.0
  %3159 = vmatpush1.msra.mxu0 0.0
  %3160 = vmatprep.mubr.f32.mxu0 0.0
  %3161 = vmatmul.mubr.f32.gmra.mrb[0].mxu0 %v2985
  %v3162 = vpop.f32.mrb[0].mxu0
  %v3163 = vadd.f32 0.0, %v3162
  %v3164 = vpop.f32.mrb[0].mxu0
  %3165 = vdwg.mxu0
  %v3166 = vadd.f32 %v3077, %v3163
  %s3167 = scalar_lea.vmem %s13, 128
  %v3168 = vld [vmem:[%s3167] sm:$0xff]
  %v3169 = vld [vmem:[%s3167 + $0x8] sm:$0xff]
  %v3170 = vld [vmem:[%s3167 + $0x10] sm:$0xff]
  %v3171 = vld [vmem:[%s3167 + $0x18] sm:$0xff]
  %v3172 = vld [vmem:[%s3167 + $0x20] sm:$0xff]
  %v3173 = vld [vmem:[%s3167 + $0x28] sm:$0xff]
  %v3174 = vld [vmem:[%s3167 + $0x30] sm:$0xff]
  %v3175 = vld [vmem:[%s3167 + $0x38] sm:$0xff]
  %v3176 = vld [vmem:[%s3167 + $0x40] sm:$0xff]
  %v3177 = vld [vmem:[%s3167 + $0x48] sm:$0xff]
  %v3178 = vld [vmem:[%s3167 + $0x50] sm:$0xff]
  %v3179 = vld [vmem:[%s3167 + $0x58] sm:$0xff]
  %v3180 = vld [vmem:[%s3167 + $0x60] sm:$0xff]
  %v3181 = vld [vmem:[%s3167 + $0x68] sm:$0xff]
  %v3182 = vld [vmem:[%s3167 + $0x70] sm:$0xff]
  %v3183 = vld [vmem:[%s3167 + $0x78] sm:$0xff]
  %3184 = vmatprep.subr.mxu0 0.0
  %3185 = vmatpush1.msra.mxu0 %v3168
  %3186 = vmatprep.subr.mxu0 0.0
  %3187 = vmatpush1.msra.mxu0 %v3169
  %3188 = vmatprep.subr.mxu0 0.0
  %3189 = vmatpush1.msra.mxu0 %v3170
  %3190 = vmatprep.subr.mxu0 0.0
  %3191 = vmatpush1.msra.mxu0 %v3171
  %3192 = vmatprep.subr.mxu0 0.0
  %3193 = vmatpush1.msra.mxu0 %v3172
  %3194 = vmatprep.subr.mxu0 0.0
  %3195 = vmatpush1.msra.mxu0 %v3173
  %3196 = vmatprep.subr.mxu0 0.0
  %3197 = vmatpush1.msra.mxu0 %v3174
  %3198 = vmatprep.subr.mxu0 0.0
  %3199 = vmatpush1.msra.mxu0 %v3175
  %3200 = vmatprep.subr.mxu0 0.0
  %3201 = vmatpush1.msra.mxu0 %v3176
  %3202 = vmatprep.subr.mxu0 0.0
  %3203 = vmatpush1.msra.mxu0 %v3177
  %3204 = vmatprep.subr.mxu0 0.0
  %3205 = vmatpush1.msra.mxu0 %v3178
  %3206 = vmatprep.subr.mxu0 0.0
  %3207 = vmatpush1.msra.mxu0 %v3179
  %3208 = vmatprep.subr.mxu0 0.0
  %3209 = vmatpush1.msra.mxu0 %v3180
  %3210 = vmatprep.subr.mxu0 0.0
  %3211 = vmatpush1.msra.mxu0 %v3181
  %3212 = vmatprep.subr.mxu0 0.0
  %3213 = vmatpush1.msra.mxu0 %v3182
  %3214 = vmatprep.subr.mxu0 0.0
  %3215 = vmatpush1.msra.mxu0 %v3183
  %3216 = vmatprep.subr.mxu0 0.0
  %3217 = vmatpush1.msra.mxu0 0.0
  %3218 = vmatprep.subr.mxu0 0.0
  %3219 = vmatpush1.msra.mxu0 0.0
  %3220 = vmatprep.subr.mxu0 0.0
  %3221 = vmatpush1.msra.mxu0 0.0
  %3222 = vmatprep.subr.mxu0 0.0
  %3223 = vmatpush1.msra.mxu0 0.0
  %3224 = vmatprep.subr.mxu0 0.0
  %3225 = vmatpush1.msra.mxu0 0.0
  %3226 = vmatprep.subr.mxu0 0.0
  %3227 = vmatpush1.msra.mxu0 0.0
  %3228 = vmatprep.subr.mxu0 0.0
  %3229 = vmatpush1.msra.mxu0 0.0
  %3230 = vmatprep.subr.mxu0 0.0
  %3231 = vmatpush1.msra.mxu0 0.0
  %3232 = vmatprep.subr.mxu0 0.0
  %3233 = vmatpush1.msra.mxu0 0.0
  %3234 = vmatprep.subr.mxu0 0.0
  %3235 = vmatpush1.msra.mxu0 0.0
  %3236 = vmatprep.subr.mxu0 0.0
  %3237 = vmatpush1.msra.mxu0 0.0
  %3238 = vmatprep.subr.mxu0 0.0
  %3239 = vmatpush1.msra.mxu0 0.0
  %3240 = vmatprep.subr.mxu0 0.0
  %3241 = vmatpush1.msra.mxu0 0.0
  %3242 = vmatprep.subr.mxu0 0.0
  %3243 = vmatpush1.msra.mxu0 0.0
  %3244 = vmatprep.subr.mxu0 0.0
  %3245 = vmatpush1.msra.mxu0 0.0
  %3246 = vmatprep.subr.mxu0 0.0
  %3247 = vmatpush1.msra.mxu0 0.0
  %3248 = vmatprep.mubr.f32.mxu0 0.0
  %3249 = vmatmul.mubr.f32.gmra.mrb[0].mxu0 %v2986
  %v3250 = vpop.f32.mrb[0].mxu0
  %v3251 = vadd.f32 0.0, %v3250
  %v3252 = vpop.f32.mrb[0].mxu0
  %3253 = vdwg.mxu0
  %v3254 = vadd.f32 %v3166, %v3251
  %v3255 = vld [vmem:[%s1] sm:$0xff]
  %v3256 = vld [vmem:[%s15] sm:$0xff]
  %v3257 = vld [vmem:[%s15 + $0x8] sm:$0xff]
  %v3258 = vld [vmem:[%s15 + $0x10] sm:$0xff]
  %v3259 = vld [vmem:[%s15 + $0x18] sm:$0xff]
  %v3260 = vld [vmem:[%s15 + $0x20] sm:$0xff]
  %v3261 = vld [vmem:[%s15 + $0x28] sm:$0xff]
  %v3262 = vld [vmem:[%s15 + $0x30] sm:$0xff]
  %v3263 = vld [vmem:[%s15 + $0x38] sm:$0xff]
  %v3264 = vld [vmem:[%s15 + $0x40] sm:$0xff]
  %v3265 = vld [vmem:[%s15 + $0x48] sm:$0xff]
  %v3266 = vld [vmem:[%s15 + $0x50] sm:$0xff]
  %v3267 = vld [vmem:[%s15 + $0x58] sm:$0xff]
  %v3268 = vld [vmem:[%s15 + $0x60] sm:$0xff]
  %v3269 = vld [vmem:[%s15 + $0x68] sm:$0xff]
  %v3270 = vld [vmem:[%s15 + $0x70] sm:$0xff]
  %v3271 = vld [vmem:[%s15 + $0x78] sm:$0xff]
  %3272 = vmatprep.subr.mxu0 0.0
  %3273 = vmatpush1.msra.mxu0 %v3256
  %3274 = vmatprep.subr.mxu0 0.0
  %3275 = vmatpush1.msra.mxu0 %v3257
  %3276 = vmatprep.subr.mxu0 0.0
  %3277 = vmatpush1.msra.mxu0 %v3258
  %3278 = vmatprep.subr.mxu0 0.0
  %3279 = vmatpush1.msra.mxu0 %v3259
  %3280 = vmatprep.subr.mxu0 0.0
  %3281 = vmatpush1.msra.mxu0 %v3260
  %3282 = vmatprep.subr.mxu0 0.0
  %3283 = vmatpush1.msra.mxu0 %v3261
  %3284 = vmatprep.subr.mxu0 0.0
  %3285 = vmatpush1.msra.mxu0 %v3262
  %3286 = vmatprep.subr.mxu0 0.0
  %3287 = vmatpush1.msra.mxu0 %v3263
  %3288 = vmatprep.subr.mxu0 0.0
  %3289 = vmatpush1.msra.mxu0 %v3264
  %3290 = vmatprep.subr.mxu0 0.0
  %3291 = vmatpush1.msra.mxu0 %v3265
  %3292 = vmatprep.subr.mxu0 0.0
  %3293 = vmatpush1.msra.mxu0 %v3266
  %3294 = vmatprep.subr.mxu0 0.0
  %3295 = vmatpush1.msra.mxu0 %v3267
  %3296 = vmatprep.subr.mxu0 0.0
  %3297 = vmatpush1.msra.mxu0 %v3268
  %3298 = vmatprep.subr.mxu0 0.0
  %3299 = vmatpush1.msra.mxu0 %v3269
  %3300 = vmatprep.subr.mxu0 0.0
  %3301 = vmatpush1.msra.mxu0 %v3270
  %3302 = vmatprep.subr.mxu0 0.0
  %3303 = vmatpush1.msra.mxu0 %v3271
  %3304 = vmatprep.subr.mxu0 0.0
  %3305 = vmatpush1.msra.mxu0 0.0
  %3306 = vmatprep.subr.mxu0 0.0
  %3307 = vmatpush1.msra.mxu0 0.0
  %3308 = vmatprep.subr.mxu0 0.0
  %3309 = vmatpush1.msra.mxu0 0.0
  %3310 = vmatprep.subr.mxu0 0.0
  %3311 = vmatpush1.msra.mxu0 0.0
  %3312 = vmatprep.subr.mxu0 0.0
  %3313 = vmatpush1.msra.mxu0 0.0
  %3314 = vmatprep.subr.mxu0 0.0
  %3315 = vmatpush1.msra.mxu0 0.0
  %3316 = vmatprep.subr.mxu0 0.0
  %3317 = vmatpush1.msra.mxu0 0.0
  %3318 = vmatprep.subr.mxu0 0.0
  %3319 = vmatpush1.msra.mxu0 0.0
  %3320 = vmatprep.subr.mxu0 0.0
  %3321 = vmatpush1.msra.mxu0 0.0
  %3322 = vmatprep.subr.mxu0 0.0
  %3323 = vmatpush1.msra.mxu0 0.0
  %3324 = vmatprep.subr.mxu0 0.0
  %3325 = vmatpush1.msra.mxu0 0.0
  %3326 = vmatprep.subr.mxu0 0.0
  %3327 = vmatpush1.msra.mxu0 0.0
  %3328 = vmatprep.subr.mxu0 0.0
  %3329 = vmatpush1.msra.mxu0 0.0
  %3330 = vmatprep.subr.mxu0 0.0
  %3331 = vmatpush1.msra.mxu0 0.0
  %3332 = vmatprep.subr.mxu0 0.0
  %3333 = vmatpush1.msra.mxu0 0.0
  %3334 = vmatprep.subr.mxu0 0.0
  %3335 = vmatpush1.msra.mxu0 0.0
  %3336 = vmatprep.mubr.f32.mxu0 0.0
  %3337 = vmatmul.mubr.f32.gmra.mrb[0].mxu0 %v3255
  %v3338 = vpop.f32.mrb[0].mxu0
  %v3339 = vadd.f32 0.0, %v3338
  %v3340 = vpop.f32.mrb[0].mxu0
  %3341 = vdwg.mxu0
  %v3342 = vadd.f32 %v3254, %v3339
  %v3343 = vld [vmem:[%s16] sm:$0x1]
  %v3345 = vlaneseq
  %v3346 = vshrl.u32 %v3345, 7
  %v3347 = vsub.s32 0, %v3346
  %v3348 = vrot.slane %v3343, %v3347
  %v3350 = vadd.f32 %v3342, %v3348
  %v3351 = vxor.u32 %v3350, 2147483648
  %v3352 = vmul.f32 %v3351, 1.442695
  %v3353 = vpow.pop %v3352
  %v3354 = vadd.f32 %v3353, 1.0
  %v3355 = vrcp.pop %v3354
  %v3356 = vmul.f32 1.0, %v3355
  %vm3357 = vcmask 48128
  %3358 = vst.msk [vmem:[%s17] sm:$0xff] %vm3357, %v3356
  // Predicated region
  $region70: #{_lambda_.1} parent=0 // pred_check
    _
  $region71: #{_lambda_.1} parent=0 // pred_check_branch
    %3360 = sbr.rel (0) target = $region73
  $region72: #{_lambda_.1} parent=0 // pred_region
    _
  $region73: #{_lambda_.1} parent=0 // pred_fallthru
    _
  // Predicated region
  $region74: #{_lambda_.1} parent=0 // pred_check
    _
  $region75: #{_lambda_.1} parent=0 // pred_check_branch
    %3362 = sbr.rel (0) target = $region77
  $region76: #{_lambda_.1} parent=0 // pred_region
    _
  $region77: #{_lambda_.1} parent=0 // pred_fallthru
    _

</llo_original>
